<compile_context>
chip_gen: v7x
topology: tpu7x:2x2x1
jax: 0.10.0
libtpu: 0.0.40
codegen_flags: <defaults>
</compile_context>

<pallas_src>
import functools
import math

import jax
import jax.numpy as jnp
from jax import lax
from jax.experimental import pallas as pl
from jax.experimental.pallas import tpu as pltpu


def _round_up(n, m):
    return ((n + m - 1) // m) * m


def _vmem_limit_bytes(default=32 * 1024 * 1024):
    """Per-generation scoped-VMEM limit (~85% of physical), safe fallback."""
    try:
        cap = getattr(pltpu.get_tpu_info(), "vmem_capacity_bytes", None)
        if cap:
            return int(cap * 0.85)
    except Exception:
        pass
    return default


def _pick_token_tile(t_pad, *, max_tile=256, min_tiles=2):
    """Largest multiple-of-8 divisor of t_pad that still yields >= min_tiles
    tiles (so the 'parallel' token axis can split across v7x TensorCores),
    capped at max_tile rows.  On v5e/v6e the grid is a sequential loop, so the
    cap keeps per-step overhead amortized while bounding VMEM."""
    cap = min(max_tile, max(t_pad // min_tiles, 8))
    best = None
    for t in range(8, t_pad + 1, 8):
        if t_pad % t == 0 and t <= cap:
            best = t
    return best if best is not None else t_pad


# ---------------------------------------------------------------------------
# Kernel 1: patch projection + conv bias + cls token + pos embedding,
# gridded over token tiles, one stacked matmul per tile.
#   patches: (B, T_pad, C*P*P) bf16   (row 0 and tail pad rows are zero)
#   w:       (C*P*P, E)        bf16
#   tb:      (T_pad, E)        f32    token bias = [cls+pos0 ; pos+conv_b ; 0]
#   out:     (B, T_pad, E)     bf16
# ---------------------------------------------------------------------------
def _patch_embed_kernel(patches_ref, w_ref, tb_ref, o_ref):
    B, tt, K = patches_ref.shape
    E = w_ref.shape[1]
    x2d = patches_ref[...].reshape(B * tt, K)
    y = jnp.dot(x2d, w_ref[...], preferred_element_type=jnp.float32)
    y = y.reshape(B, tt, E) + tb_ref[...][None]
    o_ref[...] = y.astype(o_ref.dtype)


def patch_embed(patches, proj_w, token_bias, tile_t):
    B, T_pad, K = patches.shape
    E = proj_w.shape[1]
    return pl.pallas_call(
        _patch_embed_kernel,
        out_shape=jax.ShapeDtypeStruct((B, T_pad, E), jnp.bfloat16),
        grid=(T_pad // tile_t,),
        in_specs=[pl.BlockSpec((B, tile_t, K), lambda i: (0, i, 0)),
                  pl.BlockSpec(proj_w.shape, lambda i: (0, 0)),
                  pl.BlockSpec((tile_t, E), lambda i: (i, 0))],
        out_specs=pl.BlockSpec((B, tile_t, E), lambda i: (0, i, 0)),
        compiler_params=pltpu.CompilerParams(
            dimension_semantics=("parallel",),
            vmem_limit_bytes=_vmem_limit_bytes()),
    )(patches, proj_w, token_bias)


# ---------------------------------------------------------------------------
# Kernel 2: the whole nn.TransformerEncoder stack, fused into one call.
#   grid = (token_tiles, num_layers); layer axis innermost / "arbitrary".
#   Running activation stays in VMEM scratch across layer steps.
# ---------------------------------------------------------------------------
def _layer_norm(y, gamma, beta, eps):
    mean = jnp.mean(y, axis=-1, keepdims=True)
    c = y - mean
    var = jnp.mean(c * c, axis=-1, keepdims=True)
    return c * lax.rsqrt(var + eps) * gamma + beta


def _encoder_stack_kernel(x_ref, hs_ref, he_ref,
                          wq_ref, wk_ref, wv_ref, bq_ref, bk_ref, bv_ref,
                          wo_ref, bo_ref, g1_ref, be1_ref,
                          wf1_ref, bf1_ref, wf2_ref, bf2_ref, g2_ref, be2_ref,
                          o_ref,
                          act_sc, q_sc, k_sc, v_sc, *, eps):
    l = pl.program_id(1)

    # Load the token tile once per tile; layers re-use the VMEM-resident copy.
    @pl.when(l == 0)
    def _():
        act_sc[...] = x_ref[...].astype(jnp.float32)

    B, tile_t, E = act_sc.shape
    H = hs_ref.shape[1]

    head_sel = hs_ref[...]            # (E, H) bf16, 1/sqrt(Dh) folded in
    head_exp = he_ref[...]            # (H, E) bf16

    wq = wq_ref[...]; wk = wk_ref[...]; wv = wv_ref[...]
    bq = bq_ref[...]; bk = bk_ref[...]; bv = bv_ref[...]
    wo = wo_ref[...]; bo = bo_ref[...]
    g1 = g1_ref[...]; be1 = be1_ref[...]
    wf1 = wf1_ref[...]; bf1 = bf1_ref[...]
    wf2 = wf2_ref[...]; bf2 = bf2_ref[...]
    g2 = g2_ref[...]; be2 = be2_ref[...]

    # ---- QKV projections: one stacked (B*tile_t, E) matmul per projection.
    x2d = act_sc[...].reshape(B * tile_t, E).astype(wq.dtype)
    q_sc[...] = (jnp.dot(x2d, wq, preferred_element_type=jnp.float32)
                 + bq).reshape(B, tile_t, E)
    k_sc[...] = (jnp.dot(x2d, wk, preferred_element_type=jnp.float32)
                 + bk).reshape(B, tile_t, E)
    v_sc[...] = (jnp.dot(x2d, wv, preferred_element_type=jnp.float32)
                 + bv).reshape(B, tile_t, E)

    # ---- Attention over the batch axis (batch_first=False), per token/head,
    #      then out-proj + add&LN + FFN(relu) + add&LN, one batch row at a time.
    def body(b1, carry):
        q_b = q_sc[b1]                                     # (tile_t, E) f32
        k_all = k_sc[...]                                  # (B, tile_t, E)
        v_all = v_sc[...]

        # Per-head Dh-sum: single stacked (B*tile_t, E) @ (E, H) matmul.
        # TODO(synk): at large B, pack (b2, H) onto the lane axis instead of
        # the (tile_t, H) narrow-lane layout (scores as (tile_t, B*H)).
        prod = (q_b[None] * k_all).astype(head_sel.dtype)
        s = jnp.dot(prod.reshape(B * tile_t, E), head_sel,
                    preferred_element_type=jnp.float32).reshape(B, tile_t, H)

        # Softmax over the b2 (leading) axis — cheap VPU reductions over slabs.
        m = jnp.max(s, axis=0, keepdims=True)
        e = jnp.exp(s - m)
        denom = jnp.sum(e, axis=0, keepdims=True)
        # Approx EUP reciprocal: tiny deviation vs exact softmax (inference-ok).
        p = e * pl.reciprocal(denom, approx=True)          # (B, tile_t, H)

        # Broadcast head probabilities back to E lanes; contract over b2.
        p_wide = jnp.dot(p.reshape(B * tile_t, H).astype(head_exp.dtype),
                         head_exp,
                         preferred_element_type=jnp.float32
                         ).reshape(B, tile_t, E)
        ctx = jnp.sum(p_wide * v_all, axis=0)              # (tile_t, E)

        attn = jnp.dot(ctx.astype(wo.dtype), wo,
                       preferred_element_type=jnp.float32) + bo
        # TODO(synk): dropout (p=0.1) is identity here (eval-mode forward).
        x_b = act_sc[b1]
        h1 = _layer_norm(attn + x_b, g1, be1, eps)

        ff = jnp.dot(h1.astype(wf1.dtype), wf1,
                     preferred_element_type=jnp.float32) + bf1
        ff = jnp.maximum(ff, 0.0)
        ff = jnp.dot(ff.astype(wf2.dtype), wf2,
                     preferred_element_type=jnp.float32) + bf2
        h2 = _layer_norm(ff + h1, g2, be2, eps)

        act_sc[b1] = h2     # safe: Q/K/V already computed, residuals read above
        return carry

    lax.fori_loop(0, B, body, 0, unroll=B <= 8)

    @pl.when(l == pl.num_programs(1) - 1)
    def _():
        o_ref[...] = act_sc[...].astype(o_ref.dtype)


def encoder_stack(seq, params, num_heads, tile_t):
    B, T_pad, E = seq.shape
    L = params["w_q"].shape[0]
    H = num_heads
    Dh = E // H
    scale = 1.0 / math.sqrt(Dh)

    # Head selector/expander constants built once on the host (scale folded in).
    e_idx = jnp.arange(E)[:, None] // Dh                   # (E, 1)
    h_idx = jnp.arange(H)[None, :]                         # (1, H)
    mask = (e_idx == h_idx).astype(jnp.float32)            # (E, H)
    head_sel = (scale * mask).astype(jnp.bfloat16)         # (E, H)
    head_exp = mask.T.astype(jnp.bfloat16)                 # (H, E)

    tok_spec = pl.BlockSpec((B, tile_t, E), lambda i, l: (0, i, 0))

    def const_spec(a):
        nd = a.ndim
        return pl.BlockSpec(a.shape, lambda i, l, nd=nd: (0,) * nd)

    def layer_spec(a):
        nd = a.ndim
        return pl.BlockSpec((None,) + a.shape[1:],
                            lambda i, l, nd=nd: (l,) + (0,) * (nd - 1))

    weights = (params["w_q"], params["w_k"], params["w_v"],
               params["b_q"], params["b_k"], params["b_v"],
               params["w_out"], params["b_out"],
               params["ln1_g"], params["ln1_b"],
               params["w_ff1"], params["b_ff1"],
               params["w_ff2"], params["b_ff2"],
               params["ln2_g"], params["ln2_b"])

    return pl.pallas_call(
        functools.partial(_encoder_stack_kernel, eps=1e-5),
        out_shape=jax.ShapeDtypeStruct((B, T_pad, E), jnp.float32),
        grid=(T_pad // tile_t, L),
        in_specs=[tok_spec, const_spec(head_sel), const_spec(head_exp)]
                 + [layer_spec(w) for w in weights],
        out_specs=tok_spec,
        scratch_shapes=[pltpu.VMEM((B, tile_t, E), jnp.float32)] * 4,
        compiler_params=pltpu.CompilerParams(
            dimension_semantics=("parallel", "arbitrary"),
            vmem_limit_bytes=_vmem_limit_bytes()),
    )(seq, head_sel, head_exp, *weights)


# ---------------------------------------------------------------------------
# Params + forward glue
# ---------------------------------------------------------------------------
def init_vit_params(key, *, img_size, patch_size, in_channels, embed_dim,
                    num_layers, num_heads, ff_dim=2048):
    """Deterministic synthetic params.  Per-layer weights stacked on a leading
    layer axis; matmul weights stored (in, out), bf16."""
    del num_heads  # only affects forward reshapes
    num_patches = (img_size // patch_size) ** 2
    E, F, L = embed_dim, ff_dim, num_layers
    std = 0.02
    bf16 = jnp.bfloat16
    keys = iter(jax.random.split(key, 16))

    def nrm(shape, dtype=jnp.float32):
        return (std * jax.random.normal(next(keys), shape)).astype(dtype)

    return {
        # Conv2d(in, E, k=P, s=P) weight (E, C, P, P) -> (C*P*P, E)
        "proj_w": nrm((in_channels * patch_size * patch_size, E), bf16),
        "proj_b": jnp.zeros((1, E), jnp.float32),
        "cls_token": nrm((1, E)),
        "pos_embed": nrm((num_patches + 1, E)),
        "w_q": nrm((L, E, E), bf16), "w_k": nrm((L, E, E), bf16),
        "w_v": nrm((L, E, E), bf16),
        "b_q": jnp.zeros((L, 1, E), jnp.float32),
        "b_k": jnp.zeros((L, 1, E), jnp.float32),
        "b_v": jnp.zeros((L, 1, E), jnp.float32),
        "w_out": nrm((L, E, E), bf16),
        "b_out": jnp.zeros((L, 1, E), jnp.float32),
        "ln1_g": jnp.ones((L, 1, E), jnp.float32),
        "ln1_b": jnp.zeros((L, 1, E), jnp.float32),
        "w_ff1": nrm((L, E, F), bf16),
        "b_ff1": jnp.zeros((L, 1, F), jnp.float32),
        "w_ff2": nrm((L, F, E), bf16),
        "b_ff2": jnp.zeros((L, 1, E), jnp.float32),
        "ln2_g": jnp.ones((L, 1, E), jnp.float32),
        "ln2_b": jnp.zeros((L, 1, E), jnp.float32),
    }


def vision_transformer_forward(params, x, *, patch_size, num_heads,
                               token_tile=None):
    B, C, Him, Wim = x.shape
    P = patch_size
    nh, nw = Him // P, Wim // P
    NP = nh * nw
    E = params["proj_w"].shape[1]
    T = NP + 1
    T_pad = _round_up(T, 8)
    tile_t = token_tile if token_tile is not None else _pick_token_tile(T_pad)

    # Patch extraction (glue): strided conv == per-patch matmul.  Patch vector
    # order is (C, Ph, Pw), matching Conv2d weight (E, C, P, P).
    # TODO(synk): at production image sizes express this rearrangement via the
    # BlockSpec index_map (DMA layout) instead of an XLA transpose.
    patches = (x.reshape(B, C, nh, P, nw, P)
                .transpose(0, 2, 4, 1, 3, 5)
                .reshape(B, NP, C * P * P))
    # Row 0 reserved for the cls token; tail rows pad T to a multiple of 8.
    # Pad token positions never mix with real ones (attention is over the
    # batch axis per token position, LN/FFN are per token).
    patches = jnp.pad(patches, ((0, 0), (1, T_pad - T), (0, 0))
                      ).astype(jnp.bfloat16)

    # Fold cls token + positional embedding + conv bias into one epilogue add.
    token_bias = jnp.concatenate([
        params["cls_token"] + params["pos_embed"][0:1],
        params["pos_embed"][1:] + params["proj_b"],
        jnp.zeros((T_pad - T, E), jnp.float32),
    ], axis=0)

    seq = patch_embed(patches, params["proj_w"], token_bias, tile_t)
    seq = encoder_stack(seq, params, num_heads, tile_t)      # (B, T_pad, E) f32
    return seq[:, 0, :]                                      # (B, E) CLS token


if __name__ == "__main__":
    img_size, patch_size, in_channels = 16, 4, 4
    embed_dim, num_layers, num_heads = 32, 2, 4

    key = jax.random.PRNGKey(0)
    kx, kp = jax.random.split(key)
    x = jax.random.normal(kx, (2, in_channels, img_size, img_size),
                          dtype=jnp.float32)
    params = init_vit_params(
        kp, img_size=img_size, patch_size=patch_size, in_channels=in_channels,
        embed_dim=embed_dim, num_layers=num_layers, num_heads=num_heads)

    fwd = jax.jit(functools.partial(
        vision_transformer_forward, patch_size=patch_size,
        num_heads=num_heads))
    out = fwd(params, x)
    jax.block_until_ready(out)
    assert out.shape == (2, embed_dim), out.shape
    assert bool(jnp.all(jnp.isfinite(out))), "non-finite output"
    print("KERNEL_OK")
</pallas_src>

<mosaic_0001>
module attributes {stable_mosaic.version = 11 : i64} {
  func.func @_patch_embed_kernel(%arg0: i32, %arg1: memref<2x8x64xbf16, #tpu.memory_space<vmem>>, %arg2: memref<64x32xbf16, #tpu.memory_space<vmem>>, %arg3: memref<8x32xf32, #tpu.memory_space<vmem>>, %arg4: memref<2x8x32xbf16, #tpu.memory_space<vmem>>) attributes {dimension_semantics = [#tpu.dimension_semantics<parallel>], iteration_bounds = array<i64: 3>, scalar_prefetch = 0 : i64, scratch_operands = 0 : i64, tpu.core_type = #tpu.core_type<tc>, window_params = [{transform_indices = @transform_0, window_bounds = array<i64: 2, 8, 64>}, {pipeline_mode = #tpu.pipeline_mode<synchronous>, transform_indices = @transform_1, window_bounds = array<i64: 64, 32>}, {transform_indices = @transform_2, window_bounds = array<i64: 8, 32>}, {transform_indices = @transform_3, window_bounds = array<i64: 2, 8, 32>}]} {
    %c0 = arith.constant 0 : index
    %c0_0 = arith.constant 0 : index
    %c0_1 = arith.constant 0 : index
    %0 = vector.load %arg1[%c0, %c0_0, %c0_1] : memref<2x8x64xbf16, #tpu.memory_space<vmem>>, vector<2x8x64xbf16>
    %1 = vector.shape_cast %0 : vector<2x8x64xbf16> to vector<16x64xbf16>
    %c0_2 = arith.constant 0 : index
    %c0_3 = arith.constant 0 : index
    %2 = vector.load %arg2[%c0_2, %c0_3] : memref<64x32xbf16, #tpu.memory_space<vmem>>, vector<64x32xbf16>
    %cst = arith.constant dense<0.000000e+00> : vector<16x32xf32>
    %3 = tpu.matmul %1, %2, %cst {dimension_numbers = #tpu.dot_dimension_numbers<[1], [0], [0], [1], [0, 0, 1, 1], [], []>} : vector<16x64xbf16>, vector<64x32xbf16>, vector<16x32xf32> -> vector<16x32xf32>
    %4 = vector.shape_cast %3 : vector<16x32xf32> to vector<2x8x32xf32>
    %c0_4 = arith.constant 0 : index
    %c0_5 = arith.constant 0 : index
    %5 = vector.load %arg3[%c0_4, %c0_5] : memref<8x32xf32, #tpu.memory_space<vmem>>, vector<8x32xf32>
    %6 = vector.shape_cast %5 : vector<8x32xf32> to vector<1x8x32xf32>
    %7 = vector.broadcast %6 : vector<1x8x32xf32> to vector<2x8x32xf32>
    %8 = arith.addf %4, %7 : vector<2x8x32xf32>
    %9 = arith.truncf %8 : vector<2x8x32xf32> to vector<2x8x32xbf16>
    %c0_6 = arith.constant 0 : index
    %c0_7 = arith.constant 0 : index
    %c0_8 = arith.constant 0 : index
    %10 = vector.load %arg4[%c0_6, %c0_7, %c0_8] : memref<2x8x32xbf16, #tpu.memory_space<vmem>>, vector<2x8x32xbf16>
    tpu.vector_store %arg4[%c0_6, %c0_7, %c0_8], %9 {strides = array<i32>} : memref<2x8x32xbf16, #tpu.memory_space<vmem>>, vector<2x8x32xbf16>,
    return
  }
  func.func @transform_0(%arg0: i32) -> (i32, i32, i32) {
    %c0_i32 = arith.constant 0 : i32
    %c0_i32_0 = arith.constant 0 : i32
    %c0_i32_1 = arith.constant 0 : i32
    return %c0_i32, %arg0, %c0_i32_0 : i32, i32, i32
  }
  func.func @transform_1(%arg0: i32) -> (i32, i32) {
    %c0_i32 = arith.constant 0 : i32
    %c0_i32_0 = arith.constant 0 : i32
    %c0_i32_1 = arith.constant 0 : i32
    return %c0_i32, %c0_i32_0 : i32, i32
  }
  func.func @transform_2(%arg0: i32) -> (i32, i32) {
    %c0_i32 = arith.constant 0 : i32
    %c0_i32_0 = arith.constant 0 : i32
    return %arg0, %c0_i32 : i32, i32
  }
  func.func @transform_3(%arg0: i32) -> (i32, i32, i32) {
    %c0_i32 = arith.constant 0 : i32
    %c0_i32_0 = arith.constant 0 : i32
    %c0_i32_1 = arith.constant 0 : i32
    return %c0_i32, %arg0, %c0_i32_0 : i32, i32, i32
  }
}

module attributes {stable_mosaic.version = 11 : i64} {
  func.func @_encoder_stack_kernel(%arg0: i32, %arg1: i32, %arg2: memref<2x8x32xbf16, #tpu.memory_space<vmem>>, %arg3: memref<32x4xbf16, #tpu.memory_space<vmem>>, %arg4: memref<4x32xbf16, #tpu.memory_space<vmem>>, %arg5: memref<1x32x32xbf16, #tpu.memory_space<vmem>>, %arg6: memref<1x32x32xbf16, #tpu.memory_space<vmem>>, %arg7: memref<1x32x32xbf16, #tpu.memory_space<vmem>>, %arg8: memref<1x1x32xf32, #tpu.memory_space<vmem>>, %arg9: memref<1x1x32xf32, #tpu.memory_space<vmem>>, %arg10: memref<1x1x32xf32, #tpu.memory_space<vmem>>, %arg11: memref<1x32x32xbf16, #tpu.memory_space<vmem>>, %arg12: memref<1x1x32xf32, #tpu.memory_space<vmem>>, %arg13: memref<1x1x32xf32, #tpu.memory_space<vmem>>, %arg14: memref<1x1x32xf32, #tpu.memory_space<vmem>>, %arg15: memref<1x32x2048xbf16, #tpu.memory_space<vmem>>, %arg16: memref<1x1x2048xf32, #tpu.memory_space<vmem>>, %arg17: memref<1x2048x32xbf16, #tpu.memory_space<vmem>>, %arg18: memref<1x1x32xf32, #tpu.memory_space<vmem>>, %arg19: memref<1x1x32xf32, #tpu.memory_space<vmem>>, %arg20: memref<1x1x32xf32, #tpu.memory_space<vmem>>, %arg21: memref<2x8x32xf32, #tpu.memory_space<vmem>>, %arg22: memref<2x8x32xf32, #tpu.memory_space<vmem>>, %arg23: memref<2x8x32xf32, #tpu.memory_space<vmem>>, %arg24: memref<2x8x32xf32, #tpu.memory_space<vmem>>, %arg25: memref<2x8x32xf32, #tpu.memory_space<vmem>>) attributes {dimension_semantics = [#tpu.dimension_semantics<parallel>, #tpu.dimension_semantics<arbitrary>], iteration_bounds = array<i64: 3, 2>, scalar_prefetch = 0 : i64, scratch_operands = 4 : i64, tpu.core_type = #tpu.core_type<tc>, window_params = [{transform_indices = @transform_0, window_bounds = array<i64: 2, 8, 32>}, {pipeline_mode = #tpu.pipeline_mode<synchronous>, transform_indices = @transform_1, window_bounds = array<i64: 32, 4>}, {pipeline_mode = #tpu.pipeline_mode<synchronous>, transform_indices = @transform_2, window_bounds = array<i64: 4, 32>}, {transform_indices = @transform_3, window_bounds = array<i64: 1, 32, 32>}, {transform_indices = @transform_4, window_bounds = array<i64: 1, 32, 32>}, {transform_indices = @transform_5, window_bounds = array<i64: 1, 32, 32>}, {transform_indices = @transform_6, window_bounds = array<i64: 1, 1, 32>}, {transform_indices = @transform_7, window_bounds = array<i64: 1, 1, 32>}, {transform_indices = @transform_8, window_bounds = array<i64: 1, 1, 32>}, {transform_indices = @transform_9, window_bounds = array<i64: 1, 32, 32>}, {transform_indices = @transform_10, window_bounds = array<i64: 1, 1, 32>}, {transform_indices = @transform_11, window_bounds = array<i64: 1, 1, 32>}, {transform_indices = @transform_12, window_bounds = array<i64: 1, 1, 32>}, {transform_indices = @transform_13, window_bounds = array<i64: 1, 32, 2048>}, {transform_indices = @transform_14, window_bounds = array<i64: 1, 1, 2048>}, {transform_indices = @transform_15, window_bounds = array<i64: 1, 2048, 32>}, {transform_indices = @transform_16, window_bounds = array<i64: 1, 1, 32>}, {transform_indices = @transform_17, window_bounds = array<i64: 1, 1, 32>}, {transform_indices = @transform_18, window_bounds = array<i64: 1, 1, 32>}, {transform_indices = @transform_19, window_bounds = array<i64: 2, 8, 32>}]} {
    %c0_i32 = arith.constant 0 : i32
    %0 = arith.cmpi eq, %arg1, %c0_i32 : i32
    %1 = arith.extui %0 : i1 to i32
    %c0_i32_0 = arith.constant 0 : i32
    %2 = arith.cmpi ne, %1, %c0_i32_0 : i32
    scf.if %2 {
      %c0_131 = arith.constant 0 : index
      %c0_132 = arith.constant 0 : index
      %c0_133 = arith.constant 0 : index
      %240 = vector.load %arg2[%c0_131, %c0_132, %c0_133] : memref<2x8x32xbf16, #tpu.memory_space<vmem>>, vector<2x8x32xbf16>
      %241 = arith.extf %240 : vector<2x8x32xbf16> to vector<2x8x32xf32>
      %c0_134 = arith.constant 0 : index
      %c0_135 = arith.constant 0 : index
      %c0_136 = arith.constant 0 : index
      %242 = vector.load %arg22[%c0_134, %c0_135, %c0_136] : memref<2x8x32xf32, #tpu.memory_space<vmem>>, vector<2x8x32xf32>
      tpu.vector_store %arg22[%c0_134, %c0_135, %c0_136], %241 {strides = array<i32>} : memref<2x8x32xf32, #tpu.memory_space<vmem>>, vector<2x8x32xf32>,
    } else {
    }
    %c0 = arith.constant 0 : index
    %c0_1 = arith.constant 0 : index
    %3 = vector.load %arg3[%c0, %c0_1] : memref<32x4xbf16, #tpu.memory_space<vmem>>, vector<32x4xbf16>
    %c0_2 = arith.constant 0 : index
    %c0_3 = arith.constant 0 : index
    %4 = vector.load %arg4[%c0_2, %c0_3] : memref<4x32xbf16, #tpu.memory_space<vmem>>, vector<4x32xbf16>
    %c0_4 = arith.constant 0 : index
    %c0_5 = arith.constant 0 : index
    %c0_6 = arith.constant 0 : index
    %5 = vector.load %arg5[%c0_4, %c0_5, %c0_6] : memref<1x32x32xbf16, #tpu.memory_space<vmem>>, vector<1x32x32xbf16>
    %6 = vector.shape_cast %5 : vector<1x32x32xbf16> to vector<32x32xbf16>
    %c0_7 = arith.constant 0 : index
    %c0_8 = arith.constant 0 : index
    %c0_9 = arith.constant 0 : index
    %7 = vector.load %arg6[%c0_7, %c0_8, %c0_9] : memref<1x32x32xbf16, #tpu.memory_space<vmem>>, vector<1x32x32xbf16>
    %8 = vector.shape_cast %7 : vector<1x32x32xbf16> to vector<32x32xbf16>
    %c0_10 = arith.constant 0 : index
    %c0_11 = arith.constant 0 : index
    %c0_12 = arith.constant 0 : index
    %9 = vector.load %arg7[%c0_10, %c0_11, %c0_12] : memref<1x32x32xbf16, #tpu.memory_space<vmem>>, vector<1x32x32xbf16>
    %10 = vector.shape_cast %9 : vector<1x32x32xbf16> to vector<32x32xbf16>
    %c0_13 = arith.constant 0 : index
    %c0_14 = arith.constant 0 : index
    %c0_15 = arith.constant 0 : index
    %11 = vector.load %arg8[%c0_13, %c0_14, %c0_15] : memref<1x1x32xf32, #tpu.memory_space<vmem>>, vector<1x1x32xf32>
    %12 = vector.shape_cast %11 : vector<1x1x32xf32> to vector<1x32xf32>
    %c0_16 = arith.constant 0 : index
    %c0_17 = arith.constant 0 : index
    %c0_18 = arith.constant 0 : index
    %13 = vector.load %arg9[%c0_16, %c0_17, %c0_18] : memref<1x1x32xf32, #tpu.memory_space<vmem>>, vector<1x1x32xf32>
    %14 = vector.shape_cast %13 : vector<1x1x32xf32> to vector<1x32xf32>
    %c0_19 = arith.constant 0 : index
    %c0_20 = arith.constant 0 : index
    %c0_21 = arith.constant 0 : index
    %15 = vector.load %arg10[%c0_19, %c0_20, %c0_21] : memref<1x1x32xf32, #tpu.memory_space<vmem>>, vector<1x1x32xf32>
    %16 = vector.shape_cast %15 : vector<1x1x32xf32> to vector<1x32xf32>
    %c0_22 = arith.constant 0 : index
    %c0_23 = arith.constant 0 : index
    %c0_24 = arith.constant 0 : index
    %17 = vector.load %arg11[%c0_22, %c0_23, %c0_24] : memref<1x32x32xbf16, #tpu.memory_space<vmem>>, vector<1x32x32xbf16>
    %18 = vector.shape_cast %17 : vector<1x32x32xbf16> to vector<32x32xbf16>
    %c0_25 = arith.constant 0 : index
    %c0_26 = arith.constant 0 : index
    %c0_27 = arith.constant 0 : index
    %19 = vector.load %arg12[%c0_25, %c0_26, %c0_27] : memref<1x1x32xf32, #tpu.memory_space<vmem>>, vector<1x1x32xf32>
    %20 = vector.shape_cast %19 : vector<1x1x32xf32> to vector<1x32xf32>
    %c0_28 = arith.constant 0 : index
    %c0_29 = arith.constant 0 : index
    %c0_30 = arith.constant 0 : index
    %21 = vector.load %arg13[%c0_28, %c0_29, %c0_30] : memref<1x1x32xf32, #tpu.memory_space<vmem>>, vector<1x1x32xf32>
    %22 = vector.shape_cast %21 : vector<1x1x32xf32> to vector<1x32xf32>
    %c0_31 = arith.constant 0 : index
    %c0_32 = arith.constant 0 : index
    %c0_33 = arith.constant 0 : index
    %23 = vector.load %arg14[%c0_31, %c0_32, %c0_33] : memref<1x1x32xf32, #tpu.memory_space<vmem>>, vector<1x1x32xf32>
    %24 = vector.shape_cast %23 : vector<1x1x32xf32> to vector<1x32xf32>
    %c0_34 = arith.constant 0 : index
    %c0_35 = arith.constant 0 : index
    %c0_36 = arith.constant 0 : index
    %25 = vector.load %arg15[%c0_34, %c0_35, %c0_36] : memref<1x32x2048xbf16, #tpu.memory_space<vmem>>, vector<1x32x2048xbf16>
    %26 = vector.shape_cast %25 : vector<1x32x2048xbf16> to vector<32x2048xbf16>
    %c0_37 = arith.constant 0 : index
    %c0_38 = arith.constant 0 : index
    %c0_39 = arith.constant 0 : index
    %27 = vector.load %arg16[%c0_37, %c0_38, %c0_39] : memref<1x1x2048xf32, #tpu.memory_space<vmem>>, vector<1x1x2048xf32>
    %28 = vector.shape_cast %27 : vector<1x1x2048xf32> to vector<1x2048xf32>
    %c0_40 = arith.constant 0 : index
    %c0_41 = arith.constant 0 : index
    %c0_42 = arith.constant 0 : index
    %29 = vector.load %arg17[%c0_40, %c0_41, %c0_42] : memref<1x2048x32xbf16, #tpu.memory_space<vmem>>, vector<1x2048x32xbf16>
    %30 = vector.shape_cast %29 : vector<1x2048x32xbf16> to vector<2048x32xbf16>
    %c0_43 = arith.constant 0 : index
    %c0_44 = arith.constant 0 : index
    %c0_45 = arith.constant 0 : index
    %31 = vector.load %arg18[%c0_43, %c0_44, %c0_45] : memref<1x1x32xf32, #tpu.memory_space<vmem>>, vector<1x1x32xf32>
    %32 = vector.shape_cast %31 : vector<1x1x32xf32> to vector<1x32xf32>
    %c0_46 = arith.constant 0 : index
    %c0_47 = arith.constant 0 : index
    %c0_48 = arith.constant 0 : index
    %33 = vector.load %arg19[%c0_46, %c0_47, %c0_48] : memref<1x1x32xf32, #tpu.memory_space<vmem>>, vector<1x1x32xf32>
    %34 = vector.shape_cast %33 : vector<1x1x32xf32> to vector<1x32xf32>
    %c0_49 = arith.constant 0 : index
    %c0_50 = arith.constant 0 : index
    %c0_51 = arith.constant 0 : index
    %35 = vector.load %arg20[%c0_49, %c0_50, %c0_51] : memref<1x1x32xf32, #tpu.memory_space<vmem>>, vector<1x1x32xf32>
    %36 = vector.shape_cast %35 : vector<1x1x32xf32> to vector<1x32xf32>
    %c0_52 = arith.constant 0 : index
    %c0_53 = arith.constant 0 : index
    %c0_54 = arith.constant 0 : index
    %37 = vector.load %arg22[%c0_52, %c0_53, %c0_54] : memref<2x8x32xf32, #tpu.memory_space<vmem>>, vector<2x8x32xf32>
    %38 = vector.shape_cast %37 : vector<2x8x32xf32> to vector<16x32xf32>
    %39 = arith.truncf %38 : vector<16x32xf32> to vector<16x32xbf16>
    %cst = arith.constant dense<0.000000e+00> : vector<16x32xf32>
    %40 = tpu.matmul %39, %6, %cst {dimension_numbers = #tpu.dot_dimension_numbers<[1], [0], [0], [1], [0, 0, 1, 1], [], []>} : vector<16x32xbf16>, vector<32x32xbf16>, vector<16x32xf32> -> vector<16x32xf32>
    %41 = vector.broadcast %12 : vector<1x32xf32> to vector<16x32xf32>
    %42 = arith.addf %40, %41 : vector<16x32xf32>
    %43 = vector.shape_cast %42 : vector<16x32xf32> to vector<2x8x32xf32>
    %c0_55 = arith.constant 0 : index
    %c0_56 = arith.constant 0 : index
    %c0_57 = arith.constant 0 : index
    %44 = vector.load %arg23[%c0_55, %c0_56, %c0_57] : memref<2x8x32xf32, #tpu.memory_space<vmem>>, vector<2x8x32xf32>
    tpu.vector_store %arg23[%c0_55, %c0_56, %c0_57], %43 {strides = array<i32>} : memref<2x8x32xf32, #tpu.memory_space<vmem>>, vector<2x8x32xf32>,
    %cst_58 = arith.constant dense<0.000000e+00> : vector<16x32xf32>
    %45 = tpu.matmul %39, %8, %cst_58 {dimension_numbers = #tpu.dot_dimension_numbers<[1], [0], [0], [1], [0, 0, 1, 1], [], []>} : vector<16x32xbf16>, vector<32x32xbf16>, vector<16x32xf32> -> vector<16x32xf32>
    %46 = vector.broadcast %14 : vector<1x32xf32> to vector<16x32xf32>
    %47 = arith.addf %45, %46 : vector<16x32xf32>
    %48 = vector.shape_cast %47 : vector<16x32xf32> to vector<2x8x32xf32>
    %c0_59 = arith.constant 0 : index
    %c0_60 = arith.constant 0 : index
    %c0_61 = arith.constant 0 : index
    %49 = vector.load %arg24[%c0_59, %c0_60, %c0_61] : memref<2x8x32xf32, #tpu.memory_space<vmem>>, vector<2x8x32xf32>
    tpu.vector_store %arg24[%c0_59, %c0_60, %c0_61], %48 {strides = array<i32>} : memref<2x8x32xf32, #tpu.memory_space<vmem>>, vector<2x8x32xf32>,
    %cst_62 = arith.constant dense<0.000000e+00> : vector<16x32xf32>
    %50 = tpu.matmul %39, %10, %cst_62 {dimension_numbers = #tpu.dot_dimension_numbers<[1], [0], [0], [1], [0, 0, 1, 1], [], []>} : vector<16x32xbf16>, vector<32x32xbf16>, vector<16x32xf32> -> vector<16x32xf32>
    %51 = vector.broadcast %16 : vector<1x32xf32> to vector<16x32xf32>
    %52 = arith.addf %50, %51 : vector<16x32xf32>
    %53 = vector.shape_cast %52 : vector<16x32xf32> to vector<2x8x32xf32>
    %c0_63 = arith.constant 0 : index
    %c0_64 = arith.constant 0 : index
    %c0_65 = arith.constant 0 : index
    %54 = vector.load %arg25[%c0_63, %c0_64, %c0_65] : memref<2x8x32xf32, #tpu.memory_space<vmem>>, vector<2x8x32xf32>
    tpu.vector_store %arg25[%c0_63, %c0_64, %c0_65], %53 {strides = array<i32>} : memref<2x8x32xf32, #tpu.memory_space<vmem>>, vector<2x8x32xf32>,
    %c0_i32_66 = arith.constant 0 : i32
    %55 = arith.index_cast %c0_i32_66 : i32 to index
    %c0_67 = arith.constant 0 : index
    %c0_68 = arith.constant 0 : index
    %56 = vector.load %arg23[%55, %c0_67, %c0_68] : memref<2x8x32xf32, #tpu.memory_space<vmem>>, vector<1x8x32xf32>
    %57 = vector.shape_cast %56 : vector<1x8x32xf32> to vector<8x32xf32>
    %c0_69 = arith.constant 0 : index
    %c0_70 = arith.constant 0 : index
    %c0_71 = arith.constant 0 : index
    %58 = vector.load %arg24[%c0_69, %c0_70, %c0_71] : memref<2x8x32xf32, #tpu.memory_space<vmem>>, vector<2x8x32xf32>
    %c0_72 = arith.constant 0 : index
    %c0_73 = arith.constant 0 : index
    %c0_74 = arith.constant 0 : index
    %59 = vector.load %arg25[%c0_72, %c0_73, %c0_74] : memref<2x8x32xf32, #tpu.memory_space<vmem>>, vector<2x8x32xf32>
    %60 = vector.shape_cast %57 : vector<8x32xf32> to vector<1x8x32xf32>
    %61 = vector.broadcast %60 : vector<1x8x32xf32> to vector<2x8x32xf32>
    %62 = arith.mulf %61, %58 : vector<2x8x32xf32>
    %63 = arith.truncf %62 : vector<2x8x32xf32> to vector<2x8x32xbf16>
    %64 = vector.shape_cast %63 : vector<2x8x32xbf16> to vector<16x32xbf16>
    %cst_75 = arith.constant dense<0.000000e+00> : vector<16x4xf32>
    %65 = tpu.matmul %64, %3, %cst_75 {dimension_numbers = #tpu.dot_dimension_numbers<[1], [0], [0], [1], [0, 0, 1, 1], [], []>} : vector<16x32xbf16>, vector<32x4xbf16>, vector<16x4xf32> -> vector<16x4xf32>
    %66 = vector.shape_cast %65 : vector<16x4xf32> to vector<2x8x4xf32>
    %cst_76 = arith.constant dense<0xFF800000> : vector<8x4xf32>
    %67 = vector.multi_reduction <maximumf>, %66, %cst_76 [0] : vector<2x8x4xf32> to vector<8x4xf32>
    %68 = vector.shape_cast %67 : vector<8x4xf32> to vector<1x8x4xf32>
    %69 = vector.broadcast %68 : vector<1x8x4xf32> to vector<2x8x4xf32>
    %70 = arith.subf %66, %69 : vector<2x8x4xf32>
    %71 = math.exp %70 : vector<2x8x4xf32>
    %cst_77 = arith.constant dense<0.000000e+00> : vector<8x4xf32>
    %72 = vector.multi_reduction <add>, %71, %cst_77 [0] : vector<2x8x4xf32> to vector<8x4xf32>
    %73 = vector.shape_cast %72 : vector<8x4xf32> to vector<1x8x4xf32>
    %74 = tpu.reciprocal %73 {approx = true} : vector<1x8x4xf32> -> vector<1x8x4xf32>
    %75 = vector.broadcast %74 : vector<1x8x4xf32> to vector<2x8x4xf32>
    %76 = arith.mulf %71, %75 : vector<2x8x4xf32>
    %77 = vector.shape_cast %76 : vector<2x8x4xf32> to vector<16x4xf32>
    %78 = arith.truncf %77 : vector<16x4xf32> to vector<16x4xbf16>
    %cst_78 = arith.constant dense<0.000000e+00> : vector<16x32xf32>
    %79 = tpu.matmul %78, %4, %cst_78 {dimension_numbers = #tpu.dot_dimension_numbers<[1], [0], [0], [1], [0, 0, 1, 1], [], []>} : vector<16x4xbf16>, vector<4x32xbf16>, vector<16x32xf32> -> vector<16x32xf32>
    %80 = vector.shape_cast %79 : vector<16x32xf32> to vector<2x8x32xf32>
    %81 = arith.mulf %80, %59 : vector<2x8x32xf32>
    %cst_79 = arith.constant dense<0.000000e+00> : vector<8x32xf32>
    %82 = vector.multi_reduction <add>, %81, %cst_79 [0] : vector<2x8x32xf32> to vector<8x32xf32>
    %83 = arith.truncf %82 : vector<8x32xf32> to vector<8x32xbf16>
    %cst_80 = arith.constant dense<0.000000e+00> : vector<8x32xf32>
    %84 = tpu.matmul %83, %18, %cst_80 {dimension_numbers = #tpu.dot_dimension_numbers<[1], [0], [0], [1], [0, 0, 1, 1], [], []>} : vector<8x32xbf16>, vector<32x32xbf16>, vector<8x32xf32> -> vector<8x32xf32>
    %85 = vector.broadcast %20 : vector<1x32xf32> to vector<8x32xf32>
    %86 = arith.addf %84, %85 : vector<8x32xf32>
    %87 = arith.index_cast %c0_i32_66 : i32 to index
    %c0_81 = arith.constant 0 : index
    %c0_82 = arith.constant 0 : index
    %88 = vector.load %arg22[%87, %c0_81, %c0_82] : memref<2x8x32xf32, #tpu.memory_space<vmem>>, vector<1x8x32xf32>
    %89 = vector.shape_cast %88 : vector<1x8x32xf32> to vector<8x32xf32>
    %90 = arith.addf %86, %89 : vector<8x32xf32>
    %cst_83 = arith.constant dense<0.000000e+00> : vector<8xf32>
    %91 = vector.multi_reduction <add>, %90, %cst_83 [1] : vector<8x32xf32> to vector<8xf32>
    %92 = vector.shape_cast %91 : vector<8xf32> to vector<8x1xf32>
    %cst_84 = arith.constant 3.200000e+01 : f32
    %93 = vector.broadcast %cst_84 : f32 to vector<8x1xf32>
    %94 = arith.divf %92, %93 : vector<8x1xf32>
    %95 = vector.broadcast %94 : vector<8x1xf32> to vector<8x32xf32>
    %96 = arith.subf %90, %95 : vector<8x32xf32>
    %97 = arith.mulf %96, %96 : vector<8x32xf32>
    %cst_85 = arith.constant dense<0.000000e+00> : vector<8xf32>
    %98 = vector.multi_reduction <add>, %97, %cst_85 [1] : vector<8x32xf32> to vector<8xf32>
    %99 = vector.shape_cast %98 : vector<8xf32> to vector<8x1xf32>
    %cst_86 = arith.constant 3.200000e+01 : f32
    %100 = vector.broadcast %cst_86 : f32 to vector<8x1xf32>
    %101 = arith.divf %99, %100 : vector<8x1xf32>
    %cst_87 = arith.constant 9.99999974E-6 : f32
    %102 = vector.broadcast %cst_87 : f32 to vector<8x1xf32>
    %103 = arith.addf %101, %102 : vector<8x1xf32>
    %104 = math.rsqrt %103 : vector<8x1xf32>
    %105 = vector.broadcast %104 : vector<8x1xf32> to vector<8x32xf32>
    %106 = arith.mulf %96, %105 : vector<8x32xf32>
    %107 = vector.broadcast %22 : vector<1x32xf32> to vector<8x32xf32>
    %108 = arith.mulf %106, %107 : vector<8x32xf32>
    %109 = vector.broadcast %24 : vector<1x32xf32> to vector<8x32xf32>
    %110 = arith.addf %108, %109 : vector<8x32xf32>
    %111 = arith.truncf %110 : vector<8x32xf32> to vector<8x32xbf16>
    %cst_88 = arith.constant dense<0.000000e+00> : vector<8x2048xf32>
    %112 = tpu.matmul %111, %26, %cst_88 {dimension_numbers = #tpu.dot_dimension_numbers<[1], [0], [0], [1], [0, 0, 1, 1], [], []>} : vector<8x32xbf16>, vector<32x2048xbf16>, vector<8x2048xf32> -> vector<8x2048xf32>
    %113 = vector.broadcast %28 : vector<1x2048xf32> to vector<8x2048xf32>
    %114 = arith.addf %112, %113 : vector<8x2048xf32>
    %cst_89 = arith.constant 0.000000e+00 : f32
    %115 = vector.broadcast %cst_89 : f32 to vector<8x2048xf32>
    %116 = arith.maximumf %114, %115 : vector<8x2048xf32>
    %117 = arith.truncf %116 : vector<8x2048xf32> to vector<8x2048xbf16>
    %cst_90 = arith.constant dense<0.000000e+00> : vector<8x32xf32>
    %118 = tpu.matmul %117, %30, %cst_90 {dimension_numbers = #tpu.dot_dimension_numbers<[1], [0], [0], [1], [0, 0, 1, 1], [], []>} : vector<8x2048xbf16>, vector<2048x32xbf16>, vector<8x32xf32> -> vector<8x32xf32>
    %119 = vector.broadcast %32 : vector<1x32xf32> to vector<8x32xf32>
    %120 = arith.addf %118, %119 : vector<8x32xf32>
    %121 = arith.addf %120, %110 : vector<8x32xf32>
    %cst_91 = arith.constant dense<0.000000e+00> : vector<8xf32>
    %122 = vector.multi_reduction <add>, %121, %cst_91 [1] : vector<8x32xf32> to vector<8xf32>
    %123 = vector.shape_cast %122 : vector<8xf32> to vector<8x1xf32>
    %cst_92 = arith.constant 3.200000e+01 : f32
    %124 = vector.broadcast %cst_92 : f32 to vector<8x1xf32>
    %125 = arith.divf %123, %124 : vector<8x1xf32>
    %126 = vector.broadcast %125 : vector<8x1xf32> to vector<8x32xf32>
    %127 = arith.subf %121, %126 : vector<8x32xf32>
    %128 = arith.mulf %127, %127 : vector<8x32xf32>
    %cst_93 = arith.constant dense<0.000000e+00> : vector<8xf32>
    %129 = vector.multi_reduction <add>, %128, %cst_93 [1] : vector<8x32xf32> to vector<8xf32>
    %130 = vector.shape_cast %129 : vector<8xf32> to vector<8x1xf32>
    %cst_94 = arith.constant 3.200000e+01 : f32
    %131 = vector.broadcast %cst_94 : f32 to vector<8x1xf32>
    %132 = arith.divf %130, %131 : vector<8x1xf32>
    %cst_95 = arith.constant 9.99999974E-6 : f32
    %133 = vector.broadcast %cst_95 : f32 to vector<8x1xf32>
    %134 = arith.addf %132, %133 : vector<8x1xf32>
    %135 = math.rsqrt %134 : vector<8x1xf32>
    %136 = vector.broadcast %135 : vector<8x1xf32> to vector<8x32xf32>
    %137 = arith.mulf %127, %136 : vector<8x32xf32>
    %138 = vector.broadcast %34 : vector<1x32xf32> to vector<8x32xf32>
    %139 = arith.mulf %137, %138 : vector<8x32xf32>
    %140 = vector.broadcast %36 : vector<1x32xf32> to vector<8x32xf32>
    %141 = arith.addf %139, %140 : vector<8x32xf32>
    %142 = arith.index_cast %c0_i32_66 : i32 to index
    %c0_96 = arith.constant 0 : index
    %c0_97 = arith.constant 0 : index
    %143 = vector.load %arg22[%142, %c0_96, %c0_97] : memref<2x8x32xf32, #tpu.memory_space<vmem>>, vector<1x8x32xf32>
    %144 = vector.shape_cast %143 : vector<1x8x32xf32> to vector<8x32xf32>
    %145 = vector.shape_cast %141 : vector<8x32xf32> to vector<1x8x32xf32>
    tpu.vector_store %arg22[%142, %c0_96, %c0_97], %145 {strides = array<i32>} : memref<2x8x32xf32, #tpu.memory_space<vmem>>, vector<1x8x32xf32>,
    %c1_i32 = arith.constant 1 : i32
    %146 = arith.index_cast %c1_i32 : i32 to index
    %c0_98 = arith.constant 0 : index
    %c0_99 = arith.constant 0 : index
    %147 = vector.load %arg23[%146, %c0_98, %c0_99] : memref<2x8x32xf32, #tpu.memory_space<vmem>>, vector<1x8x32xf32>
    %148 = vector.shape_cast %147 : vector<1x8x32xf32> to vector<8x32xf32>
    %c0_100 = arith.constant 0 : index
    %c0_101 = arith.constant 0 : index
    %c0_102 = arith.constant 0 : index
    %149 = vector.load %arg24[%c0_100, %c0_101, %c0_102] : memref<2x8x32xf32, #tpu.memory_space<vmem>>, vector<2x8x32xf32>
    %c0_103 = arith.constant 0 : index
    %c0_104 = arith.constant 0 : index
    %c0_105 = arith.constant 0 : index
    %150 = vector.load %arg25[%c0_103, %c0_104, %c0_105] : memref<2x8x32xf32, #tpu.memory_space<vmem>>, vector<2x8x32xf32>
    %151 = vector.shape_cast %148 : vector<8x32xf32> to vector<1x8x32xf32>
    %152 = vector.broadcast %151 : vector<1x8x32xf32> to vector<2x8x32xf32>
    %153 = arith.mulf %152, %149 : vector<2x8x32xf32>
    %154 = arith.truncf %153 : vector<2x8x32xf32> to vector<2x8x32xbf16>
    %155 = vector.shape_cast %154 : vector<2x8x32xbf16> to vector<16x32xbf16>
    %cst_106 = arith.constant dense<0.000000e+00> : vector<16x4xf32>
    %156 = tpu.matmul %155, %3, %cst_106 {dimension_numbers = #tpu.dot_dimension_numbers<[1], [0], [0], [1], [0, 0, 1, 1], [], []>} : vector<16x32xbf16>, vector<32x4xbf16>, vector<16x4xf32> -> vector<16x4xf32>
    %157 = vector.shape_cast %156 : vector<16x4xf32> to vector<2x8x4xf32>
    %cst_107 = arith.constant dense<0xFF800000> : vector<8x4xf32>
    %158 = vector.multi_reduction <maximumf>, %157, %cst_107 [0] : vector<2x8x4xf32> to vector<8x4xf32>
    %159 = vector.shape_cast %158 : vector<8x4xf32> to vector<1x8x4xf32>
    %160 = vector.broadcast %159 : vector<1x8x4xf32> to vector<2x8x4xf32>
    %161 = arith.subf %157, %160 : vector<2x8x4xf32>
    %162 = math.exp %161 : vector<2x8x4xf32>
    %cst_108 = arith.constant dense<0.000000e+00> : vector<8x4xf32>
    %163 = vector.multi_reduction <add>, %162, %cst_108 [0] : vector<2x8x4xf32> to vector<8x4xf32>
    %164 = vector.shape_cast %163 : vector<8x4xf32> to vector<1x8x4xf32>
    %165 = tpu.reciprocal %164 {approx = true} : vector<1x8x4xf32> -> vector<1x8x4xf32>
    %166 = vector.broadcast %165 : vector<1x8x4xf32> to vector<2x8x4xf32>
    %167 = arith.mulf %162, %166 : vector<2x8x4xf32>
    %168 = vector.shape_cast %167 : vector<2x8x4xf32> to vector<16x4xf32>
    %169 = arith.truncf %168 : vector<16x4xf32> to vector<16x4xbf16>
    %cst_109 = arith.constant dense<0.000000e+00> : vector<16x32xf32>
    %170 = tpu.matmul %169, %4, %cst_109 {dimension_numbers = #tpu.dot_dimension_numbers<[1], [0], [0], [1], [0, 0, 1, 1], [], []>} : vector<16x4xbf16>, vector<4x32xbf16>, vector<16x32xf32> -> vector<16x32xf32>
    %171 = vector.shape_cast %170 : vector<16x32xf32> to vector<2x8x32xf32>
    %172 = arith.mulf %171, %150 : vector<2x8x32xf32>
    %cst_110 = arith.constant dense<0.000000e+00> : vector<8x32xf32>
    %173 = vector.multi_reduction <add>, %172, %cst_110 [0] : vector<2x8x32xf32> to vector<8x32xf32>
    %174 = arith.truncf %173 : vector<8x32xf32> to vector<8x32xbf16>
    %cst_111 = arith.constant dense<0.000000e+00> : vector<8x32xf32>
    %175 = tpu.matmul %174, %18, %cst_111 {dimension_numbers = #tpu.dot_dimension_numbers<[1], [0], [0], [1], [0, 0, 1, 1], [], []>} : vector<8x32xbf16>, vector<32x32xbf16>, vector<8x32xf32> -> vector<8x32xf32>
    %176 = vector.broadcast %20 : vector<1x32xf32> to vector<8x32xf32>
    %177 = arith.addf %175, %176 : vector<8x32xf32>
    %178 = arith.index_cast %c1_i32 : i32 to index
    %c0_112 = arith.constant 0 : index
    %c0_113 = arith.constant 0 : index
    %179 = vector.load %arg22[%178, %c0_112, %c0_113] : memref<2x8x32xf32, #tpu.memory_space<vmem>>, vector<1x8x32xf32>
    %180 = vector.shape_cast %179 : vector<1x8x32xf32> to vector<8x32xf32>
    %181 = arith.addf %177, %180 : vector<8x32xf32>
    %cst_114 = arith.constant dense<0.000000e+00> : vector<8xf32>
    %182 = vector.multi_reduction <add>, %181, %cst_114 [1] : vector<8x32xf32> to vector<8xf32>
    %183 = vector.shape_cast %182 : vector<8xf32> to vector<8x1xf32>
    %cst_115 = arith.constant 3.200000e+01 : f32
    %184 = vector.broadcast %cst_115 : f32 to vector<8x1xf32>
    %185 = arith.divf %183, %184 : vector<8x1xf32>
    %186 = vector.broadcast %185 : vector<8x1xf32> to vector<8x32xf32>
    %187 = arith.subf %181, %186 : vector<8x32xf32>
    %188 = arith.mulf %187, %187 : vector<8x32xf32>
    %cst_116 = arith.constant dense<0.000000e+00> : vector<8xf32>
    %189 = vector.multi_reduction <add>, %188, %cst_116 [1] : vector<8x32xf32> to vector<8xf32>
    %190 = vector.shape_cast %189 : vector<8xf32> to vector<8x1xf32>
    %cst_117 = arith.constant 3.200000e+01 : f32
    %191 = vector.broadcast %cst_117 : f32 to vector<8x1xf32>
    %192 = arith.divf %190, %191 : vector<8x1xf32>
    %cst_118 = arith.constant 9.99999974E-6 : f32
    %193 = vector.broadcast %cst_118 : f32 to vector<8x1xf32>
    %194 = arith.addf %192, %193 : vector<8x1xf32>
    %195 = math.rsqrt %194 : vector<8x1xf32>
    %196 = vector.broadcast %195 : vector<8x1xf32> to vector<8x32xf32>
    %197 = arith.mulf %187, %196 : vector<8x32xf32>
    %198 = vector.broadcast %22 : vector<1x32xf32> to vector<8x32xf32>
    %199 = arith.mulf %197, %198 : vector<8x32xf32>
    %200 = vector.broadcast %24 : vector<1x32xf32> to vector<8x32xf32>
    %201 = arith.addf %199, %200 : vector<8x32xf32>
    %202 = arith.truncf %201 : vector<8x32xf32> to vector<8x32xbf16>
    %cst_119 = arith.constant dense<0.000000e+00> : vector<8x2048xf32>
    %203 = tpu.matmul %202, %26, %cst_119 {dimension_numbers = #tpu.dot_dimension_numbers<[1], [0], [0], [1], [0, 0, 1, 1], [], []>} : vector<8x32xbf16>, vector<32x2048xbf16>, vector<8x2048xf32> -> vector<8x2048xf32>
    %204 = vector.broadcast %28 : vector<1x2048xf32> to vector<8x2048xf32>
    %205 = arith.addf %203, %204 : vector<8x2048xf32>
    %cst_120 = arith.constant 0.000000e+00 : f32
    %206 = vector.broadcast %cst_120 : f32 to vector<8x2048xf32>
    %207 = arith.maximumf %205, %206 : vector<8x2048xf32>
    %208 = arith.truncf %207 : vector<8x2048xf32> to vector<8x2048xbf16>
    %cst_121 = arith.constant dense<0.000000e+00> : vector<8x32xf32>
    %209 = tpu.matmul %208, %30, %cst_121 {dimension_numbers = #tpu.dot_dimension_numbers<[1], [0], [0], [1], [0, 0, 1, 1], [], []>} : vector<8x2048xbf16>, vector<2048x32xbf16>, vector<8x32xf32> -> vector<8x32xf32>
    %210 = vector.broadcast %32 : vector<1x32xf32> to vector<8x32xf32>
    %211 = arith.addf %209, %210 : vector<8x32xf32>
    %212 = arith.addf %211, %201 : vector<8x32xf32>
    %cst_122 = arith.constant dense<0.000000e+00> : vector<8xf32>
    %213 = vector.multi_reduction <add>, %212, %cst_122 [1] : vector<8x32xf32> to vector<8xf32>
    %214 = vector.shape_cast %213 : vector<8xf32> to vector<8x1xf32>
    %cst_123 = arith.constant 3.200000e+01 : f32
    %215 = vector.broadcast %cst_123 : f32 to vector<8x1xf32>
    %216 = arith.divf %214, %215 : vector<8x1xf32>
    %217 = vector.broadcast %216 : vector<8x1xf32> to vector<8x32xf32>
    %218 = arith.subf %212, %217 : vector<8x32xf32>
    %219 = arith.mulf %218, %218 : vector<8x32xf32>
    %cst_124 = arith.constant dense<0.000000e+00> : vector<8xf32>
    %220 = vector.multi_reduction <add>, %219, %cst_124 [1] : vector<8x32xf32> to vector<8xf32>
    %221 = vector.shape_cast %220 : vector<8xf32> to vector<8x1xf32>
    %cst_125 = arith.constant 3.200000e+01 : f32
    %222 = vector.broadcast %cst_125 : f32 to vector<8x1xf32>
    %223 = arith.divf %221, %222 : vector<8x1xf32>
    %cst_126 = arith.constant 9.99999974E-6 : f32
    %224 = vector.broadcast %cst_126 : f32 to vector<8x1xf32>
    %225 = arith.addf %223, %224 : vector<8x1xf32>
    %226 = math.rsqrt %225 : vector<8x1xf32>
    %227 = vector.broadcast %226 : vector<8x1xf32> to vector<8x32xf32>
    %228 = arith.mulf %218, %227 : vector<8x32xf32>
    %229 = vector.broadcast %34 : vector<1x32xf32> to vector<8x32xf32>
    %230 = arith.mulf %228, %229 : vector<8x32xf32>
    %231 = vector.broadcast %36 : vector<1x32xf32> to vector<8x32xf32>
    %232 = arith.addf %230, %231 : vector<8x32xf32>
    %233 = arith.index_cast %c1_i32 : i32 to index
    %c0_127 = arith.constant 0 : index
    %c0_128 = arith.constant 0 : index
    %234 = vector.load %arg22[%233, %c0_127, %c0_128] : memref<2x8x32xf32, #tpu.memory_space<vmem>>, vector<1x8x32xf32>
    %235 = vector.shape_cast %234 : vector<1x8x32xf32> to vector<8x32xf32>
    %236 = vector.shape_cast %232 : vector<8x32xf32> to vector<1x8x32xf32>
    tpu.vector_store %arg22[%233, %c0_127, %c0_128], %236 {strides = array<i32>} : memref<2x8x32xf32, #tpu.memory_space<vmem>>, vector<1x8x32xf32>,
    %c2_i32 = arith.constant 2 : i32
    %c1_i32_129 = arith.constant 1 : i32
    %237 = arith.cmpi eq, %arg1, %c1_i32_129 : i32
    %238 = arith.extui %237 : i1 to i32
    %c0_i32_130 = arith.constant 0 : i32
    %239 = arith.cmpi ne, %238, %c0_i32_130 : i32
    scf.if %239 {
      %c0_131 = arith.constant 0 : index
      %c0_132 = arith.constant 0 : index
      %c0_133 = arith.constant 0 : index
      %240 = vector.load %arg22[%c0_131, %c0_132, %c0_133] : memref<2x8x32xf32, #tpu.memory_space<vmem>>, vector<2x8x32xf32>
      %c0_134 = arith.constant 0 : index
      %c0_135 = arith.constant 0 : index
      %c0_136 = arith.constant 0 : index
      %241 = vector.load %arg21[%c0_134, %c0_135, %c0_136] : memref<2x8x32xf32, #tpu.memory_space<vmem>>, vector<2x8x32xf32>
      tpu.vector_store %arg21[%c0_134, %c0_135, %c0_136], %240 {strides = array<i32>} : memref<2x8x32xf32, #tpu.memory_space<vmem>>, vector<2x8x32xf32>,
    } else {
    }
    return
  }
  func.func @transform_0(%arg0: i32, %arg1: i32) -> (i32, i32, i32) {
    %c0_i32 = arith.constant 0 : i32
    %c0_i32_0 = arith.constant 0 : i32
    %c0_i32_1 = arith.constant 0 : i32
    return %c0_i32, %arg0, %c0_i32_0 : i32, i32, i32
  }
  func.func @transform_1(%arg0: i32, %arg1: i32) -> (i32, i32) {
    %c0_i32 = arith.constant 0 : i32
    %c0_i32_0 = arith.constant 0 : i32
    %c0_i32_1 = arith.constant 0 : i32
    return %c0_i32, %c0_i32_0 : i32, i32
  }
  func.func @transform_2(%arg0: i32, %arg1: i32) -> (i32, i32) {
    %c0_i32 = arith.constant 0 : i32
    %c0_i32_0 = arith.constant 0 : i32
    %c0_i32_1 = arith.constant 0 : i32
    return %c0_i32, %c0_i32_0 : i32, i32
  }
  func.func @transform_3(%arg0: i32, %arg1: i32) -> (i32, i32, i32) {
    %c0_i32 = arith.constant 0 : i32
    %c0_i32_0 = arith.constant 0 : i32
    %c0_i32_1 = arith.constant 0 : i32
    return %arg1, %c0_i32, %c0_i32_0 : i32, i32, i32
  }
  func.func @transform_4(%arg0: i32, %arg1: i32) -> (i32, i32, i32) {
    %c0_i32 = arith.constant 0 : i32
    %c0_i32_0 = arith.constant 0 : i32
    %c0_i32_1 = arith.constant 0 : i32
    return %arg1, %c0_i32, %c0_i32_0 : i32, i32, i32
  }
  func.func @transform_5(%arg0: i32, %arg1: i32) -> (i32, i32, i32) {
    %c0_i32 = arith.constant 0 : i32
    %c0_i32_0 = arith.constant 0 : i32
    %c0_i32_1 = arith.constant 0 : i32
    return %arg1, %c0_i32, %c0_i32_0 : i32, i32, i32
  }
  func.func @transform_6(%arg0: i32, %arg1: i32) -> (i32, i32, i32) {
    %c0_i32 = arith.constant 0 : i32
    %c0_i32_0 = arith.constant 0 : i32
    %c0_i32_1 = arith.constant 0 : i32
    return %arg1, %c0_i32, %c0_i32_0 : i32, i32, i32
  }
  func.func @transform_7(%arg0: i32, %arg1: i32) -> (i32, i32, i32) {
    %c0_i32 = arith.constant 0 : i32
    %c0_i32_0 = arith.constant 0 : i32
    %c0_i32_1 = arith.constant 0 : i32
    return %arg1, %c0_i32, %c0_i32_0 : i32, i32, i32
  }
  func.func @transform_8(%arg0: i32, %arg1: i32) -> (i32, i32, i32) {
    %c0_i32 = arith.constant 0 : i32
    %c0_i32_0 = arith.constant 0 : i32
    %c0_i32_1 = arith.constant 0 : i32
    return %arg1, %c0_i32, %c0_i32_0 : i32, i32, i32
  }
  func.func @transform_9(%arg0: i32, %arg1: i32) -> (i32, i32, i32) {
    %c0_i32 = arith.constant 0 : i32
    %c0_i32_0 = arith.constant 0 : i32
    %c0_i32_1 = arith.constant 0 : i32
    return %arg1, %c0_i32, %c0_i32_0 : i32, i32, i32
  }
  func.func @transform_10(%arg0: i32, %arg1: i32) -> (i32, i32, i32) {
    %c0_i32 = arith.constant 0 : i32
    %c0_i32_0 = arith.constant 0 : i32
    %c0_i32_1 = arith.constant 0 : i32
    return %arg1, %c0_i32, %c0_i32_0 : i32, i32, i32
  }
  func.func @transform_11(%arg0: i32, %arg1: i32) -> (i32, i32, i32) {
    %c0_i32 = arith.constant 0 : i32
    %c0_i32_0 = arith.constant 0 : i32
    %c0_i32_1 = arith.constant 0 : i32
    return %arg1, %c0_i32, %c0_i32_0 : i32, i32, i32
  }
  func.func @transform_12(%arg0: i32, %arg1: i32) -> (i32, i32, i32) {
    %c0_i32 = arith.constant 0 : i32
    %c0_i32_0 = arith.constant 0 : i32
    %c0_i32_1 = arith.constant 0 : i32
    return %arg1, %c0_i32, %c0_i32_0 : i32, i32, i32
  }
  func.func @transform_13(%arg0: i32, %arg1: i32) -> (i32, i32, i32) {
    %c0_i32 = arith.constant 0 : i32
    %c0_i32_0 = arith.constant 0 : i32
    %c0_i32_1 = arith.constant 0 : i32
    return %arg1, %c0_i32, %c0_i32_0 : i32, i32, i32
  }
  func.func @transform_14(%arg0: i32, %arg1: i32) -> (i32, i32, i32) {
    %c0_i32 = arith.constant 0 : i32
    %c0_i32_0 = arith.constant 0 : i32
    %c0_i32_1 = arith.constant 0 : i32
    return %arg1, %c0_i32, %c0_i32_0 : i32, i32, i32
  }
  func.func @transform_15(%arg0: i32, %arg1: i32) -> (i32, i32, i32) {
    %c0_i32 = arith.constant 0 : i32
    %c0_i32_0 = arith.constant 0 : i32
    %c0_i32_1 = arith.constant 0 : i32
    return %arg1, %c0_i32, %c0_i32_0 : i32, i32, i32
  }
  func.func @transform_16(%arg0: i32, %arg1: i32) -> (i32, i32, i32) {
    %c0_i32 = arith.constant 0 : i32
    %c0_i32_0 = arith.constant 0 : i32
    %c0_i32_1 = arith.constant 0 : i32
    return %arg1, %c0_i32, %c0_i32_0 : i32, i32, i32
  }
  func.func @transform_17(%arg0: i32, %arg1: i32) -> (i32, i32, i32) {
    %c0_i32 = arith.constant 0 : i32
    %c0_i32_0 = arith.constant 0 : i32
    %c0_i32_1 = arith.constant 0 : i32
    return %arg1, %c0_i32, %c0_i32_0 : i32, i32, i32
  }
  func.func @transform_18(%arg0: i32, %arg1: i32) -> (i32, i32, i32) {
    %c0_i32 = arith.constant 0 : i32
    %c0_i32_0 = arith.constant 0 : i32
    %c0_i32_1 = arith.constant 0 : i32
    return %arg1, %c0_i32, %c0_i32_0 : i32, i32, i32
  }
  func.func @transform_19(%arg0: i32, %arg1: i32) -> (i32, i32, i32) {
    %c0_i32 = arith.constant 0 : i32
    %c0_i32_0 = arith.constant 0 : i32
    %c0_i32_1 = arith.constant 0 : i32
    return %c0_i32, %arg0, %c0_i32_0 : i32, i32, i32
  }
}

</mosaic_0001>

<llo_original>
// kernel: vision_transformer_forward.2
$region0: #{vision_transformer_forward.2}
  #allocation0 [shape = 'u32[]', space=smem, size = 0x4, offset = 0x4, fixed_abs, tag = 'smem constant byte address 0x4 - core index']
  #allocation1 [shape = 'u32[144,128]{1,0:T(1,128)}', space=vmem, size = 0x12000, scoped, tag = 'internal scratch']
  %s0 = inlined_call_operand.vmem [shape: bf16[2,24,64], index: 0, kind: input, shape index: {}]
  %s1 = inlined_call_operand.vmem [shape: bf16[64,32], index: 1, kind: input, shape index: {}]
  %s2 = inlined_call_operand.vmem [shape: f32[24,32], index: 2, kind: input, shape index: {}]
  %s3 = inlined_call_operand.vmem [shape: bf16[2,24,32], index: 3, kind: output, shape index: {}]
  %s4 = sld [smem:[#allocation0]]
  $region123: #{vision_transformer_forward.2} parent=0
    _
  %s6 = ssub.s32 1, %s4
  %s7 = scalar_select 0, %s6, %s4
  $region1: #{vision_transformer_forward.2} parent=0
    #allocation2 [shape = 'u8[8192]{0}', space=vmem, size = 0x2000, scoped, tag = 'input window, operand 0']
    #allocation3 [shape = 'u8[8192]{0}', space=vmem, size = 0x2000, scoped, tag = 'output window, operand 0']
    loop: start=0, step=1, limit=5
    $region2: #{vision_transformer_forward.2} parent=1 // loop_pre_header
      _
    $region3: #{vision_transformer_forward.2} parent=1 // loop_header
      %s9 = sphi 0, %s13
      %p10 = scmp.ge.s32.totalorder %s9, 5
      %s19 = sphi 0, %s21
      %s22 = sphi 0, %s19
      %s23 = sphi 0, %s22
      %s39 = sphi 0, %s23
      %s43 = sphi 0, %s43
      %s45 = sphi 0, %s43
      %s46 = sphi 0, %s45
      %s60 = sphi 0, %s46
      %s66 = sphi 0, %s68
      %s69 = sphi 0, %s66
      %s70 = sphi 0, %s69
      %s86 = sphi 0, %s70
      %s92 = sphi 0, %s94
      %s95 = sphi 0, %s92
      %s96 = sphi 0, %s95
      %s112 = sphi 0, %s96
    $region4: #{vision_transformer_forward.2} parent=1 // loop_header_branch
      %12 = sbr.rel (%p10) target = $region8
    $region5: #{vision_transformer_forward.2} parent=1 // loop_body
      %s14 = ssub.s32 %s9, 1
      %s15 = ssub.s32 %s9, 2
      %s16 = sadd.s32 %s9, 1
      %s17 = ssub.s32 %s9, %s16
      %p18 = scmp.eq.s32.totalorder %s17, 0
      %s20 = sadd.s32 %s19, 1
      %s21 = scalar_select %p18, %s19, %s20
      %p24 = pneg %p18
      %p25 = scmp.eq.s32.totalorder %s9, 2
      %p26 = por %p24, %p25
      %p27 = scmp.ne.s32.totalorder %s19, %s22
      %p28 = scmp.eq.s32.totalorder %s9, 0
      %p29 = por %p27, %p28
      %p30 = scmp.ne.s32.totalorder %s19, %s22
      %p31 = scmp.eq.s32.totalorder %s14, 2
      %p32 = por %p30, %p31
      %p33 = scmp.ne.s32.totalorder %s22, %s23
      %p34 = scmp.eq.s32.totalorder %s14, 0
      %p35 = por %p33, %p34
      %p36 = scmp.ne.s32.totalorder %s22, %s23
      %p37 = scmp.eq.s32.totalorder %s15, 2
      %p38 = por %p36, %p37
      %p40 = scmp.ne.s32.totalorder %s23, %s39
      %p41 = scmp.eq.s32.totalorder %s15, 0
      %p42 = por %p40, %p41
      %s44 = sadd.s32 %s43, 1
      %p47 = scmp.eq.s32.totalorder %s9, 2
      %p48 = scmp.ne.s32.totalorder %s43, %s45
      %p49 = scmp.eq.s32.totalorder %s9, 0
      %p50 = por %p48, %p49
      %p51 = scmp.ne.s32.totalorder %s43, %s45
      %p52 = scmp.eq.s32.totalorder %s14, 2
      %p53 = por %p51, %p52
      %p54 = scmp.ne.s32.totalorder %s45, %s46
      %p55 = scmp.eq.s32.totalorder %s14, 0
      %p56 = por %p54, %p55
      %p57 = scmp.ne.s32.totalorder %s45, %s46
      %p58 = scmp.eq.s32.totalorder %s15, 2
      %p59 = por %p57, %p58
      %p61 = scmp.ne.s32.totalorder %s46, %s60
      %p62 = scmp.eq.s32.totalorder %s15, 0
      %p63 = por %p61, %p62
      %s64 = ssub.s32 %s9, %s16
      %p65 = scmp.eq.s32.totalorder %s64, 0
      %s67 = sadd.s32 %s66, 1
      %s68 = scalar_select %p65, %s66, %s67
      %p71 = pneg %p65
      %p72 = scmp.eq.s32.totalorder %s9, 2
      %p73 = por %p71, %p72
      %p74 = scmp.ne.s32.totalorder %s66, %s69
      %p75 = scmp.eq.s32.totalorder %s9, 0
      %p76 = por %p74, %p75
      %p77 = scmp.ne.s32.totalorder %s66, %s69
      %p78 = scmp.eq.s32.totalorder %s14, 2
      %p79 = por %p77, %p78
      %p80 = scmp.ne.s32.totalorder %s69, %s70
      %p81 = scmp.eq.s32.totalorder %s14, 0
      %p82 = por %p80, %p81
      %p83 = scmp.ne.s32.totalorder %s69, %s70
      %p84 = scmp.eq.s32.totalorder %s15, 2
      %p85 = por %p83, %p84
      %p87 = scmp.ne.s32.totalorder %s70, %s86
      %p88 = scmp.eq.s32.totalorder %s15, 0
      %p89 = por %p87, %p88
      %s90 = ssub.s32 %s9, %s16
      %p91 = scmp.eq.s32.totalorder %s90, 0
      %s93 = sadd.s32 %s92, 1
      %s94 = scalar_select %p91, %s92, %s93
      %p97 = pneg %p91
      %p98 = scmp.eq.s32.totalorder %s9, 2
      %p99 = por %p97, %p98
      %p100 = scmp.ne.s32.totalorder %s92, %s95
      %p101 = scmp.eq.s32.totalorder %s9, 0
      %p102 = por %p100, %p101
      %p103 = scmp.ne.s32.totalorder %s92, %s95
      %p104 = scmp.eq.s32.totalorder %s14, 2
      %p105 = por %p103, %p104
      %p106 = scmp.ne.s32.totalorder %s95, %s96
      %p107 = scmp.eq.s32.totalorder %s14, 0
      %p108 = por %p106, %p107
      %p109 = scmp.ne.s32.totalorder %s95, %s96
      %p110 = scmp.eq.s32.totalorder %s15, 2
      %p111 = por %p109, %p110
      %p113 = scmp.ne.s32.totalorder %s96, %s112
      %p114 = scmp.eq.s32.totalorder %s15, 0
      %p115 = por %p113, %p114
      %p116 = scmp.le.s32.totalorder 1, %s9
      %p117 = scmp.lt.s32.totalorder %s9, 4
      %p118 = pnand %p116, %p117
      %p119 = pneg %p118
      // Predicated region
      $region9: #{vision_transformer_forward.2} parent=5 // pred_check
        _
      $region10: #{vision_transformer_forward.2} parent=5 // pred_check_branch
        %121 = sbr.rel (%p118) target = $region12
      $region11: #{vision_transformer_forward.2} parent=5 // pred_region
        %s122 = ssub.s32 %s9, 1
        // Predicated region
        $region13: #{vision_transformer_forward.2} parent=11 // pred_check
          %p123 = pneg %p56
        $region14: #{vision_transformer_forward.2} parent=11 // pred_check_branch
          %125 = sbr.rel (%p123) target = $region16
        $region15: #{vision_transformer_forward.2} parent=11 // pred_region
          _
        $region16: #{vision_transformer_forward.2} parent=11 // pred_fallthru
          _
      $region12: #{vision_transformer_forward.2} parent=5 // pred_fallthru
        _
      %p126 = scmp.lt.s32.totalorder %s9, 3
      // Predicated region
      $region17: #{vision_transformer_forward.2} parent=5 // pred_check
        %p127 = pneg %p126
      $region18: #{vision_transformer_forward.2} parent=5 // pred_check_branch
        %129 = sbr.rel (%p127) target = $region20
      $region19: #{vision_transformer_forward.2} parent=5 // pred_region
        // Predicated region
        $region21: #{vision_transformer_forward.2} parent=19 // pred_check
          %p130 = pneg %p29
        $region22: #{vision_transformer_forward.2} parent=19 // pred_check_branch
          %132 = sbr.rel (%p130) target = $region24
        $region23: #{vision_transformer_forward.2} parent=19 // pred_region
          %s133 = sand.u32 %s19, 1
          %s134 = sand.u32 %s19, 1
          %s135 = smul.addr %s134, 8
          %s136 = scalar_lea.vmem [#allocation2], %s135
          %s137 = smul.addr %s9, 4
          %s138 = scalar_lea.vmem %s0, %s137
          // Predicated region
          $region25: #{vision_transformer_forward.2} parent=23 // pred_check
            _
          $region26: #{vision_transformer_forward.2} parent=23 // pred_check_branch
            %140 = sbr.rel (0) target = $region28
          $region27: #{vision_transformer_forward.2} parent=23 // pred_region
            // Predicated region
            $region29: #{vision_transformer_forward.2} parent=27 // pred_check
              _
            $region30: #{vision_transformer_forward.2} parent=27 // pred_check_branch
              %142 = sbr.rel target = $region32
            $region31: #{vision_transformer_forward.2} parent=27 // pred_region
              // Predicated region
              $region44: #{vision_transformer_forward.2} parent=31 // pred_check
                _
              $region45: #{vision_transformer_forward.2} parent=31 // pred_check_branch
                %159 = sbr.rel (0) target = $region47
              $region46: #{vision_transformer_forward.2} parent=31 // pred_region
                loop: start=0, step=1, limit=1
                $region48: #{vision_transformer_forward.2} parent=46 // loop_pre_header
                  _
                $region49: #{vision_transformer_forward.2} parent=46 // loop_header
                  %s161 = sphi 0, %s165
                  %p162 = scmp.ge.s32.totalorder %s161, 1
                  %s166 = sphi %s138, %s138
                  %s167 = sphi %s136, %s136
                $region50: #{vision_transformer_forward.2} parent=46 // loop_header_branch
                  %164 = sbr.rel (%p162) target = $region54
                $region51: #{vision_transformer_forward.2} parent=46 // loop_body
                  _
                $region52: #{vision_transformer_forward.2} parent=46 // loop_footer
                  %s165 = sadd.s32 1, %s161
                $region53: #{vision_transformer_forward.2} parent=46 // loop_footer_branch
                  %160 = sbr.rel target = $region49
                $region54: #{vision_transformer_forward.2} parent=46 // loop_exit
                  _
                loop: start=0, step=1, limit=1
                $region55: #{vision_transformer_forward.2} parent=46 // loop_pre_header
                  _
                $region56: #{vision_transformer_forward.2} parent=46 // loop_header
                  %s170 = sphi 0, %s174
                  %p171 = scmp.ge.s32.totalorder %s170, 1
                  %s175 = sphi %s138, %s138
                  %s176 = sphi %s136, %s136
                $region57: #{vision_transformer_forward.2} parent=46 // loop_header_branch
                  %173 = sbr.rel (%p171) target = $region61
                $region58: #{vision_transformer_forward.2} parent=46 // loop_body
                  %v177 = vld [vmem:[%s175] sm:$0xf]
                  %178 = vst [vmem:[%s176] sm:$0xf] %v177
                  %v179 = vld [vmem:[%s175 + $0xc] sm:$0xf]
                  %180 = vst [vmem:[%s176 + $0x4] sm:$0xf] %v179
                $region59: #{vision_transformer_forward.2} parent=46 // loop_footer
                  %s174 = sadd.s32 1, %s170
                $region60: #{vision_transformer_forward.2} parent=46 // loop_footer_branch
                  %169 = sbr.rel target = $region56
                $region61: #{vision_transformer_forward.2} parent=46 // loop_exit
                  _
              $region47: #{vision_transformer_forward.2} parent=31 // pred_fallthru
                _
            $region32: #{vision_transformer_forward.2} parent=27 // pred_fallthru
              _
            // Predicated region
            $region33: #{vision_transformer_forward.2} parent=27 // pred_check
              _
            $region34: #{vision_transformer_forward.2} parent=27 // pred_check_branch
              %144 = sbr.rel (0) target = $region36
            $region35: #{vision_transformer_forward.2} parent=27 // pred_region
              loop: start=0, step=1, limit=1
              $region37: #{vision_transformer_forward.2} parent=35 // loop_pre_header
                _
              $region38: #{vision_transformer_forward.2} parent=35 // loop_header
                %s147 = sphi 0, %s151
                %p148 = scmp.ge.s32.totalorder %s147, 1
                %s152 = sphi %s138, %s138
                %s153 = sphi %s136, %s136
              $region39: #{vision_transformer_forward.2} parent=35 // loop_header_branch
                %150 = sbr.rel (%p148) target = $region43
              $region40: #{vision_transformer_forward.2} parent=35 // loop_body
                %v154 = vld [vmem:[%s152] sm:$0xf]
                %155 = vst [vmem:[%s153] sm:$0xf] %v154
                %v156 = vld [vmem:[%s152 + $0xc] sm:$0xf]
                %157 = vst [vmem:[%s153 + $0x4] sm:$0xf] %v156
              $region41: #{vision_transformer_forward.2} parent=35 // loop_footer
                %s151 = sadd.s32 1, %s147
              $region42: #{vision_transformer_forward.2} parent=35 // loop_footer_branch
                %146 = sbr.rel target = $region38
              $region43: #{vision_transformer_forward.2} parent=35 // loop_exit
                _
            $region36: #{vision_transformer_forward.2} parent=27 // pred_fallthru
              _
          $region28: #{vision_transformer_forward.2} parent=23 // pred_fallthru
            _
          %181 = vnop
        $region24: #{vision_transformer_forward.2} parent=19 // pred_fallthru
          _
        // Predicated region
        $region62: #{vision_transformer_forward.2} parent=19 // pred_check
          %p182 = pneg %p76
        $region63: #{vision_transformer_forward.2} parent=19 // pred_check_branch
          %184 = sbr.rel (%p182) target = $region65
        $region64: #{vision_transformer_forward.2} parent=19 // pred_region
          %p185 = scmp.lt.s32.totalorder %s9, 2
          %s186 = scalar_select %p185, %s9, 2
          %s187 = smul.addr %s186, 8
          %s188 = scalar_lea.vmem %s2, %s187
        $region65: #{vision_transformer_forward.2} parent=19 // pred_fallthru
          _
      $region20: #{vision_transformer_forward.2} parent=5 // pred_fallthru
        _
      %p189 = scmp.le.s32.totalorder 1, %s9
      %p190 = scmp.lt.s32.totalorder %s9, 4
      %p191 = pnand %p189, %p190
      %p192 = pneg %p191
      // Predicated region
      $region66: #{vision_transformer_forward.2} parent=5 // pred_check
        _
      $region67: #{vision_transformer_forward.2} parent=5 // pred_check_branch
        %194 = sbr.rel (%p191) target = $region69
      $region68: #{vision_transformer_forward.2} parent=5 // pred_region
        %s195 = ssub.s32 %s9, 1
        %s196 = sand.u32 %s22, 1
        %s197 = sand.u32 %s22, 1
        %s198 = smul.addr %s197, 8
        %s199 = scalar_lea.vmem [#allocation2], %s198
        // Predicated region
        $region70: #{vision_transformer_forward.2} parent=68 // pred_check
          %p200 = pneg %p35
        $region71: #{vision_transformer_forward.2} parent=68 // pred_check_branch
          %202 = sbr.rel (%p200) target = $region73
        $region72: #{vision_transformer_forward.2} parent=68 // pred_region
          _
        $region73: #{vision_transformer_forward.2} parent=68 // pred_fallthru
          _
        %s203 = sand.u32 %s22, 1
        %s204 = sand.u32 %s22, 1
        %s205 = smul.addr %s204, 8
        %s206 = scalar_lea.vmem [#allocation2], %s205
        %p207 = pneg %p35
        %p208 = pneg %p32
        %p209 = pneg %p56
        %p210 = pneg %p53
        %p211 = scmp.lt.s32.totalorder %s14, 2
        %s212 = scalar_select %p211, %s14, 2
        %s213 = smul.addr %s212, 8
        %s214 = scalar_lea.vmem %s2, %s213
        %p215 = pneg %p82
        %p216 = pneg %p79
        %p217 = pneg %p108
        %p218 = pneg %p105
        %s219 = sand.u32 %s95, 1
        %s220 = sand.u32 %s95, 1
        %s221 = smul.addr %s220, 8
        %s222 = scalar_lea.vmem [#allocation3], %s221
        %p223 = scmp.lt.s32.totalorder %s14, 2
        %s224 = scalar_select %p223, %s14, 2
        %s225 = smul.addr %s224, 8
        %s226 = scalar_lea.vmem %s2, %s225
        %v228 = vld [vmem:[%s199] sm:$0xf]
        %v229 = vld [vmem:[%s199 + $0x4] sm:$0xf]
        %v230 = vld [vmem:[%s1] sm:$0xf]
        %v231 = vld [vmem:[%s1 + $0x4] sm:$0xf]
        %v232 = vld [vmem:[%s1 + $0x8] sm:$0xf]
        %v233 = vld [vmem:[%s1 + $0xc] sm:$0xf]
        %v234 = vld [vmem:[%s1 + $0x10] sm:$0xf]
        %v235 = vld [vmem:[%s1 + $0x14] sm:$0xf]
        %v236 = vld [vmem:[%s1 + $0x18] sm:$0xf]
        %v237 = vld [vmem:[%s1 + $0x1c] sm:$0xf]
        %v240 = vunpack.c.l.b16 %v228
        %v241 = vunpack.c.l.b16 %v229
        %v242 = vpack.c.b16 %v241, %v240
        %v251 = vunpack.c.l.b16 %v230
        %v252 = vunpack.c.l.b16 %v231
        %v253 = vunpack.c.l.b16 %v232
        %v254 = vunpack.c.l.b16 %v233
        %v255 = vunpack.c.l.b16 %v234
        %v256 = vunpack.c.l.b16 %v235
        %v257 = vunpack.c.l.b16 %v236
        %v258 = vunpack.c.l.b16 %v237
        %v259 = vpack.c.b16 %v252, %v251
        %v260 = vpack.c.b16 %v254, %v253
        %v261 = vpack.c.b16 %v256, %v255
        %v262 = vpack.c.b16 %v258, %v257
        %vm267 = vcmask 523264
        %v269 = vsel %vm267, %v242, 0
        %271 = vmatprep.subr.bf16.mxu0 0
        %272 = vmatpush1.bf16.msra.mxu0 %v259
        %273 = vmatprep.subr.bf16.mxu0 0
        %274 = vmatpush1.bf16.msra.mxu0 %v260
        %275 = vmatprep.subr.bf16.mxu0 0
        %276 = vmatpush1.bf16.msra.mxu0 %v261
        %277 = vmatprep.subr.bf16.mxu0 0
        %278 = vmatpush1.bf16.msra.mxu0 %v262
        %279 = vmatprep.subr.bf16.mxu0 0
        %280 = vmatpush1.bf16.msra.mxu0 0
        %281 = vmatprep.subr.bf16.mxu0 0
        %282 = vmatpush1.bf16.msra.mxu0 0
        %283 = vmatprep.subr.bf16.mxu0 0
        %284 = vmatpush1.bf16.msra.mxu0 0
        %285 = vmatprep.subr.bf16.mxu0 0
        %286 = vmatpush1.bf16.msra.mxu0 0
        %287 = vmatprep.subr.bf16.mxu0 0
        %288 = vmatpush1.bf16.msra.mxu0 0
        %289 = vmatprep.subr.bf16.mxu0 0
        %290 = vmatpush1.bf16.msra.mxu0 0
        %291 = vmatprep.subr.bf16.mxu0 0
        %292 = vmatpush1.bf16.msra.mxu0 0
        %293 = vmatprep.subr.bf16.mxu0 0
        %294 = vmatpush1.bf16.msra.mxu0 0
        %295 = vmatprep.subr.bf16.mxu0 0
        %296 = vmatpush1.bf16.msra.mxu0 0
        %297 = vmatprep.subr.bf16.mxu0 0
        %298 = vmatpush1.bf16.msra.mxu0 0
        %299 = vmatprep.subr.bf16.mxu0 0
        %300 = vmatpush1.bf16.msra.mxu0 0
        %301 = vmatprep.subr.bf16.mxu0 0
        %302 = vmatpush1.bf16.msra.mxu0 0
        %303 = vmatprep.mubr.bf16.mxu0 0
        %304 = vmatmul.mubr.bf16.gmra.mrb[0].mxu0 %v269
        %v305 = vpop.f32.mrb[0].mxu0
        %v306 = vadd.f32 0.0, %v305
        %v307 = vpop.f32.mrb[0].mxu0
        %v308 = vpop.f32.mrb[0].mxu0
        %v309 = vadd.f32 0.0, %v308
        %v310 = vpop.f32.mrb[0].mxu0
        %311 = vdwg.mxu0
        %v312 = vld [vmem:[%s226] sm:$0xff]
        %v313 = vadd.f32 %v306, %v312
        %v314 = vadd.f32 %v309, %v312
        %v315 = vpack.c.bf16 %v313, %v313
        %v316 = vpack.c.bf16 %v314, %v314
        %vm317 = vcmask 257024
        %318 = vst.msk [vmem:[%s222] sm:$0xf] %vm317, %v315
        %319 = vst.msk [vmem:[%s222 + $0x4] sm:$0xf] %vm317, %v316
        %s320 = sand.u32 %s95, 1
        %s321 = sand.u32 %s95, 1
        %s322 = smul.addr %s321, 8
        %s323 = scalar_lea.vmem [#allocation3], %s322
        // Predicated region
        $region74: #{vision_transformer_forward.2} parent=68 // pred_check
          %p324 = pneg %p105
        $region75: #{vision_transformer_forward.2} parent=68 // pred_check_branch
          %326 = sbr.rel (%p324) target = $region77
        $region76: #{vision_transformer_forward.2} parent=68 // pred_region
          %s327 = smul.addr %s14, 4
          %s328 = scalar_lea.vmem %s3, %s327
          // Predicated region
          $region78: #{vision_transformer_forward.2} parent=76 // pred_check
            _
          $region79: #{vision_transformer_forward.2} parent=76 // pred_check_branch
            %330 = sbr.rel (0) target = $region81
          $region80: #{vision_transformer_forward.2} parent=76 // pred_region
            // Predicated region
            $region82: #{vision_transformer_forward.2} parent=80 // pred_check
              _
            $region83: #{vision_transformer_forward.2} parent=80 // pred_check_branch
              %332 = sbr.rel target = $region85
            $region84: #{vision_transformer_forward.2} parent=80 // pred_region
              // Predicated region
              $region97: #{vision_transformer_forward.2} parent=84 // pred_check
                _
              $region98: #{vision_transformer_forward.2} parent=84 // pred_check_branch
                %349 = sbr.rel (0) target = $region100
              $region99: #{vision_transformer_forward.2} parent=84 // pred_region
                loop: start=0, step=1, limit=1
                $region101: #{vision_transformer_forward.2} parent=99 // loop_pre_header
                  _
                $region102: #{vision_transformer_forward.2} parent=99 // loop_header
                  %s351 = sphi 0, %s355
                  %p352 = scmp.ge.s32.totalorder %s351, 1
                  %s356 = sphi %s323, %s323
                  %s357 = sphi %s328, %s328
                $region103: #{vision_transformer_forward.2} parent=99 // loop_header_branch
                  %354 = sbr.rel (%p352) target = $region107
                $region104: #{vision_transformer_forward.2} parent=99 // loop_body
                  _
                $region105: #{vision_transformer_forward.2} parent=99 // loop_footer
                  %s355 = sadd.s32 1, %s351
                $region106: #{vision_transformer_forward.2} parent=99 // loop_footer_branch
                  %350 = sbr.rel target = $region102
                $region107: #{vision_transformer_forward.2} parent=99 // loop_exit
                  _
                loop: start=0, step=1, limit=1
                $region108: #{vision_transformer_forward.2} parent=99 // loop_pre_header
                  _
                $region109: #{vision_transformer_forward.2} parent=99 // loop_header
                  %s360 = sphi 0, %s364
                  %p361 = scmp.ge.s32.totalorder %s360, 1
                  %s365 = sphi %s323, %s323
                  %s366 = sphi %s328, %s328
                $region110: #{vision_transformer_forward.2} parent=99 // loop_header_branch
                  %363 = sbr.rel (%p361) target = $region114
                $region111: #{vision_transformer_forward.2} parent=99 // loop_body
                  %v367 = vld [vmem:[%s365] sm:$0xf]
                  %368 = vst [vmem:[%s366] sm:$0xf] %v367
                  %v369 = vld [vmem:[%s365 + $0x4] sm:$0xf]
                  %370 = vst [vmem:[%s366 + $0xc] sm:$0xf] %v369
                $region112: #{vision_transformer_forward.2} parent=99 // loop_footer
                  %s364 = sadd.s32 1, %s360
                $region113: #{vision_transformer_forward.2} parent=99 // loop_footer_branch
                  %359 = sbr.rel target = $region109
                $region114: #{vision_transformer_forward.2} parent=99 // loop_exit
                  _
              $region100: #{vision_transformer_forward.2} parent=84 // pred_fallthru
                _
            $region85: #{vision_transformer_forward.2} parent=80 // pred_fallthru
              _
            // Predicated region
            $region86: #{vision_transformer_forward.2} parent=80 // pred_check
              _
            $region87: #{vision_transformer_forward.2} parent=80 // pred_check_branch
              %334 = sbr.rel (0) target = $region89
            $region88: #{vision_transformer_forward.2} parent=80 // pred_region
              loop: start=0, step=1, limit=1
              $region90: #{vision_transformer_forward.2} parent=88 // loop_pre_header
                _
              $region91: #{vision_transformer_forward.2} parent=88 // loop_header
                %s337 = sphi 0, %s341
                %p338 = scmp.ge.s32.totalorder %s337, 1
                %s342 = sphi %s323, %s323
                %s343 = sphi %s328, %s328
              $region92: #{vision_transformer_forward.2} parent=88 // loop_header_branch
                %340 = sbr.rel (%p338) target = $region96
              $region93: #{vision_transformer_forward.2} parent=88 // loop_body
                %v344 = vld [vmem:[%s342] sm:$0xf]
                %345 = vst [vmem:[%s343] sm:$0xf] %v344
                %v346 = vld [vmem:[%s342 + $0x4] sm:$0xf]
                %347 = vst [vmem:[%s343 + $0xc] sm:$0xf] %v346
              $region94: #{vision_transformer_forward.2} parent=88 // loop_footer
                %s341 = sadd.s32 1, %s337
              $region95: #{vision_transformer_forward.2} parent=88 // loop_footer_branch
                %336 = sbr.rel target = $region91
              $region96: #{vision_transformer_forward.2} parent=88 // loop_exit
                _
            $region89: #{vision_transformer_forward.2} parent=80 // pred_fallthru
              _
          $region81: #{vision_transformer_forward.2} parent=76 // pred_fallthru
            _
          %371 = vnop
        $region77: #{vision_transformer_forward.2} parent=68 // pred_fallthru
          _
      $region69: #{vision_transformer_forward.2} parent=5 // pred_fallthru
        _
      %p372 = scmp.le.s32.totalorder 2, %s9
      // Predicated region
      $region115: #{vision_transformer_forward.2} parent=5 // pred_check
        %p373 = pneg %p372
      $region116: #{vision_transformer_forward.2} parent=5 // pred_check_branch
        %375 = sbr.rel (%p373) target = $region118
      $region117: #{vision_transformer_forward.2} parent=5 // pred_region
        %s376 = ssub.s32 %s9, 2
        // Predicated region
        $region119: #{vision_transformer_forward.2} parent=117 // pred_check
          %p377 = pneg %p111
        $region120: #{vision_transformer_forward.2} parent=117 // pred_check_branch
          %379 = sbr.rel (%p377) target = $region122
        $region121: #{vision_transformer_forward.2} parent=117 // pred_region
          %s380 = sand.u32 %s96, 1
          %s381 = sand.u32 %s96, 1
          %s382 = smul.addr %s381, 8
          %s383 = scalar_lea.vmem [#allocation3], %s382
        $region122: #{vision_transformer_forward.2} parent=117 // pred_fallthru
          _
      $region118: #{vision_transformer_forward.2} parent=5 // pred_fallthru
        _
    $region6: #{vision_transformer_forward.2} parent=1 // loop_footer
      %s13 = sadd.s32 1, %s9
    $region7: #{vision_transformer_forward.2} parent=1 // loop_footer_branch
      %8 = sbr.rel target = $region3
    $region8: #{vision_transformer_forward.2} parent=1 // loop_exit
      _

// kernel: vision_transformer_forward.3
$region0: #{vision_transformer_forward.3}
  #allocation0 [shape = 'u32[]', space=smem, size = 0x4, offset = 0x4, fixed_abs, tag = 'smem constant byte address 0x4 - core index']
  #allocation1 [shape = 'u32[144,128]{1,0:T(1,128)}', space=vmem, size = 0x12000, scoped, tag = 'internal scratch']
  #allocation2 [shape = 'f32[2,8,32]{2,1,0:T(8,128)}', space=vmem, size = 0x2000, scoped, tag = 'scratch operand']
  #allocation3 [shape = 'f32[2,8,32]{2,1,0:T(8,128)}', space=vmem, size = 0x2000, scoped, tag = 'scratch operand']
  #allocation4 [shape = 'f32[2,8,32]{2,1,0:T(8,128)}', space=vmem, size = 0x2000, scoped, tag = 'scratch operand']
  #allocation5 [shape = 'f32[2,8,32]{2,1,0:T(8,128)}', space=vmem, size = 0x2000, scoped, tag = 'scratch operand']
  %s0 = inlined_call_operand.vmem [shape: bf16[2,24,32], index: 0, kind: input, shape index: {}]
  %s1 = inlined_call_operand.vmem [shape: bf16[32,4], index: 1, kind: input, shape index: {}]
  %s2 = inlined_call_operand.vmem [shape: bf16[4,32], index: 2, kind: input, shape index: {}]
  %s3 = inlined_call_operand.vmem [shape: bf16[2,32,32], index: 3, kind: input, shape index: {}]
  %s4 = inlined_call_operand.vmem [shape: bf16[2,32,32], index: 4, kind: input, shape index: {}]
  %s5 = inlined_call_operand.vmem [shape: bf16[2,32,32], index: 5, kind: input, shape index: {}]
  %s6 = inlined_call_operand.vmem [shape: f32[2,1,32], index: 6, kind: input, shape index: {}]
  %s7 = inlined_call_operand.vmem [shape: f32[2,1,32], index: 7, kind: input, shape index: {}]
  %s8 = inlined_call_operand.vmem [shape: f32[2,1,32], index: 8, kind: input, shape index: {}]
  %s9 = inlined_call_operand.vmem [shape: bf16[2,32,32], index: 9, kind: input, shape index: {}]
  %s10 = inlined_call_operand.vmem [shape: f32[2,1,32], index: 10, kind: input, shape index: {}]
  %s11 = inlined_call_operand.vmem [shape: f32[2,1,32], index: 11, kind: input, shape index: {}]
  %s12 = inlined_call_operand.vmem [shape: f32[2,1,32], index: 12, kind: input, shape index: {}]
  %s13 = inlined_call_operand.vmem [shape: bf16[2,32,2048], index: 13, kind: input, shape index: {}]
  %s14 = inlined_call_operand.vmem [shape: f32[2,1,2048], index: 14, kind: input, shape index: {}]
  %s15 = inlined_call_operand.vmem [shape: bf16[2,2048,32], index: 15, kind: input, shape index: {}]
  %s16 = inlined_call_operand.vmem [shape: f32[2,1,32], index: 16, kind: input, shape index: {}]
  %s17 = inlined_call_operand.vmem [shape: f32[2,1,32], index: 17, kind: input, shape index: {}]
  %s18 = inlined_call_operand.vmem [shape: f32[2,1,32], index: 18, kind: input, shape index: {}]
  %s19 = inlined_call_operand.vmem [shape: f32[2,24,32], index: 19, kind: output, shape index: {}]
  %s20 = sld [smem:[#allocation0]]
  $region192: #{vision_transformer_forward.3} parent=0
    _
  %s22 = ssub.s32 1, %s20
  %s23 = scalar_select 0, %s22, %s20
  $region1: #{vision_transformer_forward.3} parent=0
    #allocation6 [shape = 'u8[8192]{0}', space=vmem, size = 0x2000, scoped, tag = 'input window, operand 0']
    #allocation7 [shape = 'u8[16384]{0}', space=vmem, size = 0x4000, scoped, tag = 'output window, operand 0']
    loop: start=0, step=1, limit=8
    $region2: #{vision_transformer_forward.3} parent=1 // loop_pre_header
      _
    $region3: #{vision_transformer_forward.3} parent=1 // loop_header
      %s25 = sphi 0, %s29
      %p26 = scmp.ge.s32.totalorder %s25, 8
      %s32 = sphi 0, %s44
      %s33 = sphi 0, %s40
      %s34 = sphi 0, %s32
      %s35 = sphi 0, %s33
      %s36 = sphi 0, %s34
      %s37 = sphi 0, %s35
      %s47 = sphi 0, %s49
      %s50 = sphi 0, %s47
      %s51 = sphi 0, %s50
      %s67 = sphi 0, %s51
      %s71 = sphi 0, %s71
      %s73 = sphi 0, %s71
      %s74 = sphi 0, %s73
      %s88 = sphi 0, %s74
      %s92 = sphi 0, %s92
      %s94 = sphi 0, %s92
      %s95 = sphi 0, %s94
      %s109 = sphi 0, %s95
      %s115 = sphi 0, %s117
      %s118 = sphi 0, %s115
      %s119 = sphi 0, %s118
      %s135 = sphi 0, %s119
      %s141 = sphi 0, %s143
      %s144 = sphi 0, %s141
      %s145 = sphi 0, %s144
      %s161 = sphi 0, %s145
      %s167 = sphi 0, %s169
      %s170 = sphi 0, %s167
      %s171 = sphi 0, %s170
      %s187 = sphi 0, %s171
      %s193 = sphi 0, %s195
      %s196 = sphi 0, %s193
      %s197 = sphi 0, %s196
      %s213 = sphi 0, %s197
      %s219 = sphi 0, %s221
      %s222 = sphi 0, %s219
      %s223 = sphi 0, %s222
      %s239 = sphi 0, %s223
      %s245 = sphi 0, %s247
      %s248 = sphi 0, %s245
      %s249 = sphi 0, %s248
      %s265 = sphi 0, %s249
      %s271 = sphi 0, %s273
      %s274 = sphi 0, %s271
      %s275 = sphi 0, %s274
      %s291 = sphi 0, %s275
      %s297 = sphi 0, %s299
      %s300 = sphi 0, %s297
      %s301 = sphi 0, %s300
      %s317 = sphi 0, %s301
      %s323 = sphi 0, %s325
      %s326 = sphi 0, %s323
      %s327 = sphi 0, %s326
      %s343 = sphi 0, %s327
      %s349 = sphi 0, %s351
      %s352 = sphi 0, %s349
      %s353 = sphi 0, %s352
      %s369 = sphi 0, %s353
      %s375 = sphi 0, %s377
      %s378 = sphi 0, %s375
      %s379 = sphi 0, %s378
      %s395 = sphi 0, %s379
      %s401 = sphi 0, %s403
      %s404 = sphi 0, %s401
      %s405 = sphi 0, %s404
      %s421 = sphi 0, %s405
      %s427 = sphi 0, %s429
      %s430 = sphi 0, %s427
      %s431 = sphi 0, %s430
      %s447 = sphi 0, %s431
      %s453 = sphi 0, %s455
      %s456 = sphi 0, %s453
      %s457 = sphi 0, %s456
      %s473 = sphi 0, %s457
      %s479 = sphi 0, %s481
      %s482 = sphi 0, %s479
      %s483 = sphi 0, %s482
      %s499 = sphi 0, %s483
      %s505 = sphi 0, %s507
      %s508 = sphi 0, %s505
      %s509 = sphi 0, %s508
      %s525 = sphi 0, %s509
      %s531 = sphi 0, %s533
      %s534 = sphi 0, %s531
      %s535 = sphi 0, %s534
      %s551 = sphi 0, %s535
    $region4: #{vision_transformer_forward.3} parent=1 // loop_header_branch
      %28 = sbr.rel (%p26) target = $region8
    $region5: #{vision_transformer_forward.3} parent=1 // loop_body
      %s30 = ssub.s32 %s25, 1
      %s31 = ssub.s32 %s25, 2
      %s38 = sadd.s32 1, %s33
      %p39 = scmp.ge.s32.totalorder %s38, 2
      %s40 = scalar_select %p39, 0, %s38
      %s41 = sadd.s32 1, %s32
      %s42 = scalar_select %p39, %s41, %s32
      %p43 = scmp.ge.s32.totalorder %s42, 3
      %s44 = scalar_select %p43, 0, %s42
      %s45 = ssub.s32 %s32, %s44
      %p46 = scmp.eq.s32.totalorder %s45, 0
      %s48 = sadd.s32 %s47, 1
      %s49 = scalar_select %p46, %s47, %s48
      %p52 = pneg %p46
      %p53 = scmp.eq.s32.totalorder %s25, 5
      %p54 = por %p52, %p53
      %p55 = scmp.ne.s32.totalorder %s47, %s50
      %p56 = scmp.eq.s32.totalorder %s25, 0
      %p57 = por %p55, %p56
      %p58 = scmp.ne.s32.totalorder %s47, %s50
      %p59 = scmp.eq.s32.totalorder %s30, 5
      %p60 = por %p58, %p59
      %p61 = scmp.ne.s32.totalorder %s50, %s51
      %p62 = scmp.eq.s32.totalorder %s30, 0
      %p63 = por %p61, %p62
      %p64 = scmp.ne.s32.totalorder %s50, %s51
      %p65 = scmp.eq.s32.totalorder %s31, 5
      %p66 = por %p64, %p65
      %p68 = scmp.ne.s32.totalorder %s51, %s67
      %p69 = scmp.eq.s32.totalorder %s31, 0
      %p70 = por %p68, %p69
      %s72 = sadd.s32 %s71, 1
      %p75 = scmp.eq.s32.totalorder %s25, 5
      %p76 = scmp.ne.s32.totalorder %s71, %s73
      %p77 = scmp.eq.s32.totalorder %s25, 0
      %p78 = por %p76, %p77
      %p79 = scmp.ne.s32.totalorder %s71, %s73
      %p80 = scmp.eq.s32.totalorder %s30, 5
      %p81 = por %p79, %p80
      %p82 = scmp.ne.s32.totalorder %s73, %s74
      %p83 = scmp.eq.s32.totalorder %s30, 0
      %p84 = por %p82, %p83
      %p85 = scmp.ne.s32.totalorder %s73, %s74
      %p86 = scmp.eq.s32.totalorder %s31, 5
      %p87 = por %p85, %p86
      %p89 = scmp.ne.s32.totalorder %s74, %s88
      %p90 = scmp.eq.s32.totalorder %s31, 0
      %p91 = por %p89, %p90
      %s93 = sadd.s32 %s92, 1
      %p96 = scmp.eq.s32.totalorder %s25, 5
      %p97 = scmp.ne.s32.totalorder %s92, %s94
      %p98 = scmp.eq.s32.totalorder %s25, 0
      %p99 = por %p97, %p98
      %p100 = scmp.ne.s32.totalorder %s92, %s94
      %p101 = scmp.eq.s32.totalorder %s30, 5
      %p102 = por %p100, %p101
      %p103 = scmp.ne.s32.totalorder %s94, %s95
      %p104 = scmp.eq.s32.totalorder %s30, 0
      %p105 = por %p103, %p104
      %p106 = scmp.ne.s32.totalorder %s94, %s95
      %p107 = scmp.eq.s32.totalorder %s31, 5
      %p108 = por %p106, %p107
      %p110 = scmp.ne.s32.totalorder %s95, %s109
      %p111 = scmp.eq.s32.totalorder %s31, 0
      %p112 = por %p110, %p111
      %s113 = ssub.s32 %s33, %s40
      %p114 = scmp.eq.s32.totalorder %s113, 0
      %s116 = sadd.s32 %s115, 1
      %s117 = scalar_select %p114, %s115, %s116
      %p120 = pneg %p114
      %p121 = scmp.eq.s32.totalorder %s25, 5
      %p122 = por %p120, %p121
      %p123 = scmp.ne.s32.totalorder %s115, %s118
      %p124 = scmp.eq.s32.totalorder %s25, 0
      %p125 = por %p123, %p124
      %p126 = scmp.ne.s32.totalorder %s115, %s118
      %p127 = scmp.eq.s32.totalorder %s30, 5
      %p128 = por %p126, %p127
      %p129 = scmp.ne.s32.totalorder %s118, %s119
      %p130 = scmp.eq.s32.totalorder %s30, 0
      %p131 = por %p129, %p130
      %p132 = scmp.ne.s32.totalorder %s118, %s119
      %p133 = scmp.eq.s32.totalorder %s31, 5
      %p134 = por %p132, %p133
      %p136 = scmp.ne.s32.totalorder %s119, %s135
      %p137 = scmp.eq.s32.totalorder %s31, 0
      %p138 = por %p136, %p137
      %s139 = ssub.s32 %s33, %s40
      %p140 = scmp.eq.s32.totalorder %s139, 0
      %s142 = sadd.s32 %s141, 1
      %s143 = scalar_select %p140, %s141, %s142
      %p146 = pneg %p140
      %p147 = scmp.eq.s32.totalorder %s25, 5
      %p148 = por %p146, %p147
      %p149 = scmp.ne.s32.totalorder %s141, %s144
      %p150 = scmp.eq.s32.totalorder %s25, 0
      %p151 = por %p149, %p150
      %p152 = scmp.ne.s32.totalorder %s141, %s144
      %p153 = scmp.eq.s32.totalorder %s30, 5
      %p154 = por %p152, %p153
      %p155 = scmp.ne.s32.totalorder %s144, %s145
      %p156 = scmp.eq.s32.totalorder %s30, 0
      %p157 = por %p155, %p156
      %p158 = scmp.ne.s32.totalorder %s144, %s145
      %p159 = scmp.eq.s32.totalorder %s31, 5
      %p160 = por %p158, %p159
      %p162 = scmp.ne.s32.totalorder %s145, %s161
      %p163 = scmp.eq.s32.totalorder %s31, 0
      %p164 = por %p162, %p163
      %s165 = ssub.s32 %s33, %s40
      %p166 = scmp.eq.s32.totalorder %s165, 0
      %s168 = sadd.s32 %s167, 1
      %s169 = scalar_select %p166, %s167, %s168
      %p172 = pneg %p166
      %p173 = scmp.eq.s32.totalorder %s25, 5
      %p174 = por %p172, %p173
      %p175 = scmp.ne.s32.totalorder %s167, %s170
      %p176 = scmp.eq.s32.totalorder %s25, 0
      %p177 = por %p175, %p176
      %p178 = scmp.ne.s32.totalorder %s167, %s170
      %p179 = scmp.eq.s32.totalorder %s30, 5
      %p180 = por %p178, %p179
      %p181 = scmp.ne.s32.totalorder %s170, %s171
      %p182 = scmp.eq.s32.totalorder %s30, 0
      %p183 = por %p181, %p182
      %p184 = scmp.ne.s32.totalorder %s170, %s171
      %p185 = scmp.eq.s32.totalorder %s31, 5
      %p186 = por %p184, %p185
      %p188 = scmp.ne.s32.totalorder %s171, %s187
      %p189 = scmp.eq.s32.totalorder %s31, 0
      %p190 = por %p188, %p189
      %s191 = ssub.s32 %s33, %s40
      %p192 = scmp.eq.s32.totalorder %s191, 0
      %s194 = sadd.s32 %s193, 1
      %s195 = scalar_select %p192, %s193, %s194
      %p198 = pneg %p192
      %p199 = scmp.eq.s32.totalorder %s25, 5
      %p200 = por %p198, %p199
      %p201 = scmp.ne.s32.totalorder %s193, %s196
      %p202 = scmp.eq.s32.totalorder %s25, 0
      %p203 = por %p201, %p202
      %p204 = scmp.ne.s32.totalorder %s193, %s196
      %p205 = scmp.eq.s32.totalorder %s30, 5
      %p206 = por %p204, %p205
      %p207 = scmp.ne.s32.totalorder %s196, %s197
      %p208 = scmp.eq.s32.totalorder %s30, 0
      %p209 = por %p207, %p208
      %p210 = scmp.ne.s32.totalorder %s196, %s197
      %p211 = scmp.eq.s32.totalorder %s31, 5
      %p212 = por %p210, %p211
      %p214 = scmp.ne.s32.totalorder %s197, %s213
      %p215 = scmp.eq.s32.totalorder %s31, 0
      %p216 = por %p214, %p215
      %s217 = ssub.s32 %s33, %s40
      %p218 = scmp.eq.s32.totalorder %s217, 0
      %s220 = sadd.s32 %s219, 1
      %s221 = scalar_select %p218, %s219, %s220
      %p224 = pneg %p218
      %p225 = scmp.eq.s32.totalorder %s25, 5
      %p226 = por %p224, %p225
      %p227 = scmp.ne.s32.totalorder %s219, %s222
      %p228 = scmp.eq.s32.totalorder %s25, 0
      %p229 = por %p227, %p228
      %p230 = scmp.ne.s32.totalorder %s219, %s222
      %p231 = scmp.eq.s32.totalorder %s30, 5
      %p232 = por %p230, %p231
      %p233 = scmp.ne.s32.totalorder %s222, %s223
      %p234 = scmp.eq.s32.totalorder %s30, 0
      %p235 = por %p233, %p234
      %p236 = scmp.ne.s32.totalorder %s222, %s223
      %p237 = scmp.eq.s32.totalorder %s31, 5
      %p238 = por %p236, %p237
      %p240 = scmp.ne.s32.totalorder %s223, %s239
      %p241 = scmp.eq.s32.totalorder %s31, 0
      %p242 = por %p240, %p241
      %s243 = ssub.s32 %s33, %s40
      %p244 = scmp.eq.s32.totalorder %s243, 0
      %s246 = sadd.s32 %s245, 1
      %s247 = scalar_select %p244, %s245, %s246
      %p250 = pneg %p244
      %p251 = scmp.eq.s32.totalorder %s25, 5
      %p252 = por %p250, %p251
      %p253 = scmp.ne.s32.totalorder %s245, %s248
      %p254 = scmp.eq.s32.totalorder %s25, 0
      %p255 = por %p253, %p254
      %p256 = scmp.ne.s32.totalorder %s245, %s248
      %p257 = scmp.eq.s32.totalorder %s30, 5
      %p258 = por %p256, %p257
      %p259 = scmp.ne.s32.totalorder %s248, %s249
      %p260 = scmp.eq.s32.totalorder %s30, 0
      %p261 = por %p259, %p260
      %p262 = scmp.ne.s32.totalorder %s248, %s249
      %p263 = scmp.eq.s32.totalorder %s31, 5
      %p264 = por %p262, %p263
      %p266 = scmp.ne.s32.totalorder %s249, %s265
      %p267 = scmp.eq.s32.totalorder %s31, 0
      %p268 = por %p266, %p267
      %s269 = ssub.s32 %s33, %s40
      %p270 = scmp.eq.s32.totalorder %s269, 0
      %s272 = sadd.s32 %s271, 1
      %s273 = scalar_select %p270, %s271, %s272
      %p276 = pneg %p270
      %p277 = scmp.eq.s32.totalorder %s25, 5
      %p278 = por %p276, %p277
      %p279 = scmp.ne.s32.totalorder %s271, %s274
      %p280 = scmp.eq.s32.totalorder %s25, 0
      %p281 = por %p279, %p280
      %p282 = scmp.ne.s32.totalorder %s271, %s274
      %p283 = scmp.eq.s32.totalorder %s30, 5
      %p284 = por %p282, %p283
      %p285 = scmp.ne.s32.totalorder %s274, %s275
      %p286 = scmp.eq.s32.totalorder %s30, 0
      %p287 = por %p285, %p286
      %p288 = scmp.ne.s32.totalorder %s274, %s275
      %p289 = scmp.eq.s32.totalorder %s31, 5
      %p290 = por %p288, %p289
      %p292 = scmp.ne.s32.totalorder %s275, %s291
      %p293 = scmp.eq.s32.totalorder %s31, 0
      %p294 = por %p292, %p293
      %s295 = ssub.s32 %s33, %s40
      %p296 = scmp.eq.s32.totalorder %s295, 0
      %s298 = sadd.s32 %s297, 1
      %s299 = scalar_select %p296, %s297, %s298
      %p302 = pneg %p296
      %p303 = scmp.eq.s32.totalorder %s25, 5
      %p304 = por %p302, %p303
      %p305 = scmp.ne.s32.totalorder %s297, %s300
      %p306 = scmp.eq.s32.totalorder %s25, 0
      %p307 = por %p305, %p306
      %p308 = scmp.ne.s32.totalorder %s297, %s300
      %p309 = scmp.eq.s32.totalorder %s30, 5
      %p310 = por %p308, %p309
      %p311 = scmp.ne.s32.totalorder %s300, %s301
      %p312 = scmp.eq.s32.totalorder %s30, 0
      %p313 = por %p311, %p312
      %p314 = scmp.ne.s32.totalorder %s300, %s301
      %p315 = scmp.eq.s32.totalorder %s31, 5
      %p316 = por %p314, %p315
      %p318 = scmp.ne.s32.totalorder %s301, %s317
      %p319 = scmp.eq.s32.totalorder %s31, 0
      %p320 = por %p318, %p319
      %s321 = ssub.s32 %s33, %s40
      %p322 = scmp.eq.s32.totalorder %s321, 0
      %s324 = sadd.s32 %s323, 1
      %s325 = scalar_select %p322, %s323, %s324
      %p328 = pneg %p322
      %p329 = scmp.eq.s32.totalorder %s25, 5
      %p330 = por %p328, %p329
      %p331 = scmp.ne.s32.totalorder %s323, %s326
      %p332 = scmp.eq.s32.totalorder %s25, 0
      %p333 = por %p331, %p332
      %p334 = scmp.ne.s32.totalorder %s323, %s326
      %p335 = scmp.eq.s32.totalorder %s30, 5
      %p336 = por %p334, %p335
      %p337 = scmp.ne.s32.totalorder %s326, %s327
      %p338 = scmp.eq.s32.totalorder %s30, 0
      %p339 = por %p337, %p338
      %p340 = scmp.ne.s32.totalorder %s326, %s327
      %p341 = scmp.eq.s32.totalorder %s31, 5
      %p342 = por %p340, %p341
      %p344 = scmp.ne.s32.totalorder %s327, %s343
      %p345 = scmp.eq.s32.totalorder %s31, 0
      %p346 = por %p344, %p345
      %s347 = ssub.s32 %s33, %s40
      %p348 = scmp.eq.s32.totalorder %s347, 0
      %s350 = sadd.s32 %s349, 1
      %s351 = scalar_select %p348, %s349, %s350
      %p354 = pneg %p348
      %p355 = scmp.eq.s32.totalorder %s25, 5
      %p356 = por %p354, %p355
      %p357 = scmp.ne.s32.totalorder %s349, %s352
      %p358 = scmp.eq.s32.totalorder %s25, 0
      %p359 = por %p357, %p358
      %p360 = scmp.ne.s32.totalorder %s349, %s352
      %p361 = scmp.eq.s32.totalorder %s30, 5
      %p362 = por %p360, %p361
      %p363 = scmp.ne.s32.totalorder %s352, %s353
      %p364 = scmp.eq.s32.totalorder %s30, 0
      %p365 = por %p363, %p364
      %p366 = scmp.ne.s32.totalorder %s352, %s353
      %p367 = scmp.eq.s32.totalorder %s31, 5
      %p368 = por %p366, %p367
      %p370 = scmp.ne.s32.totalorder %s353, %s369
      %p371 = scmp.eq.s32.totalorder %s31, 0
      %p372 = por %p370, %p371
      %s373 = ssub.s32 %s33, %s40
      %p374 = scmp.eq.s32.totalorder %s373, 0
      %s376 = sadd.s32 %s375, 1
      %s377 = scalar_select %p374, %s375, %s376
      %p380 = pneg %p374
      %p381 = scmp.eq.s32.totalorder %s25, 5
      %p382 = por %p380, %p381
      %p383 = scmp.ne.s32.totalorder %s375, %s378
      %p384 = scmp.eq.s32.totalorder %s25, 0
      %p385 = por %p383, %p384
      %p386 = scmp.ne.s32.totalorder %s375, %s378
      %p387 = scmp.eq.s32.totalorder %s30, 5
      %p388 = por %p386, %p387
      %p389 = scmp.ne.s32.totalorder %s378, %s379
      %p390 = scmp.eq.s32.totalorder %s30, 0
      %p391 = por %p389, %p390
      %p392 = scmp.ne.s32.totalorder %s378, %s379
      %p393 = scmp.eq.s32.totalorder %s31, 5
      %p394 = por %p392, %p393
      %p396 = scmp.ne.s32.totalorder %s379, %s395
      %p397 = scmp.eq.s32.totalorder %s31, 0
      %p398 = por %p396, %p397
      %s399 = ssub.s32 %s33, %s40
      %p400 = scmp.eq.s32.totalorder %s399, 0
      %s402 = sadd.s32 %s401, 1
      %s403 = scalar_select %p400, %s401, %s402
      %p406 = pneg %p400
      %p407 = scmp.eq.s32.totalorder %s25, 5
      %p408 = por %p406, %p407
      %p409 = scmp.ne.s32.totalorder %s401, %s404
      %p410 = scmp.eq.s32.totalorder %s25, 0
      %p411 = por %p409, %p410
      %p412 = scmp.ne.s32.totalorder %s401, %s404
      %p413 = scmp.eq.s32.totalorder %s30, 5
      %p414 = por %p412, %p413
      %p415 = scmp.ne.s32.totalorder %s404, %s405
      %p416 = scmp.eq.s32.totalorder %s30, 0
      %p417 = por %p415, %p416
      %p418 = scmp.ne.s32.totalorder %s404, %s405
      %p419 = scmp.eq.s32.totalorder %s31, 5
      %p420 = por %p418, %p419
      %p422 = scmp.ne.s32.totalorder %s405, %s421
      %p423 = scmp.eq.s32.totalorder %s31, 0
      %p424 = por %p422, %p423
      %s425 = ssub.s32 %s33, %s40
      %p426 = scmp.eq.s32.totalorder %s425, 0
      %s428 = sadd.s32 %s427, 1
      %s429 = scalar_select %p426, %s427, %s428
      %p432 = pneg %p426
      %p433 = scmp.eq.s32.totalorder %s25, 5
      %p434 = por %p432, %p433
      %p435 = scmp.ne.s32.totalorder %s427, %s430
      %p436 = scmp.eq.s32.totalorder %s25, 0
      %p437 = por %p435, %p436
      %p438 = scmp.ne.s32.totalorder %s427, %s430
      %p439 = scmp.eq.s32.totalorder %s30, 5
      %p440 = por %p438, %p439
      %p441 = scmp.ne.s32.totalorder %s430, %s431
      %p442 = scmp.eq.s32.totalorder %s30, 0
      %p443 = por %p441, %p442
      %p444 = scmp.ne.s32.totalorder %s430, %s431
      %p445 = scmp.eq.s32.totalorder %s31, 5
      %p446 = por %p444, %p445
      %p448 = scmp.ne.s32.totalorder %s431, %s447
      %p449 = scmp.eq.s32.totalorder %s31, 0
      %p450 = por %p448, %p449
      %s451 = ssub.s32 %s33, %s40
      %p452 = scmp.eq.s32.totalorder %s451, 0
      %s454 = sadd.s32 %s453, 1
      %s455 = scalar_select %p452, %s453, %s454
      %p458 = pneg %p452
      %p459 = scmp.eq.s32.totalorder %s25, 5
      %p460 = por %p458, %p459
      %p461 = scmp.ne.s32.totalorder %s453, %s456
      %p462 = scmp.eq.s32.totalorder %s25, 0
      %p463 = por %p461, %p462
      %p464 = scmp.ne.s32.totalorder %s453, %s456
      %p465 = scmp.eq.s32.totalorder %s30, 5
      %p466 = por %p464, %p465
      %p467 = scmp.ne.s32.totalorder %s456, %s457
      %p468 = scmp.eq.s32.totalorder %s30, 0
      %p469 = por %p467, %p468
      %p470 = scmp.ne.s32.totalorder %s456, %s457
      %p471 = scmp.eq.s32.totalorder %s31, 5
      %p472 = por %p470, %p471
      %p474 = scmp.ne.s32.totalorder %s457, %s473
      %p475 = scmp.eq.s32.totalorder %s31, 0
      %p476 = por %p474, %p475
      %s477 = ssub.s32 %s33, %s40
      %p478 = scmp.eq.s32.totalorder %s477, 0
      %s480 = sadd.s32 %s479, 1
      %s481 = scalar_select %p478, %s479, %s480
      %p484 = pneg %p478
      %p485 = scmp.eq.s32.totalorder %s25, 5
      %p486 = por %p484, %p485
      %p487 = scmp.ne.s32.totalorder %s479, %s482
      %p488 = scmp.eq.s32.totalorder %s25, 0
      %p489 = por %p487, %p488
      %p490 = scmp.ne.s32.totalorder %s479, %s482
      %p491 = scmp.eq.s32.totalorder %s30, 5
      %p492 = por %p490, %p491
      %p493 = scmp.ne.s32.totalorder %s482, %s483
      %p494 = scmp.eq.s32.totalorder %s30, 0
      %p495 = por %p493, %p494
      %p496 = scmp.ne.s32.totalorder %s482, %s483
      %p497 = scmp.eq.s32.totalorder %s31, 5
      %p498 = por %p496, %p497
      %p500 = scmp.ne.s32.totalorder %s483, %s499
      %p501 = scmp.eq.s32.totalorder %s31, 0
      %p502 = por %p500, %p501
      %s503 = ssub.s32 %s33, %s40
      %p504 = scmp.eq.s32.totalorder %s503, 0
      %s506 = sadd.s32 %s505, 1
      %s507 = scalar_select %p504, %s505, %s506
      %p510 = pneg %p504
      %p511 = scmp.eq.s32.totalorder %s25, 5
      %p512 = por %p510, %p511
      %p513 = scmp.ne.s32.totalorder %s505, %s508
      %p514 = scmp.eq.s32.totalorder %s25, 0
      %p515 = por %p513, %p514
      %p516 = scmp.ne.s32.totalorder %s505, %s508
      %p517 = scmp.eq.s32.totalorder %s30, 5
      %p518 = por %p516, %p517
      %p519 = scmp.ne.s32.totalorder %s508, %s509
      %p520 = scmp.eq.s32.totalorder %s30, 0
      %p521 = por %p519, %p520
      %p522 = scmp.ne.s32.totalorder %s508, %s509
      %p523 = scmp.eq.s32.totalorder %s31, 5
      %p524 = por %p522, %p523
      %p526 = scmp.ne.s32.totalorder %s509, %s525
      %p527 = scmp.eq.s32.totalorder %s31, 0
      %p528 = por %p526, %p527
      %s529 = ssub.s32 %s32, %s44
      %p530 = scmp.eq.s32.totalorder %s529, 0
      %s532 = sadd.s32 %s531, 1
      %s533 = scalar_select %p530, %s531, %s532
      %p536 = pneg %p530
      %p537 = scmp.eq.s32.totalorder %s25, 5
      %p538 = por %p536, %p537
      %p539 = scmp.ne.s32.totalorder %s531, %s534
      %p540 = scmp.eq.s32.totalorder %s25, 0
      %p541 = por %p539, %p540
      %p542 = scmp.ne.s32.totalorder %s531, %s534
      %p543 = scmp.eq.s32.totalorder %s30, 5
      %p544 = por %p542, %p543
      %p545 = scmp.ne.s32.totalorder %s534, %s535
      %p546 = scmp.eq.s32.totalorder %s30, 0
      %p547 = por %p545, %p546
      %p548 = scmp.ne.s32.totalorder %s534, %s535
      %p549 = scmp.eq.s32.totalorder %s31, 5
      %p550 = por %p548, %p549
      %p552 = scmp.ne.s32.totalorder %s535, %s551
      %p553 = scmp.eq.s32.totalorder %s31, 0
      %p554 = por %p552, %p553
      %p555 = scmp.le.s32.totalorder 1, %s25
      %p556 = scmp.lt.s32.totalorder %s25, 7
      %p557 = pnand %p555, %p556
      %p558 = pneg %p557
      // Predicated region
      $region9: #{vision_transformer_forward.3} parent=5 // pred_check
        _
      $region10: #{vision_transformer_forward.3} parent=5 // pred_check_branch
        %560 = sbr.rel (%p557) target = $region12
      $region11: #{vision_transformer_forward.3} parent=5 // pred_region
        %s561 = ssub.s32 %s25, 1
        // Predicated region
        $region13: #{vision_transformer_forward.3} parent=11 // pred_check
          %p562 = pneg %p84
        $region14: #{vision_transformer_forward.3} parent=11 // pred_check_branch
          %564 = sbr.rel (%p562) target = $region16
        $region15: #{vision_transformer_forward.3} parent=11 // pred_region
          _
        $region16: #{vision_transformer_forward.3} parent=11 // pred_fallthru
          _
        // Predicated region
        $region17: #{vision_transformer_forward.3} parent=11 // pred_check
          %p565 = pneg %p105
        $region18: #{vision_transformer_forward.3} parent=11 // pred_check_branch
          %567 = sbr.rel (%p565) target = $region20
        $region19: #{vision_transformer_forward.3} parent=11 // pred_region
          _
        $region20: #{vision_transformer_forward.3} parent=11 // pred_fallthru
          _
      $region12: #{vision_transformer_forward.3} parent=5 // pred_fallthru
        _
      %p568 = scmp.lt.s32.totalorder %s25, 6
      // Predicated region
      $region21: #{vision_transformer_forward.3} parent=5 // pred_check
        %p569 = pneg %p568
      $region22: #{vision_transformer_forward.3} parent=5 // pred_check_branch
        %571 = sbr.rel (%p569) target = $region24
      $region23: #{vision_transformer_forward.3} parent=5 // pred_region
        // Predicated region
        $region25: #{vision_transformer_forward.3} parent=23 // pred_check
          %p572 = pneg %p57
        $region26: #{vision_transformer_forward.3} parent=23 // pred_check_branch
          %574 = sbr.rel (%p572) target = $region28
        $region27: #{vision_transformer_forward.3} parent=23 // pred_region
          %s575 = sand.u32 %s47, 1
          %s576 = sand.u32 %s47, 1
          %s577 = smul.addr %s576, 8
          %s578 = scalar_lea.vmem [#allocation6], %s577
          %s579 = smul.addr %s32, 4
          %s580 = scalar_lea.vmem %s0, %s579
          // Predicated region
          $region29: #{vision_transformer_forward.3} parent=27 // pred_check
            _
          $region30: #{vision_transformer_forward.3} parent=27 // pred_check_branch
            %582 = sbr.rel (0) target = $region32
          $region31: #{vision_transformer_forward.3} parent=27 // pred_region
            // Predicated region
            $region33: #{vision_transformer_forward.3} parent=31 // pred_check
              _
            $region34: #{vision_transformer_forward.3} parent=31 // pred_check_branch
              %584 = sbr.rel target = $region36
            $region35: #{vision_transformer_forward.3} parent=31 // pred_region
              // Predicated region
              $region48: #{vision_transformer_forward.3} parent=35 // pred_check
                _
              $region49: #{vision_transformer_forward.3} parent=35 // pred_check_branch
                %601 = sbr.rel (0) target = $region51
              $region50: #{vision_transformer_forward.3} parent=35 // pred_region
                loop: start=0, step=1, limit=1
                $region52: #{vision_transformer_forward.3} parent=50 // loop_pre_header
                  _
                $region53: #{vision_transformer_forward.3} parent=50 // loop_header
                  %s603 = sphi 0, %s607
                  %p604 = scmp.ge.s32.totalorder %s603, 1
                  %s608 = sphi %s580, %s580
                  %s609 = sphi %s578, %s578
                $region54: #{vision_transformer_forward.3} parent=50 // loop_header_branch
                  %606 = sbr.rel (%p604) target = $region58
                $region55: #{vision_transformer_forward.3} parent=50 // loop_body
                  _
                $region56: #{vision_transformer_forward.3} parent=50 // loop_footer
                  %s607 = sadd.s32 1, %s603
                $region57: #{vision_transformer_forward.3} parent=50 // loop_footer_branch
                  %602 = sbr.rel target = $region53
                $region58: #{vision_transformer_forward.3} parent=50 // loop_exit
                  _
                loop: start=0, step=1, limit=1
                $region59: #{vision_transformer_forward.3} parent=50 // loop_pre_header
                  _
                $region60: #{vision_transformer_forward.3} parent=50 // loop_header
                  %s612 = sphi 0, %s616
                  %p613 = scmp.ge.s32.totalorder %s612, 1
                  %s617 = sphi %s580, %s580
                  %s618 = sphi %s578, %s578
                $region61: #{vision_transformer_forward.3} parent=50 // loop_header_branch
                  %615 = sbr.rel (%p613) target = $region65
                $region62: #{vision_transformer_forward.3} parent=50 // loop_body
                  %v619 = vld [vmem:[%s617] sm:$0xf]
                  %620 = vst [vmem:[%s618] sm:$0xf] %v619
                  %v621 = vld [vmem:[%s617 + $0xc] sm:$0xf]
                  %622 = vst [vmem:[%s618 + $0x4] sm:$0xf] %v621
                $region63: #{vision_transformer_forward.3} parent=50 // loop_footer
                  %s616 = sadd.s32 1, %s612
                $region64: #{vision_transformer_forward.3} parent=50 // loop_footer_branch
                  %611 = sbr.rel target = $region60
                $region65: #{vision_transformer_forward.3} parent=50 // loop_exit
                  _
              $region51: #{vision_transformer_forward.3} parent=35 // pred_fallthru
                _
            $region36: #{vision_transformer_forward.3} parent=31 // pred_fallthru
              _
            // Predicated region
            $region37: #{vision_transformer_forward.3} parent=31 // pred_check
              _
            $region38: #{vision_transformer_forward.3} parent=31 // pred_check_branch
              %586 = sbr.rel (0) target = $region40
            $region39: #{vision_transformer_forward.3} parent=31 // pred_region
              loop: start=0, step=1, limit=1
              $region41: #{vision_transformer_forward.3} parent=39 // loop_pre_header
                _
              $region42: #{vision_transformer_forward.3} parent=39 // loop_header
                %s589 = sphi 0, %s593
                %p590 = scmp.ge.s32.totalorder %s589, 1
                %s594 = sphi %s580, %s580
                %s595 = sphi %s578, %s578
              $region43: #{vision_transformer_forward.3} parent=39 // loop_header_branch
                %592 = sbr.rel (%p590) target = $region47
              $region44: #{vision_transformer_forward.3} parent=39 // loop_body
                %v596 = vld [vmem:[%s594] sm:$0xf]
                %597 = vst [vmem:[%s595] sm:$0xf] %v596
                %v598 = vld [vmem:[%s594 + $0xc] sm:$0xf]
                %599 = vst [vmem:[%s595 + $0x4] sm:$0xf] %v598
              $region45: #{vision_transformer_forward.3} parent=39 // loop_footer
                %s593 = sadd.s32 1, %s589
              $region46: #{vision_transformer_forward.3} parent=39 // loop_footer_branch
                %588 = sbr.rel target = $region42
              $region47: #{vision_transformer_forward.3} parent=39 // loop_exit
                _
            $region40: #{vision_transformer_forward.3} parent=31 // pred_fallthru
              _
          $region32: #{vision_transformer_forward.3} parent=27 // pred_fallthru
            _
          %623 = vnop
        $region28: #{vision_transformer_forward.3} parent=23 // pred_fallthru
          _
        // Predicated region
        $region66: #{vision_transformer_forward.3} parent=23 // pred_check
          %p624 = pneg %p125
        $region67: #{vision_transformer_forward.3} parent=23 // pred_check_branch
          %626 = sbr.rel (%p624) target = $region69
        $region68: #{vision_transformer_forward.3} parent=23 // pred_region
          %p627 = scmp.lt.s32.totalorder %s33, 1
          %s628 = scalar_select %p627, %s33, 1
          %s629 = smul.addr %s628, 4
          %s630 = smul.addr %s629, 4
          %s631 = scalar_lea.vmem %s3, %s630
        $region69: #{vision_transformer_forward.3} parent=23 // pred_fallthru
          _
        // Predicated region
        $region70: #{vision_transformer_forward.3} parent=23 // pred_check
          %p632 = pneg %p151
        $region71: #{vision_transformer_forward.3} parent=23 // pred_check_branch
          %634 = sbr.rel (%p632) target = $region73
        $region72: #{vision_transformer_forward.3} parent=23 // pred_region
          %p635 = scmp.lt.s32.totalorder %s33, 1
          %s636 = scalar_select %p635, %s33, 1
          %s637 = smul.addr %s636, 4
          %s638 = smul.addr %s637, 4
          %s639 = scalar_lea.vmem %s4, %s638
        $region73: #{vision_transformer_forward.3} parent=23 // pred_fallthru
          _
        // Predicated region
        $region74: #{vision_transformer_forward.3} parent=23 // pred_check
          %p640 = pneg %p177
        $region75: #{vision_transformer_forward.3} parent=23 // pred_check_branch
          %642 = sbr.rel (%p640) target = $region77
        $region76: #{vision_transformer_forward.3} parent=23 // pred_region
          %p643 = scmp.lt.s32.totalorder %s33, 1
          %s644 = scalar_select %p643, %s33, 1
          %s645 = smul.addr %s644, 4
          %s646 = smul.addr %s645, 4
          %s647 = scalar_lea.vmem %s5, %s646
        $region77: #{vision_transformer_forward.3} parent=23 // pred_fallthru
          _
        // Predicated region
        $region78: #{vision_transformer_forward.3} parent=23 // pred_check
          %p648 = pneg %p203
        $region79: #{vision_transformer_forward.3} parent=23 // pred_check_branch
          %650 = sbr.rel (%p648) target = $region81
        $region80: #{vision_transformer_forward.3} parent=23 // pred_region
          %p651 = scmp.lt.s32.totalorder %s33, 1
          %s652 = scalar_select %p651, %s33, 1
          %s653 = scalar_lea.vmem %s6, %s652
        $region81: #{vision_transformer_forward.3} parent=23 // pred_fallthru
          _
        // Predicated region
        $region82: #{vision_transformer_forward.3} parent=23 // pred_check
          %p654 = pneg %p229
        $region83: #{vision_transformer_forward.3} parent=23 // pred_check_branch
          %656 = sbr.rel (%p654) target = $region85
        $region84: #{vision_transformer_forward.3} parent=23 // pred_region
          %p657 = scmp.lt.s32.totalorder %s33, 1
          %s658 = scalar_select %p657, %s33, 1
          %s659 = scalar_lea.vmem %s7, %s658
        $region85: #{vision_transformer_forward.3} parent=23 // pred_fallthru
          _
        // Predicated region
        $region86: #{vision_transformer_forward.3} parent=23 // pred_check
          %p660 = pneg %p255
        $region87: #{vision_transformer_forward.3} parent=23 // pred_check_branch
          %662 = sbr.rel (%p660) target = $region89
        $region88: #{vision_transformer_forward.3} parent=23 // pred_region
          %p663 = scmp.lt.s32.totalorder %s33, 1
          %s664 = scalar_select %p663, %s33, 1
          %s665 = scalar_lea.vmem %s8, %s664
        $region89: #{vision_transformer_forward.3} parent=23 // pred_fallthru
          _
        // Predicated region
        $region90: #{vision_transformer_forward.3} parent=23 // pred_check
          %p666 = pneg %p281
        $region91: #{vision_transformer_forward.3} parent=23 // pred_check_branch
          %668 = sbr.rel (%p666) target = $region93
        $region92: #{vision_transformer_forward.3} parent=23 // pred_region
          %p669 = scmp.lt.s32.totalorder %s33, 1
          %s670 = scalar_select %p669, %s33, 1
          %s671 = smul.addr %s670, 4
          %s672 = smul.addr %s671, 4
          %s673 = scalar_lea.vmem %s9, %s672
        $region93: #{vision_transformer_forward.3} parent=23 // pred_fallthru
          _
        // Predicated region
        $region94: #{vision_transformer_forward.3} parent=23 // pred_check
          %p674 = pneg %p307
        $region95: #{vision_transformer_forward.3} parent=23 // pred_check_branch
          %676 = sbr.rel (%p674) target = $region97
        $region96: #{vision_transformer_forward.3} parent=23 // pred_region
          %p677 = scmp.lt.s32.totalorder %s33, 1
          %s678 = scalar_select %p677, %s33, 1
          %s679 = scalar_lea.vmem %s10, %s678
        $region97: #{vision_transformer_forward.3} parent=23 // pred_fallthru
          _
        // Predicated region
        $region98: #{vision_transformer_forward.3} parent=23 // pred_check
          %p680 = pneg %p333
        $region99: #{vision_transformer_forward.3} parent=23 // pred_check_branch
          %682 = sbr.rel (%p680) target = $region101
        $region100: #{vision_transformer_forward.3} parent=23 // pred_region
          %p683 = scmp.lt.s32.totalorder %s33, 1
          %s684 = scalar_select %p683, %s33, 1
          %s685 = scalar_lea.vmem %s11, %s684
        $region101: #{vision_transformer_forward.3} parent=23 // pred_fallthru
          _
        // Predicated region
        $region102: #{vision_transformer_forward.3} parent=23 // pred_check
          %p686 = pneg %p359
        $region103: #{vision_transformer_forward.3} parent=23 // pred_check_branch
          %688 = sbr.rel (%p686) target = $region105
        $region104: #{vision_transformer_forward.3} parent=23 // pred_region
          %p689 = scmp.lt.s32.totalorder %s33, 1
          %s690 = scalar_select %p689, %s33, 1
          %s691 = scalar_lea.vmem %s12, %s690
        $region105: #{vision_transformer_forward.3} parent=23 // pred_fallthru
          _
        // Predicated region
        $region106: #{vision_transformer_forward.3} parent=23 // pred_check
          %p692 = pneg %p385
        $region107: #{vision_transformer_forward.3} parent=23 // pred_check_branch
          %694 = sbr.rel (%p692) target = $region109
        $region108: #{vision_transformer_forward.3} parent=23 // pred_region
          %p695 = scmp.lt.s32.totalorder %s33, 1
          %s696 = scalar_select %p695, %s33, 1
          %s697 = smul.addr %s696, 64
          %s698 = smul.addr %s697, 4
          %s699 = scalar_lea.vmem %s13, %s698
        $region109: #{vision_transformer_forward.3} parent=23 // pred_fallthru
          _
        // Predicated region
        $region110: #{vision_transformer_forward.3} parent=23 // pred_check
          %p700 = pneg %p411
        $region111: #{vision_transformer_forward.3} parent=23 // pred_check_branch
          %702 = sbr.rel (%p700) target = $region113
        $region112: #{vision_transformer_forward.3} parent=23 // pred_region
          %p703 = scmp.lt.s32.totalorder %s33, 1
          %s704 = scalar_select %p703, %s33, 1
          %s705 = smul.addr %s704, 16
          %s706 = scalar_lea.vmem %s14, %s705
        $region113: #{vision_transformer_forward.3} parent=23 // pred_fallthru
          _
        // Predicated region
        $region114: #{vision_transformer_forward.3} parent=23 // pred_check
          %p707 = pneg %p437
        $region115: #{vision_transformer_forward.3} parent=23 // pred_check_branch
          %709 = sbr.rel (%p707) target = $region117
        $region116: #{vision_transformer_forward.3} parent=23 // pred_region
          %p710 = scmp.lt.s32.totalorder %s33, 1
          %s711 = scalar_select %p710, %s33, 1
          %s712 = smul.addr %s711, 256
          %s713 = smul.addr %s712, 4
          %s714 = scalar_lea.vmem %s15, %s713
        $region117: #{vision_transformer_forward.3} parent=23 // pred_fallthru
          _
        // Predicated region
        $region118: #{vision_transformer_forward.3} parent=23 // pred_check
          %p715 = pneg %p463
        $region119: #{vision_transformer_forward.3} parent=23 // pred_check_branch
          %717 = sbr.rel (%p715) target = $region121
        $region120: #{vision_transformer_forward.3} parent=23 // pred_region
          %p718 = scmp.lt.s32.totalorder %s33, 1
          %s719 = scalar_select %p718, %s33, 1
          %s720 = scalar_lea.vmem %s16, %s719
        $region121: #{vision_transformer_forward.3} parent=23 // pred_fallthru
          _
        // Predicated region
        $region122: #{vision_transformer_forward.3} parent=23 // pred_check
          %p721 = pneg %p489
        $region123: #{vision_transformer_forward.3} parent=23 // pred_check_branch
          %723 = sbr.rel (%p721) target = $region125
        $region124: #{vision_transformer_forward.3} parent=23 // pred_region
          %p724 = scmp.lt.s32.totalorder %s33, 1
          %s725 = scalar_select %p724, %s33, 1
          %s726 = scalar_lea.vmem %s17, %s725
        $region125: #{vision_transformer_forward.3} parent=23 // pred_fallthru
          _
        // Predicated region
        $region126: #{vision_transformer_forward.3} parent=23 // pred_check
          %p727 = pneg %p515
        $region127: #{vision_transformer_forward.3} parent=23 // pred_check_branch
          %729 = sbr.rel (%p727) target = $region129
        $region128: #{vision_transformer_forward.3} parent=23 // pred_region
          %p730 = scmp.lt.s32.totalorder %s33, 1
          %s731 = scalar_select %p730, %s33, 1
          %s732 = scalar_lea.vmem %s18, %s731
        $region129: #{vision_transformer_forward.3} parent=23 // pred_fallthru
          _
      $region24: #{vision_transformer_forward.3} parent=5 // pred_fallthru
        _
      %p733 = scmp.le.s32.totalorder 1, %s25
      %p734 = scmp.lt.s32.totalorder %s25, 7
      %p735 = pnand %p733, %p734
      %p736 = pneg %p735
      // Predicated region
      $region130: #{vision_transformer_forward.3} parent=5 // pred_check
        _
      $region131: #{vision_transformer_forward.3} parent=5 // pred_check_branch
        %738 = sbr.rel (%p735) target = $region133
      $region132: #{vision_transformer_forward.3} parent=5 // pred_region
        %s739 = ssub.s32 %s25, 1
        %s740 = sand.u32 %s50, 1
        %s741 = sand.u32 %s50, 1
        %s742 = smul.addr %s741, 8
        %s743 = scalar_lea.vmem [#allocation6], %s742
        // Predicated region
        $region134: #{vision_transformer_forward.3} parent=132 // pred_check
          %p744 = pneg %p63
        $region135: #{vision_transformer_forward.3} parent=132 // pred_check_branch
          %746 = sbr.rel (%p744) target = $region137
        $region136: #{vision_transformer_forward.3} parent=132 // pred_region
          _
        $region137: #{vision_transformer_forward.3} parent=132 // pred_fallthru
          _
        %s747 = sand.u32 %s50, 1
        %s748 = sand.u32 %s50, 1
        %s749 = smul.addr %s748, 8
        %s750 = scalar_lea.vmem [#allocation6], %s749
        %p751 = pneg %p63
        %p752 = pneg %p60
        %p753 = pneg %p84
        %p754 = pneg %p81
        %p755 = pneg %p105
        %p756 = pneg %p102
        %p757 = scmp.lt.s32.totalorder %s35, 1
        %s758 = scalar_select %p757, %s35, 1
        %s759 = smul.addr %s758, 4
        %s760 = smul.addr %s759, 4
        %s761 = scalar_lea.vmem %s3, %s760
        %p762 = pneg %p131
        %p763 = pneg %p128
        %p764 = scmp.lt.s32.totalorder %s35, 1
        %s765 = scalar_select %p764, %s35, 1
        %s766 = smul.addr %s765, 4
        %s767 = smul.addr %s766, 4
        %s768 = scalar_lea.vmem %s4, %s767
        %p769 = pneg %p157
        %p770 = pneg %p154
        %p771 = scmp.lt.s32.totalorder %s35, 1
        %s772 = scalar_select %p771, %s35, 1
        %s773 = smul.addr %s772, 4
        %s774 = smul.addr %s773, 4
        %s775 = scalar_lea.vmem %s5, %s774
        %p776 = pneg %p183
        %p777 = pneg %p180
        %p778 = scmp.lt.s32.totalorder %s35, 1
        %s779 = scalar_select %p778, %s35, 1
        %s780 = scalar_lea.vmem %s6, %s779
        %p781 = pneg %p209
        %p782 = pneg %p206
        %p783 = scmp.lt.s32.totalorder %s35, 1
        %s784 = scalar_select %p783, %s35, 1
        %s785 = scalar_lea.vmem %s7, %s784
        %p786 = pneg %p235
        %p787 = pneg %p232
        %p788 = scmp.lt.s32.totalorder %s35, 1
        %s789 = scalar_select %p788, %s35, 1
        %s790 = scalar_lea.vmem %s8, %s789
        %p791 = pneg %p261
        %p792 = pneg %p258
        %p793 = scmp.lt.s32.totalorder %s35, 1
        %s794 = scalar_select %p793, %s35, 1
        %s795 = smul.addr %s794, 4
        %s796 = smul.addr %s795, 4
        %s797 = scalar_lea.vmem %s9, %s796
        %p798 = pneg %p287
        %p799 = pneg %p284
        %p800 = scmp.lt.s32.totalorder %s35, 1
        %s801 = scalar_select %p800, %s35, 1
        %s802 = scalar_lea.vmem %s10, %s801
        %p803 = pneg %p313
        %p804 = pneg %p310
        %p805 = scmp.lt.s32.totalorder %s35, 1
        %s806 = scalar_select %p805, %s35, 1
        %s807 = scalar_lea.vmem %s11, %s806
        %p808 = pneg %p339
        %p809 = pneg %p336
        %p810 = scmp.lt.s32.totalorder %s35, 1
        %s811 = scalar_select %p810, %s35, 1
        %s812 = scalar_lea.vmem %s12, %s811
        %p813 = pneg %p365
        %p814 = pneg %p362
        %p815 = scmp.lt.s32.totalorder %s35, 1
        %s816 = scalar_select %p815, %s35, 1
        %s817 = smul.addr %s816, 64
        %s818 = smul.addr %s817, 4
        %s819 = scalar_lea.vmem %s13, %s818
        %p820 = pneg %p391
        %p821 = pneg %p388
        %p822 = scmp.lt.s32.totalorder %s35, 1
        %s823 = scalar_select %p822, %s35, 1
        %s824 = smul.addr %s823, 16
        %s825 = scalar_lea.vmem %s14, %s824
        %p826 = pneg %p417
        %p827 = pneg %p414
        %p828 = scmp.lt.s32.totalorder %s35, 1
        %s829 = scalar_select %p828, %s35, 1
        %s830 = smul.addr %s829, 256
        %s831 = smul.addr %s830, 4
        %s832 = scalar_lea.vmem %s15, %s831
        %p833 = pneg %p443
        %p834 = pneg %p440
        %p835 = scmp.lt.s32.totalorder %s35, 1
        %s836 = scalar_select %p835, %s35, 1
        %s837 = scalar_lea.vmem %s16, %s836
        %p838 = pneg %p469
        %p839 = pneg %p466
        %p840 = scmp.lt.s32.totalorder %s35, 1
        %s841 = scalar_select %p840, %s35, 1
        %s842 = scalar_lea.vmem %s17, %s841
        %p843 = pneg %p495
        %p844 = pneg %p492
        %p845 = scmp.lt.s32.totalorder %s35, 1
        %s846 = scalar_select %p845, %s35, 1
        %s847 = scalar_lea.vmem %s18, %s846
        %p848 = pneg %p521
        %p849 = pneg %p518
        %p850 = pneg %p547
        %p851 = pneg %p544
        %s852 = sand.u32 %s534, 1
        %s853 = sand.u32 %s534, 1
        %s854 = smul.addr %s853, 16
        %s855 = scalar_lea.vmem [#allocation7], %s854
        %p856 = scmp.lt.s32.totalorder %s35, 1
        %s857 = scalar_select %p856, %s35, 1
        %s858 = smul.addr %s857, 4
        %s859 = smul.addr %s858, 4
        %s860 = scalar_lea.vmem %s3, %s859
        %p861 = scmp.lt.s32.totalorder %s35, 1
        %s862 = scalar_select %p861, %s35, 1
        %s863 = smul.addr %s862, 4
        %s864 = smul.addr %s863, 4
        %s865 = scalar_lea.vmem %s4, %s864
        %p866 = scmp.lt.s32.totalorder %s35, 1
        %s867 = scalar_select %p866, %s35, 1
        %s868 = smul.addr %s867, 4
        %s869 = smul.addr %s868, 4
        %s870 = scalar_lea.vmem %s5, %s869
        %p871 = scmp.lt.s32.totalorder %s35, 1
        %s872 = scalar_select %p871, %s35, 1
        %s873 = scalar_lea.vmem %s6, %s872
        %p874 = scmp.lt.s32.totalorder %s35, 1
        %s875 = scalar_select %p874, %s35, 1
        %s876 = scalar_lea.vmem %s7, %s875
        %p877 = scmp.lt.s32.totalorder %s35, 1
        %s878 = scalar_select %p877, %s35, 1
        %s879 = scalar_lea.vmem %s8, %s878
        %p880 = scmp.lt.s32.totalorder %s35, 1
        %s881 = scalar_select %p880, %s35, 1
        %s882 = smul.addr %s881, 4
        %s883 = smul.addr %s882, 4
        %s884 = scalar_lea.vmem %s9, %s883
        %p885 = scmp.lt.s32.totalorder %s35, 1
        %s886 = scalar_select %p885, %s35, 1
        %s887 = scalar_lea.vmem %s10, %s886
        %p888 = scmp.lt.s32.totalorder %s35, 1
        %s889 = scalar_select %p888, %s35, 1
        %s890 = scalar_lea.vmem %s11, %s889
        %p891 = scmp.lt.s32.totalorder %s35, 1
        %s892 = scalar_select %p891, %s35, 1
        %s893 = scalar_lea.vmem %s12, %s892
        %p894 = scmp.lt.s32.totalorder %s35, 1
        %s895 = scalar_select %p894, %s35, 1
        %s896 = smul.addr %s895, 64
        %s897 = smul.addr %s896, 4
        %s898 = scalar_lea.vmem %s13, %s897
        %p899 = scmp.lt.s32.totalorder %s35, 1
        %s900 = scalar_select %p899, %s35, 1
        %s901 = smul.addr %s900, 16
        %s902 = scalar_lea.vmem %s14, %s901
        %p903 = scmp.lt.s32.totalorder %s35, 1
        %s904 = scalar_select %p903, %s35, 1
        %s905 = smul.addr %s904, 256
        %s906 = smul.addr %s905, 4
        %s907 = scalar_lea.vmem %s15, %s906
        %p908 = scmp.lt.s32.totalorder %s35, 1
        %s909 = scalar_select %p908, %s35, 1
        %s910 = scalar_lea.vmem %s16, %s909
        %p911 = scmp.lt.s32.totalorder %s35, 1
        %s912 = scalar_select %p911, %s35, 1
        %s913 = scalar_lea.vmem %s17, %s912
        %p914 = scmp.lt.s32.totalorder %s35, 1
        %s915 = scalar_select %p914, %s35, 1
        %s916 = scalar_lea.vmem %s18, %s915
        %p918 = scmp.eq.s32.totalorder %s35, 0
        // Predicated region
        $region138: #{vision_transformer_forward.3} parent=132 // pred_check
          %p919 = pneg %p918
        $region139: #{vision_transformer_forward.3} parent=132 // pred_check_branch
          %921 = sbr.rel (%p919) target = $region141
        $region140: #{vision_transformer_forward.3} parent=132 // pred_region
          %v922 = vld [vmem:[%s743] sm:$0xf]
          %v923 = vld [vmem:[%s743 + $0x4] sm:$0xf]
          %v924 = vunpack.c.l.bf16 %v922
          %v925 = vunpack.c.l.bf16 %v923
          %vm926 = vcmask 261120
          %927 = vst.msk [vmem:[#allocation2] sm:$0xff] %vm926, %v924
          %928 = vst.msk [vmem:[#allocation2 + $0x8] sm:$0xff] %vm926, %v925
        $region141: #{vision_transformer_forward.3} parent=132 // pred_fallthru
          _
        %v929 = vld [vmem:[%s1] sm:$0xf]
        %v930 = vld [vmem:[%s1 + $0x4] sm:$0xf]
        %v931 = vld [vmem:[%s1 + $0x8] sm:$0xf]
        %v932 = vld [vmem:[%s1 + $0xc] sm:$0xf]
        %v933 = vld [vmem:[%s2] sm:$0x3]
        %v934 = vld [vmem:[%s860] sm:$0xf]
        %v935 = vld [vmem:[%s860 + $0x4] sm:$0xf]
        %v936 = vld [vmem:[%s860 + $0x8] sm:$0xf]
        %v937 = vld [vmem:[%s860 + $0xc] sm:$0xf]
        %v938 = vld [vmem:[%s865] sm:$0xf]
        %v939 = vld [vmem:[%s865 + $0x4] sm:$0xf]
        %v940 = vld [vmem:[%s865 + $0x8] sm:$0xf]
        %v941 = vld [vmem:[%s865 + $0xc] sm:$0xf]
        %v942 = vld [vmem:[%s870] sm:$0xf]
        %v943 = vld [vmem:[%s870 + $0x4] sm:$0xf]
        %v944 = vld [vmem:[%s870 + $0x8] sm:$0xf]
        %v945 = vld [vmem:[%s870 + $0xc] sm:$0xf]
        %v946 = vld [vmem:[%s873] sm:$0x1]
        %v947 = vld [vmem:[%s876] sm:$0x1]
        %v948 = vld [vmem:[%s879] sm:$0x1]
        %v949 = vld [vmem:[%s884] sm:$0xf]
        %v950 = vld [vmem:[%s884 + $0x4] sm:$0xf]
        %v951 = vld [vmem:[%s884 + $0x8] sm:$0xf]
        %v952 = vld [vmem:[%s884 + $0xc] sm:$0xf]
        %v953 = vld [vmem:[%s887] sm:$0x1]
        %v954 = vld [vmem:[%s890] sm:$0x1]
        %v955 = vld [vmem:[%s893] sm:$0x1]
        %v956 = vld [vmem:[%s898] sm:$0xff]
        %v957 = vld [vmem:[%s898 + $0x8] sm:$0xff]
        %v958 = vld [vmem:[%s898 + $0x10] sm:$0xff]
        %v959 = vld [vmem:[%s898 + $0x18] sm:$0xff]
        %v960 = vld [vmem:[%s898 + $0x20] sm:$0xff]
        %v961 = vld [vmem:[%s898 + $0x28] sm:$0xff]
        %v962 = vld [vmem:[%s898 + $0x30] sm:$0xff]
        %v963 = vld [vmem:[%s898 + $0x38] sm:$0xff]
        %v964 = vld [vmem:[%s898 + $0x40] sm:$0xff]
        %v965 = vld [vmem:[%s898 + $0x48] sm:$0xff]
        %v966 = vld [vmem:[%s898 + $0x50] sm:$0xff]
        %v967 = vld [vmem:[%s898 + $0x58] sm:$0xff]
        %v968 = vld [vmem:[%s898 + $0x60] sm:$0xff]
        %v969 = vld [vmem:[%s898 + $0x68] sm:$0xff]
        %v970 = vld [vmem:[%s898 + $0x70] sm:$0xff]
        %v971 = vld [vmem:[%s898 + $0x78] sm:$0xff]
        %v972 = vld [vmem:[%s898 + $0x80] sm:$0xff]
        %v973 = vld [vmem:[%s898 + $0x88] sm:$0xff]
        %v974 = vld [vmem:[%s898 + $0x90] sm:$0xff]
        %v975 = vld [vmem:[%s898 + $0x98] sm:$0xff]
        %v976 = vld [vmem:[%s898 + $0xa0] sm:$0xff]
        %v977 = vld [vmem:[%s898 + $0xa8] sm:$0xff]
        %v978 = vld [vmem:[%s898 + $0xb0] sm:$0xff]
        %v979 = vld [vmem:[%s898 + $0xb8] sm:$0xff]
        %v980 = vld [vmem:[%s898 + $0xc0] sm:$0xff]
        %v981 = vld [vmem:[%s898 + $0xc8] sm:$0xff]
        %v982 = vld [vmem:[%s898 + $0xd0] sm:$0xff]
        %v983 = vld [vmem:[%s898 + $0xd8] sm:$0xff]
        %v984 = vld [vmem:[%s898 + $0xe0] sm:$0xff]
        %v985 = vld [vmem:[%s898 + $0xe8] sm:$0xff]
        %v986 = vld [vmem:[%s898 + $0xf0] sm:$0xff]
        %v987 = vld [vmem:[%s898 + $0xf8] sm:$0xff]
        %v988 = vld [vmem:[%s902] sm:$0xff]
        %v989 = vld [vmem:[%s902 + $0x8] sm:$0xff]
        %v990 = vld [vmem:[%s907] sm:$0xf]
        %v991 = vld [vmem:[%s907 + $0x4] sm:$0xf]
        %v992 = vld [vmem:[%s907 + $0x8] sm:$0xf]
        %v993 = vld [vmem:[%s907 + $0xc] sm:$0xf]
        %v994 = vld [vmem:[%s907 + $0x10] sm:$0xf]
        %v995 = vld [vmem:[%s907 + $0x14] sm:$0xf]
        %v996 = vld [vmem:[%s907 + $0x18] sm:$0xf]
        %v997 = vld [vmem:[%s907 + $0x1c] sm:$0xf]
        %v998 = vld [vmem:[%s907 + $0x20] sm:$0xf]
        %v999 = vld [vmem:[%s907 + $0x24] sm:$0xf]
        %v1000 = vld [vmem:[%s907 + $0x28] sm:$0xf]
        %v1001 = vld [vmem:[%s907 + $0x2c] sm:$0xf]
        %v1002 = vld [vmem:[%s907 + $0x30] sm:$0xf]
        %v1003 = vld [vmem:[%s907 + $0x34] sm:$0xf]
        %v1004 = vld [vmem:[%s907 + $0x38] sm:$0xf]
        %v1005 = vld [vmem:[%s907 + $0x3c] sm:$0xf]
        %v1006 = vld [vmem:[%s907 + $0x40] sm:$0xf]
        %v1007 = vld [vmem:[%s907 + $0x44] sm:$0xf]
        %v1008 = vld [vmem:[%s907 + $0x48] sm:$0xf]
        %v1009 = vld [vmem:[%s907 + $0x4c] sm:$0xf]
        %v1010 = vld [vmem:[%s907 + $0x50] sm:$0xf]
        %v1011 = vld [vmem:[%s907 + $0x54] sm:$0xf]
        %v1012 = vld [vmem:[%s907 + $0x58] sm:$0xf]
        %v1013 = vld [vmem:[%s907 + $0x5c] sm:$0xf]
        %v1014 = vld [vmem:[%s907 + $0x60] sm:$0xf]
        %v1015 = vld [vmem:[%s907 + $0x64] sm:$0xf]
        %v1016 = vld [vmem:[%s907 + $0x68] sm:$0xf]
        %v1017 = vld [vmem:[%s907 + $0x6c] sm:$0xf]
        %v1018 = vld [vmem:[%s907 + $0x70] sm:$0xf]
        %v1019 = vld [vmem:[%s907 + $0x74] sm:$0xf]
        %v1020 = vld [vmem:[%s907 + $0x78] sm:$0xf]
        %v1021 = vld [vmem:[%s907 + $0x7c] sm:$0xf]
        %v1022 = vld [vmem:[%s907 + $0x80] sm:$0xf]
        %v1023 = vld [vmem:[%s907 + $0x84] sm:$0xf]
        %v1024 = vld [vmem:[%s907 + $0x88] sm:$0xf]
        %v1025 = vld [vmem:[%s907 + $0x8c] sm:$0xf]
        %v1026 = vld [vmem:[%s907 + $0x90] sm:$0xf]
        %v1027 = vld [vmem:[%s907 + $0x94] sm:$0xf]
        %v1028 = vld [vmem:[%s907 + $0x98] sm:$0xf]
        %v1029 = vld [vmem:[%s907 + $0x9c] sm:$0xf]
        %v1030 = vld [vmem:[%s907 + $0xa0] sm:$0xf]
        %v1031 = vld [vmem:[%s907 + $0xa4] sm:$0xf]
        %v1032 = vld [vmem:[%s907 + $0xa8] sm:$0xf]
        %v1033 = vld [vmem:[%s907 + $0xac] sm:$0xf]
        %v1034 = vld [vmem:[%s907 + $0xb0] sm:$0xf]
        %v1035 = vld [vmem:[%s907 + $0xb4] sm:$0xf]
        %v1036 = vld [vmem:[%s907 + $0xb8] sm:$0xf]
        %v1037 = vld [vmem:[%s907 + $0xbc] sm:$0xf]
        %v1038 = vld [vmem:[%s907 + $0xc0] sm:$0xf]
        %v1039 = vld [vmem:[%s907 + $0xc4] sm:$0xf]
        %v1040 = vld [vmem:[%s907 + $0xc8] sm:$0xf]
        %v1041 = vld [vmem:[%s907 + $0xcc] sm:$0xf]
        %v1042 = vld [vmem:[%s907 + $0xd0] sm:$0xf]
        %v1043 = vld [vmem:[%s907 + $0xd4] sm:$0xf]
        %v1044 = vld [vmem:[%s907 + $0xd8] sm:$0xf]
        %v1045 = vld [vmem:[%s907 + $0xdc] sm:$0xf]
        %v1046 = vld [vmem:[%s907 + $0xe0] sm:$0xf]
        %v1047 = vld [vmem:[%s907 + $0xe4] sm:$0xf]
        %v1048 = vld [vmem:[%s907 + $0xe8] sm:$0xf]
        %v1049 = vld [vmem:[%s907 + $0xec] sm:$0xf]
        %v1050 = vld [vmem:[%s907 + $0xf0] sm:$0xf]
        %v1051 = vld [vmem:[%s907 + $0xf4] sm:$0xf]
        %v1052 = vld [vmem:[%s907 + $0xf8] sm:$0xf]
        %v1053 = vld [vmem:[%s907 + $0xfc] sm:$0xf]
        %v1054 = vld [vmem:[%s907 + $0x100] sm:$0xf]
        %v1055 = vld [vmem:[%s907 + $0x104] sm:$0xf]
        %v1056 = vld [vmem:[%s907 + $0x108] sm:$0xf]
        %v1057 = vld [vmem:[%s907 + $0x10c] sm:$0xf]
        %v1058 = vld [vmem:[%s907 + $0x110] sm:$0xf]
        %v1059 = vld [vmem:[%s907 + $0x114] sm:$0xf]
        %v1060 = vld [vmem:[%s907 + $0x118] sm:$0xf]
        %v1061 = vld [vmem:[%s907 + $0x11c] sm:$0xf]
        %v1062 = vld [vmem:[%s907 + $0x120] sm:$0xf]
        %v1063 = vld [vmem:[%s907 + $0x124] sm:$0xf]
        %v1064 = vld [vmem:[%s907 + $0x128] sm:$0xf]
        %v1065 = vld [vmem:[%s907 + $0x12c] sm:$0xf]
        %v1066 = vld [vmem:[%s907 + $0x130] sm:$0xf]
        %v1067 = vld [vmem:[%s907 + $0x134] sm:$0xf]
        %v1068 = vld [vmem:[%s907 + $0x138] sm:$0xf]
        %v1069 = vld [vmem:[%s907 + $0x13c] sm:$0xf]
        %v1070 = vld [vmem:[%s907 + $0x140] sm:$0xf]
        %v1071 = vld [vmem:[%s907 + $0x144] sm:$0xf]
        %v1072 = vld [vmem:[%s907 + $0x148] sm:$0xf]
        %v1073 = vld [vmem:[%s907 + $0x14c] sm:$0xf]
        %v1074 = vld [vmem:[%s907 + $0x150] sm:$0xf]
        %v1075 = vld [vmem:[%s907 + $0x154] sm:$0xf]
        %v1076 = vld [vmem:[%s907 + $0x158] sm:$0xf]
        %v1077 = vld [vmem:[%s907 + $0x15c] sm:$0xf]
        %v1078 = vld [vmem:[%s907 + $0x160] sm:$0xf]
        %v1079 = vld [vmem:[%s907 + $0x164] sm:$0xf]
        %v1080 = vld [vmem:[%s907 + $0x168] sm:$0xf]
        %v1081 = vld [vmem:[%s907 + $0x16c] sm:$0xf]
        %v1082 = vld [vmem:[%s907 + $0x170] sm:$0xf]
        %v1083 = vld [vmem:[%s907 + $0x174] sm:$0xf]
        %v1084 = vld [vmem:[%s907 + $0x178] sm:$0xf]
        %v1085 = vld [vmem:[%s907 + $0x17c] sm:$0xf]
        %v1086 = vld [vmem:[%s907 + $0x180] sm:$0xf]
        %v1087 = vld [vmem:[%s907 + $0x184] sm:$0xf]
        %v1088 = vld [vmem:[%s907 + $0x188] sm:$0xf]
        %v1089 = vld [vmem:[%s907 + $0x18c] sm:$0xf]
        %v1090 = vld [vmem:[%s907 + $0x190] sm:$0xf]
        %v1091 = vld [vmem:[%s907 + $0x194] sm:$0xf]
        %v1092 = vld [vmem:[%s907 + $0x198] sm:$0xf]
        %v1093 = vld [vmem:[%s907 + $0x19c] sm:$0xf]
        %v1094 = vld [vmem:[%s907 + $0x1a0] sm:$0xf]
        %v1095 = vld [vmem:[%s907 + $0x1a4] sm:$0xf]
        %v1096 = vld [vmem:[%s907 + $0x1a8] sm:$0xf]
        %v1097 = vld [vmem:[%s907 + $0x1ac] sm:$0xf]
        %v1098 = vld [vmem:[%s907 + $0x1b0] sm:$0xf]
        %v1099 = vld [vmem:[%s907 + $0x1b4] sm:$0xf]
        %v1100 = vld [vmem:[%s907 + $0x1b8] sm:$0xf]
        %v1101 = vld [vmem:[%s907 + $0x1bc] sm:$0xf]
        %v1102 = vld [vmem:[%s907 + $0x1c0] sm:$0xf]
        %v1103 = vld [vmem:[%s907 + $0x1c4] sm:$0xf]
        %v1104 = vld [vmem:[%s907 + $0x1c8] sm:$0xf]
        %v1105 = vld [vmem:[%s907 + $0x1cc] sm:$0xf]
        %v1106 = vld [vmem:[%s907 + $0x1d0] sm:$0xf]
        %v1107 = vld [vmem:[%s907 + $0x1d4] sm:$0xf]
        %v1108 = vld [vmem:[%s907 + $0x1d8] sm:$0xf]
        %v1109 = vld [vmem:[%s907 + $0x1dc] sm:$0xf]
        %v1110 = vld [vmem:[%s907 + $0x1e0] sm:$0xf]
        %v1111 = vld [vmem:[%s907 + $0x1e4] sm:$0xf]
        %v1112 = vld [vmem:[%s907 + $0x1e8] sm:$0xf]
        %v1113 = vld [vmem:[%s907 + $0x1ec] sm:$0xf]
        %v1114 = vld [vmem:[%s907 + $0x1f0] sm:$0xf]
        %v1115 = vld [vmem:[%s907 + $0x1f4] sm:$0xf]
        %v1116 = vld [vmem:[%s907 + $0x1f8] sm:$0xf]
        %v1117 = vld [vmem:[%s907 + $0x1fc] sm:$0xf]
        %v1118 = vld [vmem:[%s907 + $0x200] sm:$0xf]
        %v1119 = vld [vmem:[%s907 + $0x204] sm:$0xf]
        %v1120 = vld [vmem:[%s907 + $0x208] sm:$0xf]
        %v1121 = vld [vmem:[%s907 + $0x20c] sm:$0xf]
        %v1122 = vld [vmem:[%s907 + $0x210] sm:$0xf]
        %v1123 = vld [vmem:[%s907 + $0x214] sm:$0xf]
        %v1124 = vld [vmem:[%s907 + $0x218] sm:$0xf]
        %v1125 = vld [vmem:[%s907 + $0x21c] sm:$0xf]
        %v1126 = vld [vmem:[%s907 + $0x220] sm:$0xf]
        %v1127 = vld [vmem:[%s907 + $0x224] sm:$0xf]
        %v1128 = vld [vmem:[%s907 + $0x228] sm:$0xf]
        %v1129 = vld [vmem:[%s907 + $0x22c] sm:$0xf]
        %v1130 = vld [vmem:[%s907 + $0x230] sm:$0xf]
        %v1131 = vld [vmem:[%s907 + $0x234] sm:$0xf]
        %v1132 = vld [vmem:[%s907 + $0x238] sm:$0xf]
        %v1133 = vld [vmem:[%s907 + $0x23c] sm:$0xf]
        %v1134 = vld [vmem:[%s907 + $0x240] sm:$0xf]
        %v1135 = vld [vmem:[%s907 + $0x244] sm:$0xf]
        %v1136 = vld [vmem:[%s907 + $0x248] sm:$0xf]
        %v1137 = vld [vmem:[%s907 + $0x24c] sm:$0xf]
        %v1138 = vld [vmem:[%s907 + $0x250] sm:$0xf]
        %v1139 = vld [vmem:[%s907 + $0x254] sm:$0xf]
        %v1140 = vld [vmem:[%s907 + $0x258] sm:$0xf]
        %v1141 = vld [vmem:[%s907 + $0x25c] sm:$0xf]
        %v1142 = vld [vmem:[%s907 + $0x260] sm:$0xf]
        %v1143 = vld [vmem:[%s907 + $0x264] sm:$0xf]
        %v1144 = vld [vmem:[%s907 + $0x268] sm:$0xf]
        %v1145 = vld [vmem:[%s907 + $0x26c] sm:$0xf]
        %v1146 = vld [vmem:[%s907 + $0x270] sm:$0xf]
        %v1147 = vld [vmem:[%s907 + $0x274] sm:$0xf]
        %v1148 = vld [vmem:[%s907 + $0x278] sm:$0xf]
        %v1149 = vld [vmem:[%s907 + $0x27c] sm:$0xf]
        %v1150 = vld [vmem:[%s907 + $0x280] sm:$0xf]
        %v1151 = vld [vmem:[%s907 + $0x284] sm:$0xf]
        %v1152 = vld [vmem:[%s907 + $0x288] sm:$0xf]
        %v1153 = vld [vmem:[%s907 + $0x28c] sm:$0xf]
        %v1154 = vld [vmem:[%s907 + $0x290] sm:$0xf]
        %v1155 = vld [vmem:[%s907 + $0x294] sm:$0xf]
        %v1156 = vld [vmem:[%s907 + $0x298] sm:$0xf]
        %v1157 = vld [vmem:[%s907 + $0x29c] sm:$0xf]
        %v1158 = vld [vmem:[%s907 + $0x2a0] sm:$0xf]
        %v1159 = vld [vmem:[%s907 + $0x2a4] sm:$0xf]
        %v1160 = vld [vmem:[%s907 + $0x2a8] sm:$0xf]
        %v1161 = vld [vmem:[%s907 + $0x2ac] sm:$0xf]
        %v1162 = vld [vmem:[%s907 + $0x2b0] sm:$0xf]
        %v1163 = vld [vmem:[%s907 + $0x2b4] sm:$0xf]
        %v1164 = vld [vmem:[%s907 + $0x2b8] sm:$0xf]
        %v1165 = vld [vmem:[%s907 + $0x2bc] sm:$0xf]
        %v1166 = vld [vmem:[%s907 + $0x2c0] sm:$0xf]
        %v1167 = vld [vmem:[%s907 + $0x2c4] sm:$0xf]
        %v1168 = vld [vmem:[%s907 + $0x2c8] sm:$0xf]
        %v1169 = vld [vmem:[%s907 + $0x2cc] sm:$0xf]
        %v1170 = vld [vmem:[%s907 + $0x2d0] sm:$0xf]
        %v1171 = vld [vmem:[%s907 + $0x2d4] sm:$0xf]
        %v1172 = vld [vmem:[%s907 + $0x2d8] sm:$0xf]
        %v1173 = vld [vmem:[%s907 + $0x2dc] sm:$0xf]
        %v1174 = vld [vmem:[%s907 + $0x2e0] sm:$0xf]
        %v1175 = vld [vmem:[%s907 + $0x2e4] sm:$0xf]
        %v1176 = vld [vmem:[%s907 + $0x2e8] sm:$0xf]
        %v1177 = vld [vmem:[%s907 + $0x2ec] sm:$0xf]
        %v1178 = vld [vmem:[%s907 + $0x2f0] sm:$0xf]
        %v1179 = vld [vmem:[%s907 + $0x2f4] sm:$0xf]
        %v1180 = vld [vmem:[%s907 + $0x2f8] sm:$0xf]
        %v1181 = vld [vmem:[%s907 + $0x2fc] sm:$0xf]
        %v1182 = vld [vmem:[%s907 + $0x300] sm:$0xf]
        %v1183 = vld [vmem:[%s907 + $0x304] sm:$0xf]
        %v1184 = vld [vmem:[%s907 + $0x308] sm:$0xf]
        %v1185 = vld [vmem:[%s907 + $0x30c] sm:$0xf]
        %v1186 = vld [vmem:[%s907 + $0x310] sm:$0xf]
        %v1187 = vld [vmem:[%s907 + $0x314] sm:$0xf]
        %v1188 = vld [vmem:[%s907 + $0x318] sm:$0xf]
        %v1189 = vld [vmem:[%s907 + $0x31c] sm:$0xf]
        %v1190 = vld [vmem:[%s907 + $0x320] sm:$0xf]
        %v1191 = vld [vmem:[%s907 + $0x324] sm:$0xf]
        %v1192 = vld [vmem:[%s907 + $0x328] sm:$0xf]
        %v1193 = vld [vmem:[%s907 + $0x32c] sm:$0xf]
        %v1194 = vld [vmem:[%s907 + $0x330] sm:$0xf]
        %v1195 = vld [vmem:[%s907 + $0x334] sm:$0xf]
        %v1196 = vld [vmem:[%s907 + $0x338] sm:$0xf]
        %v1197 = vld [vmem:[%s907 + $0x33c] sm:$0xf]
        %v1198 = vld [vmem:[%s907 + $0x340] sm:$0xf]
        %v1199 = vld [vmem:[%s907 + $0x344] sm:$0xf]
        %v1200 = vld [vmem:[%s907 + $0x348] sm:$0xf]
        %v1201 = vld [vmem:[%s907 + $0x34c] sm:$0xf]
        %v1202 = vld [vmem:[%s907 + $0x350] sm:$0xf]
        %v1203 = vld [vmem:[%s907 + $0x354] sm:$0xf]
        %v1204 = vld [vmem:[%s907 + $0x358] sm:$0xf]
        %v1205 = vld [vmem:[%s907 + $0x35c] sm:$0xf]
        %v1206 = vld [vmem:[%s907 + $0x360] sm:$0xf]
        %v1207 = vld [vmem:[%s907 + $0x364] sm:$0xf]
        %v1208 = vld [vmem:[%s907 + $0x368] sm:$0xf]
        %v1209 = vld [vmem:[%s907 + $0x36c] sm:$0xf]
        %v1210 = vld [vmem:[%s907 + $0x370] sm:$0xf]
        %v1211 = vld [vmem:[%s907 + $0x374] sm:$0xf]
        %v1212 = vld [vmem:[%s907 + $0x378] sm:$0xf]
        %v1213 = vld [vmem:[%s907 + $0x37c] sm:$0xf]
        %v1214 = vld [vmem:[%s907 + $0x380] sm:$0xf]
        %v1215 = vld [vmem:[%s907 + $0x384] sm:$0xf]
        %v1216 = vld [vmem:[%s907 + $0x388] sm:$0xf]
        %v1217 = vld [vmem:[%s907 + $0x38c] sm:$0xf]
        %v1218 = vld [vmem:[%s907 + $0x390] sm:$0xf]
        %v1219 = vld [vmem:[%s907 + $0x394] sm:$0xf]
        %v1220 = vld [vmem:[%s907 + $0x398] sm:$0xf]
        %v1221 = vld [vmem:[%s907 + $0x39c] sm:$0xf]
        %v1222 = vld [vmem:[%s907 + $0x3a0] sm:$0xf]
        %v1223 = vld [vmem:[%s907 + $0x3a4] sm:$0xf]
        %v1224 = vld [vmem:[%s907 + $0x3a8] sm:$0xf]
        %v1225 = vld [vmem:[%s907 + $0x3ac] sm:$0xf]
        %v1226 = vld [vmem:[%s907 + $0x3b0] sm:$0xf]
        %v1227 = vld [vmem:[%s907 + $0x3b4] sm:$0xf]
        %v1228 = vld [vmem:[%s907 + $0x3b8] sm:$0xf]
        %v1229 = vld [vmem:[%s907 + $0x3bc] sm:$0xf]
        %v1230 = vld [vmem:[%s907 + $0x3c0] sm:$0xf]
        %v1231 = vld [vmem:[%s907 + $0x3c4] sm:$0xf]
        %v1232 = vld [vmem:[%s907 + $0x3c8] sm:$0xf]
        %v1233 = vld [vmem:[%s907 + $0x3cc] sm:$0xf]
        %v1234 = vld [vmem:[%s907 + $0x3d0] sm:$0xf]
        %v1235 = vld [vmem:[%s907 + $0x3d4] sm:$0xf]
        %v1236 = vld [vmem:[%s907 + $0x3d8] sm:$0xf]
        %v1237 = vld [vmem:[%s907 + $0x3dc] sm:$0xf]
        %v1238 = vld [vmem:[%s907 + $0x3e0] sm:$0xf]
        %v1239 = vld [vmem:[%s907 + $0x3e4] sm:$0xf]
        %v1240 = vld [vmem:[%s907 + $0x3e8] sm:$0xf]
        %v1241 = vld [vmem:[%s907 + $0x3ec] sm:$0xf]
        %v1242 = vld [vmem:[%s907 + $0x3f0] sm:$0xf]
        %v1243 = vld [vmem:[%s907 + $0x3f4] sm:$0xf]
        %v1244 = vld [vmem:[%s907 + $0x3f8] sm:$0xf]
        %v1245 = vld [vmem:[%s907 + $0x3fc] sm:$0xf]
        %v1246 = vld [vmem:[%s910] sm:$0x1]
        %v1247 = vld [vmem:[%s913] sm:$0x1]
        %v1248 = vld [vmem:[%s916] sm:$0x1]
        %v1249 = vld [vmem:[#allocation2] sm:$0xff]
        %v1250 = vld [vmem:[#allocation2 + $0x8] sm:$0xff]
        %v1251 = vpack.c.bf16 %v1250, %v1249
        %v1253 = vlaneseq
        %v1254 = vshrl.u32 %v1253, 7
        %v1255 = vsub.s32 0, %v1254
        %v1256 = vrot.slane %v946, %v1255
        %v1262 = vunpack.c.l.b16 %v934
        %v1263 = vunpack.c.l.b16 %v935
        %v1264 = vunpack.c.l.b16 %v936
        %v1265 = vunpack.c.l.b16 %v937
        %v1266 = vpack.c.b16 %v1263, %v1262
        %v1267 = vpack.c.b16 %v1265, %v1264
        %vm1270 = vcmask 261120
        %v1272 = vsel %vm1270, %v1251, 0
        %1274 = vmatprep.subr.bf16.mxu0 0
        %1275 = vmatpush1.bf16.msra.mxu0 %v1266
        %1276 = vmatprep.subr.bf16.mxu0 0
        %1277 = vmatpush1.bf16.msra.mxu0 %v1267
        %1278 = vmatprep.subr.bf16.mxu0 0
        %1279 = vmatpush1.bf16.msra.mxu0 0
        %1280 = vmatprep.subr.bf16.mxu0 0
        %1281 = vmatpush1.bf16.msra.mxu0 0
        %1282 = vmatprep.subr.bf16.mxu0 0
        %1283 = vmatpush1.bf16.msra.mxu0 0
        %1284 = vmatprep.subr.bf16.mxu0 0
        %1285 = vmatpush1.bf16.msra.mxu0 0
        %1286 = vmatprep.subr.bf16.mxu0 0
        %1287 = vmatpush1.bf16.msra.mxu0 0
        %1288 = vmatprep.subr.bf16.mxu0 0
        %1289 = vmatpush1.bf16.msra.mxu0 0
        %1290 = vmatprep.subr.bf16.mxu0 0
        %1291 = vmatpush1.bf16.msra.mxu0 0
        %1292 = vmatprep.subr.bf16.mxu0 0
        %1293 = vmatpush1.bf16.msra.mxu0 0
        %1294 = vmatprep.subr.bf16.mxu0 0
        %1295 = vmatpush1.bf16.msra.mxu0 0
        %1296 = vmatprep.subr.bf16.mxu0 0
        %1297 = vmatpush1.bf16.msra.mxu0 0
        %1298 = vmatprep.subr.bf16.mxu0 0
        %1299 = vmatpush1.bf16.msra.mxu0 0
        %1300 = vmatprep.subr.bf16.mxu0 0
        %1301 = vmatpush1.bf16.msra.mxu0 0
        %1302 = vmatprep.subr.bf16.mxu0 0
        %1303 = vmatpush1.bf16.msra.mxu0 0
        %1304 = vmatprep.subr.bf16.mxu0 0
        %1305 = vmatpush1.bf16.msra.mxu0 0
        %1306 = vmatprep.mubr.bf16.mxu0 0
        %1307 = vmatmul.mubr.bf16.gmra.mrb[0].mxu0 %v1272
        %v1308 = vpop.f32.mrb[0].mxu0
        %v1309 = vadd.f32 %v1256, %v1308
        %v1310 = vpop.f32.mrb[0].mxu0
        %v1311 = vpop.f32.mrb[0].mxu0
        %v1312 = vadd.f32 %v1256, %v1311
        %v1313 = vpop.f32.mrb[0].mxu0
        %1314 = vdwg.mxu0
        %1315 = vst.msk [vmem:[#allocation3] sm:$0xff] %vm1270, %v1309
        %1316 = vst.msk [vmem:[#allocation3 + $0x8] sm:$0xff] %vm1270, %v1312
        %v1318 = vlaneseq
        %v1319 = vshrl.u32 %v1318, 7
        %v1320 = vsub.s32 0, %v1319
        %v1321 = vrot.slane %v947, %v1320
        %v1327 = vunpack.c.l.b16 %v938
        %v1328 = vunpack.c.l.b16 %v939
        %v1329 = vunpack.c.l.b16 %v940
        %v1330 = vunpack.c.l.b16 %v941
        %v1331 = vpack.c.b16 %v1328, %v1327
        %v1332 = vpack.c.b16 %v1330, %v1329
        %1335 = vmatprep.subr.bf16.mxu0 0
        %1336 = vmatpush1.bf16.msra.mxu0 %v1331
        %1337 = vmatprep.subr.bf16.mxu0 0
        %1338 = vmatpush1.bf16.msra.mxu0 %v1332
        %1339 = vmatprep.subr.bf16.mxu0 0
        %1340 = vmatpush1.bf16.msra.mxu0 0
        %1341 = vmatprep.subr.bf16.mxu0 0
        %1342 = vmatpush1.bf16.msra.mxu0 0
        %1343 = vmatprep.subr.bf16.mxu0 0
        %1344 = vmatpush1.bf16.msra.mxu0 0
        %1345 = vmatprep.subr.bf16.mxu0 0
        %1346 = vmatpush1.bf16.msra.mxu0 0
        %1347 = vmatprep.subr.bf16.mxu0 0
        %1348 = vmatpush1.bf16.msra.mxu0 0
        %1349 = vmatprep.subr.bf16.mxu0 0
        %1350 = vmatpush1.bf16.msra.mxu0 0
        %1351 = vmatprep.subr.bf16.mxu0 0
        %1352 = vmatpush1.bf16.msra.mxu0 0
        %1353 = vmatprep.subr.bf16.mxu0 0
        %1354 = vmatpush1.bf16.msra.mxu0 0
        %1355 = vmatprep.subr.bf16.mxu0 0
        %1356 = vmatpush1.bf16.msra.mxu0 0
        %1357 = vmatprep.subr.bf16.mxu0 0
        %1358 = vmatpush1.bf16.msra.mxu0 0
        %1359 = vmatprep.subr.bf16.mxu0 0
        %1360 = vmatpush1.bf16.msra.mxu0 0
        %1361 = vmatprep.subr.bf16.mxu0 0
        %1362 = vmatpush1.bf16.msra.mxu0 0
        %1363 = vmatprep.subr.bf16.mxu0 0
        %1364 = vmatpush1.bf16.msra.mxu0 0
        %1365 = vmatprep.subr.bf16.mxu0 0
        %1366 = vmatpush1.bf16.msra.mxu0 0
        %1367 = vmatprep.mubr.bf16.mxu0 0
        %1368 = vmatmul.mubr.bf16.gmra.mrb[0].mxu0 %v1272
        %v1369 = vpop.f32.mrb[0].mxu0
        %v1370 = vadd.f32 %v1321, %v1369
        %v1371 = vpop.f32.mrb[0].mxu0
        %v1372 = vpop.f32.mrb[0].mxu0
        %v1373 = vadd.f32 %v1321, %v1372
        %v1374 = vpop.f32.mrb[0].mxu0
        %1375 = vdwg.mxu0
        %1376 = vst.msk [vmem:[#allocation4] sm:$0xff] %vm1270, %v1370
        %1377 = vst.msk [vmem:[#allocation4 + $0x8] sm:$0xff] %vm1270, %v1373
        %v1379 = vlaneseq
        %v1380 = vshrl.u32 %v1379, 7
        %v1381 = vsub.s32 0, %v1380
        %v1382 = vrot.slane %v948, %v1381
        %v1388 = vunpack.c.l.b16 %v942
        %v1389 = vunpack.c.l.b16 %v943
        %v1390 = vunpack.c.l.b16 %v944
        %v1391 = vunpack.c.l.b16 %v945
        %v1392 = vpack.c.b16 %v1389, %v1388
        %v1393 = vpack.c.b16 %v1391, %v1390
        %1396 = vmatprep.subr.bf16.mxu0 0
        %1397 = vmatpush1.bf16.msra.mxu0 %v1392
        %1398 = vmatprep.subr.bf16.mxu0 0
        %1399 = vmatpush1.bf16.msra.mxu0 %v1393
        %1400 = vmatprep.subr.bf16.mxu0 0
        %1401 = vmatpush1.bf16.msra.mxu0 0
        %1402 = vmatprep.subr.bf16.mxu0 0
        %1403 = vmatpush1.bf16.msra.mxu0 0
        %1404 = vmatprep.subr.bf16.mxu0 0
        %1405 = vmatpush1.bf16.msra.mxu0 0
        %1406 = vmatprep.subr.bf16.mxu0 0
        %1407 = vmatpush1.bf16.msra.mxu0 0
        %1408 = vmatprep.subr.bf16.mxu0 0
        %1409 = vmatpush1.bf16.msra.mxu0 0
        %1410 = vmatprep.subr.bf16.mxu0 0
        %1411 = vmatpush1.bf16.msra.mxu0 0
        %1412 = vmatprep.subr.bf16.mxu0 0
        %1413 = vmatpush1.bf16.msra.mxu0 0
        %1414 = vmatprep.subr.bf16.mxu0 0
        %1415 = vmatpush1.bf16.msra.mxu0 0
        %1416 = vmatprep.subr.bf16.mxu0 0
        %1417 = vmatpush1.bf16.msra.mxu0 0
        %1418 = vmatprep.subr.bf16.mxu0 0
        %1419 = vmatpush1.bf16.msra.mxu0 0
        %1420 = vmatprep.subr.bf16.mxu0 0
        %1421 = vmatpush1.bf16.msra.mxu0 0
        %1422 = vmatprep.subr.bf16.mxu0 0
        %1423 = vmatpush1.bf16.msra.mxu0 0
        %1424 = vmatprep.subr.bf16.mxu0 0
        %1425 = vmatpush1.bf16.msra.mxu0 0
        %1426 = vmatprep.subr.bf16.mxu0 0
        %1427 = vmatpush1.bf16.msra.mxu0 0
        %1428 = vmatprep.mubr.bf16.mxu0 0
        %1429 = vmatmul.mubr.bf16.gmra.mrb[0].mxu0 %v1272
        %v1430 = vpop.f32.mrb[0].mxu0
        %v1431 = vadd.f32 %v1382, %v1430
        %v1432 = vpop.f32.mrb[0].mxu0
        %v1433 = vpop.f32.mrb[0].mxu0
        %v1434 = vadd.f32 %v1382, %v1433
        %v1435 = vpop.f32.mrb[0].mxu0
        %1436 = vdwg.mxu0
        %1437 = vst.msk [vmem:[#allocation5] sm:$0xff] %vm1270, %v1431
        %1438 = vst.msk [vmem:[#allocation5 + $0x8] sm:$0xff] %vm1270, %v1434
        %v1439 = vld [vmem:[#allocation3] sm:$0xff]
        %v1440 = vld [vmem:[#allocation4] sm:$0xff]
        %v1441 = vld [vmem:[#allocation4 + $0x8] sm:$0xff]
        %v1442 = vld [vmem:[#allocation5] sm:$0xff]
        %v1443 = vld [vmem:[#allocation5 + $0x8] sm:$0xff]
        %v1444 = vmul.f32 %v1439, %v1440
        %v1445 = vmul.f32 %v1439, %v1441
        %v1446 = vpack.c.bf16 %v1444, %v1444
        %v1447 = vpack.c.bf16 %v1445, %v1445
        %v1450 = vunpack.c.l.b16 %v1446
        %v1451 = vunpack.c.l.b16 %v1447
        %v1452 = vpack.c.b16 %v1451, %v1450
        %v1457 = vunpack.c.l.b16 %v929
        %v1458 = vunpack.c.l.b16 %v930
        %v1459 = vunpack.c.l.b16 %v931
        %v1460 = vunpack.c.l.b16 %v932
        %v1461 = vpack.c.b16 %v1458, %v1457
        %v1462 = vpack.c.b16 %v1460, %v1459
        %v1466 = vsel %vm1270, %v1452, 0
        %1468 = vmatprep.subr.bf16.mxu0 0
        %1469 = vmatpush1.bf16.msra.mxu0 %v1461
        %1470 = vmatprep.subr.bf16.mxu0 0
        %1471 = vmatpush1.bf16.msra.mxu0 %v1462
        %1472 = vmatprep.subr.bf16.mxu0 0
        %1473 = vmatpush1.bf16.msra.mxu0 0
        %1474 = vmatprep.subr.bf16.mxu0 0
        %1475 = vmatpush1.bf16.msra.mxu0 0
        %1476 = vmatprep.subr.bf16.mxu0 0
        %1477 = vmatpush1.bf16.msra.mxu0 0
        %1478 = vmatprep.subr.bf16.mxu0 0
        %1479 = vmatpush1.bf16.msra.mxu0 0
        %1480 = vmatprep.subr.bf16.mxu0 0
        %1481 = vmatpush1.bf16.msra.mxu0 0
        %1482 = vmatprep.subr.bf16.mxu0 0
        %1483 = vmatpush1.bf16.msra.mxu0 0
        %1484 = vmatprep.subr.bf16.mxu0 0
        %1485 = vmatpush1.bf16.msra.mxu0 0
        %1486 = vmatprep.subr.bf16.mxu0 0
        %1487 = vmatpush1.bf16.msra.mxu0 0
        %1488 = vmatprep.subr.bf16.mxu0 0
        %1489 = vmatpush1.bf16.msra.mxu0 0
        %1490 = vmatprep.subr.bf16.mxu0 0
        %1491 = vmatpush1.bf16.msra.mxu0 0
        %1492 = vmatprep.subr.bf16.mxu0 0
        %1493 = vmatpush1.bf16.msra.mxu0 0
        %1494 = vmatprep.subr.bf16.mxu0 0
        %1495 = vmatpush1.bf16.msra.mxu0 0
        %1496 = vmatprep.subr.bf16.mxu0 0
        %1497 = vmatpush1.bf16.msra.mxu0 0
        %1498 = vmatprep.subr.bf16.mxu0 0
        %1499 = vmatpush1.bf16.msra.mxu0 0
        %1500 = vmatprep.mubr.bf16.mxu0 0
        %1501 = vmatmul.mubr.bf16.gmra.mrb[0].mxu0 %v1466
        %v1502 = vpop.f32.mrb[0].mxu0
        %v1503 = vadd.f32 0.0, %v1502
        %v1504 = vpop.f32.mrb[0].mxu0
        %v1505 = vpop.f32.mrb[0].mxu0
        %v1506 = vadd.f32 0.0, %v1505
        %v1507 = vpop.f32.mrb[0].mxu0
        %1508 = vdwg.mxu0
        %vm1509 = vcmask 31744
        %v1510 = vsel %vm1509, %v1503, -inf
        %v1511 = vsel %vm1509, %v1506, -inf
        %v1512 = vmax.f32 %v1510, %v1511
        %v1513 = vsub.f32 %v1503, %v1512
        %v1514 = vsub.f32 %v1506, %v1512
        %v1515 = vmul.f32 %v1513, 1.442695
        %v1516 = vpow.pop %v1515
        %v1517 = vmul.f32 %v1514, 1.442695
        %v1518 = vpow.pop %v1517
        %v1519 = vsel %vm1509, %v1516, 0.0
        %v1520 = vsel %vm1509, %v1518, 0.0
        %v1521 = vadd.f32 %v1519, %v1520
        %v1522 = vrcp.pop %v1521
        %v1523 = vmul.f32 %v1516, %v1522
        %v1524 = vmul.f32 %v1518, %v1522
        %v1525 = vpack.c.bf16 %v1524, %v1523
        %v1527 = vsel %vm1509, %v1525, 0
        %vm1529 = vcmask 1041408
        %v1531 = vsel %vm1529, %v933, 0
        %1533 = vmatprep.subr.bf16.mxu0 0
        %1534 = vmatpush1.bf16.msra.mxu0 %v1531
        %1535 = vmatprep.subr.bf16.mxu0 0
        %1536 = vmatpush1.bf16.msra.mxu0 0
        %1537 = vmatprep.subr.bf16.mxu0 0
        %1538 = vmatpush1.bf16.msra.mxu0 0
        %1539 = vmatprep.subr.bf16.mxu0 0
        %1540 = vmatpush1.bf16.msra.mxu0 0
        %1541 = vmatprep.subr.bf16.mxu0 0
        %1542 = vmatpush1.bf16.msra.mxu0 0
        %1543 = vmatprep.subr.bf16.mxu0 0
        %1544 = vmatpush1.bf16.msra.mxu0 0
        %1545 = vmatprep.subr.bf16.mxu0 0
        %1546 = vmatpush1.bf16.msra.mxu0 0
        %1547 = vmatprep.subr.bf16.mxu0 0
        %1548 = vmatpush1.bf16.msra.mxu0 0
        %1549 = vmatprep.subr.bf16.mxu0 0
        %1550 = vmatpush1.bf16.msra.mxu0 0
        %1551 = vmatprep.subr.bf16.mxu0 0
        %1552 = vmatpush1.bf16.msra.mxu0 0
        %1553 = vmatprep.subr.bf16.mxu0 0
        %1554 = vmatpush1.bf16.msra.mxu0 0
        %1555 = vmatprep.subr.bf16.mxu0 0
        %1556 = vmatpush1.bf16.msra.mxu0 0
        %1557 = vmatprep.subr.bf16.mxu0 0
        %1558 = vmatpush1.bf16.msra.mxu0 0
        %1559 = vmatprep.subr.bf16.mxu0 0
        %1560 = vmatpush1.bf16.msra.mxu0 0
        %1561 = vmatprep.subr.bf16.mxu0 0
        %1562 = vmatpush1.bf16.msra.mxu0 0
        %1563 = vmatprep.subr.bf16.mxu0 0
        %1564 = vmatpush1.bf16.msra.mxu0 0
        %1565 = vmatprep.mubr.bf16.mxu0 0
        %1566 = vmatmul.mubr.bf16.gmra.mrb[0].mxu0 %v1527
        %v1567 = vpop.f32.mrb[0].mxu0
        %v1568 = vadd.f32 0.0, %v1567
        %v1569 = vpop.f32.mrb[0].mxu0
        %v1570 = vpop.f32.mrb[0].mxu0
        %v1571 = vadd.f32 0.0, %v1570
        %v1572 = vpop.f32.mrb[0].mxu0
        %1573 = vdwg.mxu0
        %v1574 = vmul.f32 %v1568, %v1442
        %v1575 = vmul.f32 %v1571, %v1443
        %v1576 = vsel %vm1270, %v1574, 0.0
        %v1577 = vsel %vm1270, %v1575, 0.0
        %v1578 = vadd.f32 %v1576, %v1577
        %v1579 = vpack.c.bf16 %v1578, %v1578
        %v1581 = vlaneseq
        %v1582 = vshrl.u32 %v1581, 7
        %v1583 = vsub.s32 0, %v1582
        %v1584 = vrot.slane %v953, %v1583
        %v1590 = vunpack.c.l.b16 %v949
        %v1591 = vunpack.c.l.b16 %v950
        %v1592 = vunpack.c.l.b16 %v951
        %v1593 = vunpack.c.l.b16 %v952
        %v1594 = vpack.c.b16 %v1591, %v1590
        %v1595 = vpack.c.b16 %v1593, %v1592
        %v1599 = vsel %vm1270, %v1579, 0
        %1601 = vmatprep.subr.bf16.mxu0 0
        %1602 = vmatpush1.bf16.msra.mxu0 %v1594
        %1603 = vmatprep.subr.bf16.mxu0 0
        %1604 = vmatpush1.bf16.msra.mxu0 %v1595
        %1605 = vmatprep.subr.bf16.mxu0 0
        %1606 = vmatpush1.bf16.msra.mxu0 0
        %1607 = vmatprep.subr.bf16.mxu0 0
        %1608 = vmatpush1.bf16.msra.mxu0 0
        %1609 = vmatprep.subr.bf16.mxu0 0
        %1610 = vmatpush1.bf16.msra.mxu0 0
        %1611 = vmatprep.subr.bf16.mxu0 0
        %1612 = vmatpush1.bf16.msra.mxu0 0
        %1613 = vmatprep.subr.bf16.mxu0 0
        %1614 = vmatpush1.bf16.msra.mxu0 0
        %1615 = vmatprep.subr.bf16.mxu0 0
        %1616 = vmatpush1.bf16.msra.mxu0 0
        %1617 = vmatprep.subr.bf16.mxu0 0
        %1618 = vmatpush1.bf16.msra.mxu0 0
        %1619 = vmatprep.subr.bf16.mxu0 0
        %1620 = vmatpush1.bf16.msra.mxu0 0
        %1621 = vmatprep.subr.bf16.mxu0 0
        %1622 = vmatpush1.bf16.msra.mxu0 0
        %1623 = vmatprep.subr.bf16.mxu0 0
        %1624 = vmatpush1.bf16.msra.mxu0 0
        %1625 = vmatprep.subr.bf16.mxu0 0
        %1626 = vmatpush1.bf16.msra.mxu0 0
        %1627 = vmatprep.subr.bf16.mxu0 0
        %1628 = vmatpush1.bf16.msra.mxu0 0
        %1629 = vmatprep.subr.bf16.mxu0 0
        %1630 = vmatpush1.bf16.msra.mxu0 0
        %1631 = vmatprep.subr.bf16.mxu0 0
        %1632 = vmatpush1.bf16.msra.mxu0 0
        %1633 = vmatprep.mubr.bf16.mxu0 0
        %1634 = vmatmul.mubr.bf16.gmra.mrb[0].mxu0 %v1599
        %v1635 = vpop.f32.mrb[0].mxu0
        %v1636 = vadd.f32 %v1584, %v1635
        %v1637 = vpop.f32.mrb[0].mxu0
        %v1638 = vpop.f32.mrb[0].mxu0
        %v1639 = vpop.f32.mrb[0].mxu0
        %1640 = vdwg.mxu0
        %v1641 = vld [vmem:[#allocation2] sm:$0xff]
        %v1642 = vadd.f32 %v1636, %v1641
        %v1643 = vsel %vm1270, %v1642, 0.0
        %1644 = vadd.xlane.f32.xlu0 %v1643
        %v1645 = vpop.xlane.xlu0 %1644
        %v1646 = vrcp.pop 32.0
        %v1647 = vmul.f32 %v1645, %v1646
        %v1648 = vsub.f32 %v1642, %v1647
        %v1649 = vmul.f32 %v1648, %v1648
        %v1650 = vsel %vm1270, %v1649, 0.0
        %1651 = vadd.xlane.f32.xlu0 %v1650
        %v1652 = vpop.xlane.xlu0 %1651
        %v1653 = vmul.f32 %v1652, %v1646
        %v1654 = vadd.f32 %v1653, 1e-05
        %v1655 = vrsqrt.pop %v1654
        %v1656 = vmul.f32 %v1648, %v1655
        %v1658 = vlaneseq
        %v1659 = vshrl.u32 %v1658, 7
        %v1660 = vsub.s32 0, %v1659
        %v1661 = vrot.slane %v954, %v1660
        %v1663 = vmul.f32 %v1656, %v1661
        %v1665 = vlaneseq
        %v1666 = vshrl.u32 %v1665, 7
        %v1667 = vsub.s32 0, %v1666
        %v1668 = vrot.slane %v955, %v1667
        %v1670 = vadd.f32 %v1663, %v1668
        %v1671 = vpack.c.bf16 %v1670, %v1670
        %v1674 = vlaneseq
        %v1675 = vshrl.u32 %v1674, 7
        %v1676 = vsub.s32 0, %v1675
        %v1677 = vrot.slane %v988, %v1676
        %v1678 = vlaneseq
        %v1679 = vshrl.u32 %v1678, 7
        %v1680 = vsub.s32 1, %v1679
        %v1681 = vrot.slane %v988, %v1680
        %v1682 = vlaneseq
        %v1683 = vshrl.u32 %v1682, 7
        %v1684 = vsub.s32 2, %v1683
        %v1685 = vrot.slane %v988, %v1684
        %v1686 = vlaneseq
        %v1687 = vshrl.u32 %v1686, 7
        %v1688 = vsub.s32 3, %v1687
        %v1689 = vrot.slane %v988, %v1688
        %v1690 = vlaneseq
        %v1691 = vshrl.u32 %v1690, 7
        %v1692 = vsub.s32 4, %v1691
        %v1693 = vrot.slane %v988, %v1692
        %v1694 = vlaneseq
        %v1695 = vshrl.u32 %v1694, 7
        %v1696 = vsub.s32 5, %v1695
        %v1697 = vrot.slane %v988, %v1696
        %v1698 = vlaneseq
        %v1699 = vshrl.u32 %v1698, 7
        %v1700 = vsub.s32 6, %v1699
        %v1701 = vrot.slane %v988, %v1700
        %v1702 = vlaneseq
        %v1703 = vshrl.u32 %v1702, 7
        %v1704 = vsub.s32 7, %v1703
        %v1705 = vrot.slane %v988, %v1704
        %v1706 = vlaneseq
        %v1707 = vshrl.u32 %v1706, 7
        %v1708 = vsub.s32 0, %v1707
        %v1709 = vrot.slane %v989, %v1708
        %v1710 = vlaneseq
        %v1711 = vshrl.u32 %v1710, 7
        %v1712 = vsub.s32 1, %v1711
        %v1713 = vrot.slane %v989, %v1712
        %v1714 = vlaneseq
        %v1715 = vshrl.u32 %v1714, 7
        %v1716 = vsub.s32 2, %v1715
        %v1717 = vrot.slane %v989, %v1716
        %v1718 = vlaneseq
        %v1719 = vshrl.u32 %v1718, 7
        %v1720 = vsub.s32 3, %v1719
        %v1721 = vrot.slane %v989, %v1720
        %v1722 = vlaneseq
        %v1723 = vshrl.u32 %v1722, 7
        %v1724 = vsub.s32 4, %v1723
        %v1725 = vrot.slane %v989, %v1724
        %v1726 = vlaneseq
        %v1727 = vshrl.u32 %v1726, 7
        %v1728 = vsub.s32 5, %v1727
        %v1729 = vrot.slane %v989, %v1728
        %v1730 = vlaneseq
        %v1731 = vshrl.u32 %v1730, 7
        %v1732 = vsub.s32 6, %v1731
        %v1733 = vrot.slane %v989, %v1732
        %v1734 = vlaneseq
        %v1735 = vshrl.u32 %v1734, 7
        %v1736 = vsub.s32 7, %v1735
        %v1737 = vrot.slane %v989, %v1736
        %v1786 = vunpack.c.l.b16 %v956
        %v1787 = vunpack.c.h.b16 %v956
        %v1788 = vunpack.c.l.b16 %v957
        %v1789 = vunpack.c.h.b16 %v957
        %v1790 = vunpack.c.l.b16 %v958
        %v1791 = vunpack.c.h.b16 %v958
        %v1792 = vunpack.c.l.b16 %v959
        %v1793 = vunpack.c.h.b16 %v959
        %v1794 = vunpack.c.l.b16 %v960
        %v1795 = vunpack.c.h.b16 %v960
        %v1796 = vunpack.c.l.b16 %v961
        %v1797 = vunpack.c.h.b16 %v961
        %v1798 = vunpack.c.l.b16 %v962
        %v1799 = vunpack.c.h.b16 %v962
        %v1800 = vunpack.c.l.b16 %v963
        %v1801 = vunpack.c.h.b16 %v963
        %v1802 = vunpack.c.l.b16 %v964
        %v1803 = vunpack.c.h.b16 %v964
        %v1804 = vunpack.c.l.b16 %v965
        %v1805 = vunpack.c.h.b16 %v965
        %v1806 = vunpack.c.l.b16 %v966
        %v1807 = vunpack.c.h.b16 %v966
        %v1808 = vunpack.c.l.b16 %v967
        %v1809 = vunpack.c.h.b16 %v967
        %v1810 = vunpack.c.l.b16 %v968
        %v1811 = vunpack.c.h.b16 %v968
        %v1812 = vunpack.c.l.b16 %v969
        %v1813 = vunpack.c.h.b16 %v969
        %v1814 = vunpack.c.l.b16 %v970
        %v1815 = vunpack.c.h.b16 %v970
        %v1816 = vunpack.c.l.b16 %v971
        %v1817 = vunpack.c.h.b16 %v971
        %v1818 = vunpack.c.l.b16 %v972
        %v1819 = vunpack.c.h.b16 %v972
        %v1820 = vunpack.c.l.b16 %v973
        %v1821 = vunpack.c.h.b16 %v973
        %v1822 = vunpack.c.l.b16 %v974
        %v1823 = vunpack.c.h.b16 %v974
        %v1824 = vunpack.c.l.b16 %v975
        %v1825 = vunpack.c.h.b16 %v975
        %v1826 = vunpack.c.l.b16 %v976
        %v1827 = vunpack.c.h.b16 %v976
        %v1828 = vunpack.c.l.b16 %v977
        %v1829 = vunpack.c.h.b16 %v977
        %v1830 = vunpack.c.l.b16 %v978
        %v1831 = vunpack.c.h.b16 %v978
        %v1832 = vunpack.c.l.b16 %v979
        %v1833 = vunpack.c.h.b16 %v979
        %v1834 = vunpack.c.l.b16 %v980
        %v1835 = vunpack.c.h.b16 %v980
        %v1836 = vunpack.c.l.b16 %v981
        %v1837 = vunpack.c.h.b16 %v981
        %v1838 = vunpack.c.l.b16 %v982
        %v1839 = vunpack.c.h.b16 %v982
        %v1840 = vunpack.c.l.b16 %v983
        %v1841 = vunpack.c.h.b16 %v983
        %v1842 = vunpack.c.l.b16 %v984
        %v1843 = vunpack.c.h.b16 %v984
        %v1844 = vunpack.c.l.b16 %v985
        %v1845 = vunpack.c.h.b16 %v985
        %v1846 = vunpack.c.l.b16 %v986
        %v1847 = vunpack.c.h.b16 %v986
        %v1848 = vunpack.c.l.b16 %v987
        %v1849 = vunpack.c.h.b16 %v987
        %v1850 = vpack.c.b16 %v1802, %v1786
        %v1851 = vpack.c.b16 %v1803, %v1787
        %v1852 = vpack.c.b16 %v1804, %v1788
        %v1853 = vpack.c.b16 %v1805, %v1789
        %v1854 = vpack.c.b16 %v1806, %v1790
        %v1855 = vpack.c.b16 %v1807, %v1791
        %v1856 = vpack.c.b16 %v1808, %v1792
        %v1857 = vpack.c.b16 %v1809, %v1793
        %v1858 = vpack.c.b16 %v1810, %v1794
        %v1859 = vpack.c.b16 %v1811, %v1795
        %v1860 = vpack.c.b16 %v1812, %v1796
        %v1861 = vpack.c.b16 %v1813, %v1797
        %v1862 = vpack.c.b16 %v1814, %v1798
        %v1863 = vpack.c.b16 %v1815, %v1799
        %v1864 = vpack.c.b16 %v1816, %v1800
        %v1865 = vpack.c.b16 %v1817, %v1801
        %v1866 = vpack.c.b16 %v1834, %v1818
        %v1867 = vpack.c.b16 %v1835, %v1819
        %v1868 = vpack.c.b16 %v1836, %v1820
        %v1869 = vpack.c.b16 %v1837, %v1821
        %v1870 = vpack.c.b16 %v1838, %v1822
        %v1871 = vpack.c.b16 %v1839, %v1823
        %v1872 = vpack.c.b16 %v1840, %v1824
        %v1873 = vpack.c.b16 %v1841, %v1825
        %v1874 = vpack.c.b16 %v1842, %v1826
        %v1875 = vpack.c.b16 %v1843, %v1827
        %v1876 = vpack.c.b16 %v1844, %v1828
        %v1877 = vpack.c.b16 %v1845, %v1829
        %v1878 = vpack.c.b16 %v1846, %v1830
        %v1879 = vpack.c.b16 %v1847, %v1831
        %v1880 = vpack.c.b16 %v1848, %v1832
        %v1881 = vpack.c.b16 %v1849, %v1833
        %v1915 = vsel %vm1270, %v1671, 0
        %1917 = vmatprep.subr.bf16.mxu0 %v1851
        %1918 = vmatpush1.bf16.msra.mxu0 %v1850
        %1919 = vmatprep.subr.bf16.mxu0 %v1867
        %1920 = vmatpush1.bf16.msra.mxu0 %v1866
        %1921 = vmatprep.subr.bf16.mxu0 0
        %1922 = vmatpush1.bf16.msra.mxu0 0
        %1923 = vmatprep.subr.bf16.mxu0 0
        %1924 = vmatpush1.bf16.msra.mxu0 0
        %1925 = vmatprep.subr.bf16.mxu0 0
        %1926 = vmatpush1.bf16.msra.mxu0 0
        %1927 = vmatprep.subr.bf16.mxu0 0
        %1928 = vmatpush1.bf16.msra.mxu0 0
        %1929 = vmatprep.subr.bf16.mxu0 0
        %1930 = vmatpush1.bf16.msra.mxu0 0
        %1931 = vmatprep.subr.bf16.mxu0 0
        %1932 = vmatpush1.bf16.msra.mxu0 0
        %1933 = vmatprep.subr.bf16.mxu0 0
        %1934 = vmatpush1.bf16.msra.mxu0 0
        %1935 = vmatprep.subr.bf16.mxu0 0
        %1936 = vmatpush1.bf16.msra.mxu0 0
        %1937 = vmatprep.subr.bf16.mxu0 0
        %1938 = vmatpush1.bf16.msra.mxu0 0
        %1939 = vmatprep.subr.bf16.mxu0 0
        %1940 = vmatpush1.bf16.msra.mxu0 0
        %1941 = vmatprep.subr.bf16.mxu0 0
        %1942 = vmatpush1.bf16.msra.mxu0 0
        %1943 = vmatprep.subr.bf16.mxu0 0
        %1944 = vmatpush1.bf16.msra.mxu0 0
        %1945 = vmatprep.subr.bf16.mxu0 0
        %1946 = vmatpush1.bf16.msra.mxu0 0
        %1947 = vmatprep.subr.bf16.mxu0 0
        %1948 = vmatpush1.bf16.msra.mxu0 0
        %1949 = vmatprep.mubr.bf16.mxu0 0
        %1950 = vmatmul.mubr.bf16.gmra.mrb[0].mxu0 %v1915
        %v1951 = vpop.f32.mrb[0].mxu0
        %v1952 = vadd.f32 %v1677, %v1951
        %v1953 = vpop.f32.mrb[0].mxu0
        %v1954 = vadd.f32 %v1681, %v1953
        %v1955 = vpop.f32.mrb[0].mxu0
        %v1956 = vpop.f32.mrb[0].mxu0
        %1957 = vdwg.mxu0
        %1958 = vmatprep.subr.bf16.mxu0 %v1853
        %1959 = vmatpush1.bf16.msra.mxu0 %v1852
        %1960 = vmatprep.subr.bf16.mxu0 %v1869
        %1961 = vmatpush1.bf16.msra.mxu0 %v1868
        %1962 = vmatprep.subr.bf16.mxu0 0
        %1963 = vmatpush1.bf16.msra.mxu0 0
        %1964 = vmatprep.subr.bf16.mxu0 0
        %1965 = vmatpush1.bf16.msra.mxu0 0
        %1966 = vmatprep.subr.bf16.mxu0 0
        %1967 = vmatpush1.bf16.msra.mxu0 0
        %1968 = vmatprep.subr.bf16.mxu0 0
        %1969 = vmatpush1.bf16.msra.mxu0 0
        %1970 = vmatprep.subr.bf16.mxu0 0
        %1971 = vmatpush1.bf16.msra.mxu0 0
        %1972 = vmatprep.subr.bf16.mxu0 0
        %1973 = vmatpush1.bf16.msra.mxu0 0
        %1974 = vmatprep.subr.bf16.mxu0 0
        %1975 = vmatpush1.bf16.msra.mxu0 0
        %1976 = vmatprep.subr.bf16.mxu0 0
        %1977 = vmatpush1.bf16.msra.mxu0 0
        %1978 = vmatprep.subr.bf16.mxu0 0
        %1979 = vmatpush1.bf16.msra.mxu0 0
        %1980 = vmatprep.subr.bf16.mxu0 0
        %1981 = vmatpush1.bf16.msra.mxu0 0
        %1982 = vmatprep.subr.bf16.mxu0 0
        %1983 = vmatpush1.bf16.msra.mxu0 0
        %1984 = vmatprep.subr.bf16.mxu0 0
        %1985 = vmatpush1.bf16.msra.mxu0 0
        %1986 = vmatprep.subr.bf16.mxu0 0
        %1987 = vmatpush1.bf16.msra.mxu0 0
        %1988 = vmatprep.subr.bf16.mxu0 0
        %1989 = vmatpush1.bf16.msra.mxu0 0
        %1990 = vmatprep.mubr.bf16.mxu0 0
        %1991 = vmatmul.mubr.bf16.gmra.mrb[0].mxu0 %v1915
        %v1992 = vpop.f32.mrb[0].mxu0
        %v1993 = vadd.f32 %v1685, %v1992
        %v1994 = vpop.f32.mrb[0].mxu0
        %v1995 = vadd.f32 %v1689, %v1994
        %v1996 = vpop.f32.mrb[0].mxu0
        %v1997 = vpop.f32.mrb[0].mxu0
        %1998 = vdwg.mxu0
        %1999 = vmatprep.subr.bf16.mxu0 %v1855
        %2000 = vmatpush1.bf16.msra.mxu0 %v1854
        %2001 = vmatprep.subr.bf16.mxu0 %v1871
        %2002 = vmatpush1.bf16.msra.mxu0 %v1870
        %2003 = vmatprep.subr.bf16.mxu0 0
        %2004 = vmatpush1.bf16.msra.mxu0 0
        %2005 = vmatprep.subr.bf16.mxu0 0
        %2006 = vmatpush1.bf16.msra.mxu0 0
        %2007 = vmatprep.subr.bf16.mxu0 0
        %2008 = vmatpush1.bf16.msra.mxu0 0
        %2009 = vmatprep.subr.bf16.mxu0 0
        %2010 = vmatpush1.bf16.msra.mxu0 0
        %2011 = vmatprep.subr.bf16.mxu0 0
        %2012 = vmatpush1.bf16.msra.mxu0 0
        %2013 = vmatprep.subr.bf16.mxu0 0
        %2014 = vmatpush1.bf16.msra.mxu0 0
        %2015 = vmatprep.subr.bf16.mxu0 0
        %2016 = vmatpush1.bf16.msra.mxu0 0
        %2017 = vmatprep.subr.bf16.mxu0 0
        %2018 = vmatpush1.bf16.msra.mxu0 0
        %2019 = vmatprep.subr.bf16.mxu0 0
        %2020 = vmatpush1.bf16.msra.mxu0 0
        %2021 = vmatprep.subr.bf16.mxu0 0
        %2022 = vmatpush1.bf16.msra.mxu0 0
        %2023 = vmatprep.subr.bf16.mxu0 0
        %2024 = vmatpush1.bf16.msra.mxu0 0
        %2025 = vmatprep.subr.bf16.mxu0 0
        %2026 = vmatpush1.bf16.msra.mxu0 0
        %2027 = vmatprep.subr.bf16.mxu0 0
        %2028 = vmatpush1.bf16.msra.mxu0 0
        %2029 = vmatprep.subr.bf16.mxu0 0
        %2030 = vmatpush1.bf16.msra.mxu0 0
        %2031 = vmatprep.mubr.bf16.mxu0 0
        %2032 = vmatmul.mubr.bf16.gmra.mrb[0].mxu0 %v1915
        %v2033 = vpop.f32.mrb[0].mxu0
        %v2034 = vadd.f32 %v1693, %v2033
        %v2035 = vpop.f32.mrb[0].mxu0
        %v2036 = vadd.f32 %v1697, %v2035
        %v2037 = vpop.f32.mrb[0].mxu0
        %v2038 = vpop.f32.mrb[0].mxu0
        %2039 = vdwg.mxu0
        %2040 = vmatprep.subr.bf16.mxu0 %v1857
        %2041 = vmatpush1.bf16.msra.mxu0 %v1856
        %2042 = vmatprep.subr.bf16.mxu0 %v1873
        %2043 = vmatpush1.bf16.msra.mxu0 %v1872
        %2044 = vmatprep.subr.bf16.mxu0 0
        %2045 = vmatpush1.bf16.msra.mxu0 0
        %2046 = vmatprep.subr.bf16.mxu0 0
        %2047 = vmatpush1.bf16.msra.mxu0 0
        %2048 = vmatprep.subr.bf16.mxu0 0
        %2049 = vmatpush1.bf16.msra.mxu0 0
        %2050 = vmatprep.subr.bf16.mxu0 0
        %2051 = vmatpush1.bf16.msra.mxu0 0
        %2052 = vmatprep.subr.bf16.mxu0 0
        %2053 = vmatpush1.bf16.msra.mxu0 0
        %2054 = vmatprep.subr.bf16.mxu0 0
        %2055 = vmatpush1.bf16.msra.mxu0 0
        %2056 = vmatprep.subr.bf16.mxu0 0
        %2057 = vmatpush1.bf16.msra.mxu0 0
        %2058 = vmatprep.subr.bf16.mxu0 0
        %2059 = vmatpush1.bf16.msra.mxu0 0
        %2060 = vmatprep.subr.bf16.mxu0 0
        %2061 = vmatpush1.bf16.msra.mxu0 0
        %2062 = vmatprep.subr.bf16.mxu0 0
        %2063 = vmatpush1.bf16.msra.mxu0 0
        %2064 = vmatprep.subr.bf16.mxu0 0
        %2065 = vmatpush1.bf16.msra.mxu0 0
        %2066 = vmatprep.subr.bf16.mxu0 0
        %2067 = vmatpush1.bf16.msra.mxu0 0
        %2068 = vmatprep.subr.bf16.mxu0 0
        %2069 = vmatpush1.bf16.msra.mxu0 0
        %2070 = vmatprep.subr.bf16.mxu0 0
        %2071 = vmatpush1.bf16.msra.mxu0 0
        %2072 = vmatprep.mubr.bf16.mxu0 0
        %2073 = vmatmul.mubr.bf16.gmra.mrb[0].mxu0 %v1915
        %v2074 = vpop.f32.mrb[0].mxu0
        %v2075 = vadd.f32 %v1701, %v2074
        %v2076 = vpop.f32.mrb[0].mxu0
        %v2077 = vadd.f32 %v1705, %v2076
        %v2078 = vpop.f32.mrb[0].mxu0
        %v2079 = vpop.f32.mrb[0].mxu0
        %2080 = vdwg.mxu0
        %2081 = vmatprep.subr.bf16.mxu0 %v1859
        %2082 = vmatpush1.bf16.msra.mxu0 %v1858
        %2083 = vmatprep.subr.bf16.mxu0 %v1875
        %2084 = vmatpush1.bf16.msra.mxu0 %v1874
        %2085 = vmatprep.subr.bf16.mxu0 0
        %2086 = vmatpush1.bf16.msra.mxu0 0
        %2087 = vmatprep.subr.bf16.mxu0 0
        %2088 = vmatpush1.bf16.msra.mxu0 0
        %2089 = vmatprep.subr.bf16.mxu0 0
        %2090 = vmatpush1.bf16.msra.mxu0 0
        %2091 = vmatprep.subr.bf16.mxu0 0
        %2092 = vmatpush1.bf16.msra.mxu0 0
        %2093 = vmatprep.subr.bf16.mxu0 0
        %2094 = vmatpush1.bf16.msra.mxu0 0
        %2095 = vmatprep.subr.bf16.mxu0 0
        %2096 = vmatpush1.bf16.msra.mxu0 0
        %2097 = vmatprep.subr.bf16.mxu0 0
        %2098 = vmatpush1.bf16.msra.mxu0 0
        %2099 = vmatprep.subr.bf16.mxu0 0
        %2100 = vmatpush1.bf16.msra.mxu0 0
        %2101 = vmatprep.subr.bf16.mxu0 0
        %2102 = vmatpush1.bf16.msra.mxu0 0
        %2103 = vmatprep.subr.bf16.mxu0 0
        %2104 = vmatpush1.bf16.msra.mxu0 0
        %2105 = vmatprep.subr.bf16.mxu0 0
        %2106 = vmatpush1.bf16.msra.mxu0 0
        %2107 = vmatprep.subr.bf16.mxu0 0
        %2108 = vmatpush1.bf16.msra.mxu0 0
        %2109 = vmatprep.subr.bf16.mxu0 0
        %2110 = vmatpush1.bf16.msra.mxu0 0
        %2111 = vmatprep.subr.bf16.mxu0 0
        %2112 = vmatpush1.bf16.msra.mxu0 0
        %2113 = vmatprep.mubr.bf16.mxu0 0
        %2114 = vmatmul.mubr.bf16.gmra.mrb[0].mxu0 %v1915
        %v2115 = vpop.f32.mrb[0].mxu0
        %v2116 = vadd.f32 %v1709, %v2115
        %v2117 = vpop.f32.mrb[0].mxu0
        %v2118 = vadd.f32 %v1713, %v2117
        %v2119 = vpop.f32.mrb[0].mxu0
        %v2120 = vpop.f32.mrb[0].mxu0
        %2121 = vdwg.mxu0
        %2122 = vmatprep.subr.bf16.mxu0 %v1861
        %2123 = vmatpush1.bf16.msra.mxu0 %v1860
        %2124 = vmatprep.subr.bf16.mxu0 %v1877
        %2125 = vmatpush1.bf16.msra.mxu0 %v1876
        %2126 = vmatprep.subr.bf16.mxu0 0
        %2127 = vmatpush1.bf16.msra.mxu0 0
        %2128 = vmatprep.subr.bf16.mxu0 0
        %2129 = vmatpush1.bf16.msra.mxu0 0
        %2130 = vmatprep.subr.bf16.mxu0 0
        %2131 = vmatpush1.bf16.msra.mxu0 0
        %2132 = vmatprep.subr.bf16.mxu0 0
        %2133 = vmatpush1.bf16.msra.mxu0 0
        %2134 = vmatprep.subr.bf16.mxu0 0
        %2135 = vmatpush1.bf16.msra.mxu0 0
        %2136 = vmatprep.subr.bf16.mxu0 0
        %2137 = vmatpush1.bf16.msra.mxu0 0
        %2138 = vmatprep.subr.bf16.mxu0 0
        %2139 = vmatpush1.bf16.msra.mxu0 0
        %2140 = vmatprep.subr.bf16.mxu0 0
        %2141 = vmatpush1.bf16.msra.mxu0 0
        %2142 = vmatprep.subr.bf16.mxu0 0
        %2143 = vmatpush1.bf16.msra.mxu0 0
        %2144 = vmatprep.subr.bf16.mxu0 0
        %2145 = vmatpush1.bf16.msra.mxu0 0
        %2146 = vmatprep.subr.bf16.mxu0 0
        %2147 = vmatpush1.bf16.msra.mxu0 0
        %2148 = vmatprep.subr.bf16.mxu0 0
        %2149 = vmatpush1.bf16.msra.mxu0 0
        %2150 = vmatprep.subr.bf16.mxu0 0
        %2151 = vmatpush1.bf16.msra.mxu0 0
        %2152 = vmatprep.subr.bf16.mxu0 0
        %2153 = vmatpush1.bf16.msra.mxu0 0
        %2154 = vmatprep.mubr.bf16.mxu0 0
        %2155 = vmatmul.mubr.bf16.gmra.mrb[0].mxu0 %v1915
        %v2156 = vpop.f32.mrb[0].mxu0
        %v2157 = vadd.f32 %v1717, %v2156
        %v2158 = vpop.f32.mrb[0].mxu0
        %v2159 = vadd.f32 %v1721, %v2158
        %v2160 = vpop.f32.mrb[0].mxu0
        %v2161 = vpop.f32.mrb[0].mxu0
        %2162 = vdwg.mxu0
        %2163 = vmatprep.subr.bf16.mxu0 %v1863
        %2164 = vmatpush1.bf16.msra.mxu0 %v1862
        %2165 = vmatprep.subr.bf16.mxu0 %v1879
        %2166 = vmatpush1.bf16.msra.mxu0 %v1878
        %2167 = vmatprep.subr.bf16.mxu0 0
        %2168 = vmatpush1.bf16.msra.mxu0 0
        %2169 = vmatprep.subr.bf16.mxu0 0
        %2170 = vmatpush1.bf16.msra.mxu0 0
        %2171 = vmatprep.subr.bf16.mxu0 0
        %2172 = vmatpush1.bf16.msra.mxu0 0
        %2173 = vmatprep.subr.bf16.mxu0 0
        %2174 = vmatpush1.bf16.msra.mxu0 0
        %2175 = vmatprep.subr.bf16.mxu0 0
        %2176 = vmatpush1.bf16.msra.mxu0 0
        %2177 = vmatprep.subr.bf16.mxu0 0
        %2178 = vmatpush1.bf16.msra.mxu0 0
        %2179 = vmatprep.subr.bf16.mxu0 0
        %2180 = vmatpush1.bf16.msra.mxu0 0
        %2181 = vmatprep.subr.bf16.mxu0 0
        %2182 = vmatpush1.bf16.msra.mxu0 0
        %2183 = vmatprep.subr.bf16.mxu0 0
        %2184 = vmatpush1.bf16.msra.mxu0 0
        %2185 = vmatprep.subr.bf16.mxu0 0
        %2186 = vmatpush1.bf16.msra.mxu0 0
        %2187 = vmatprep.subr.bf16.mxu0 0
        %2188 = vmatpush1.bf16.msra.mxu0 0
        %2189 = vmatprep.subr.bf16.mxu0 0
        %2190 = vmatpush1.bf16.msra.mxu0 0
        %2191 = vmatprep.subr.bf16.mxu0 0
        %2192 = vmatpush1.bf16.msra.mxu0 0
        %2193 = vmatprep.subr.bf16.mxu0 0
        %2194 = vmatpush1.bf16.msra.mxu0 0
        %2195 = vmatprep.mubr.bf16.mxu0 0
        %2196 = vmatmul.mubr.bf16.gmra.mrb[0].mxu0 %v1915
        %v2197 = vpop.f32.mrb[0].mxu0
        %v2198 = vadd.f32 %v1725, %v2197
        %v2199 = vpop.f32.mrb[0].mxu0
        %v2200 = vadd.f32 %v1729, %v2199
        %v2201 = vpop.f32.mrb[0].mxu0
        %v2202 = vpop.f32.mrb[0].mxu0
        %2203 = vdwg.mxu0
        %2204 = vmatprep.subr.bf16.mxu0 %v1865
        %2205 = vmatpush1.bf16.msra.mxu0 %v1864
        %2206 = vmatprep.subr.bf16.mxu0 %v1881
        %2207 = vmatpush1.bf16.msra.mxu0 %v1880
        %2208 = vmatprep.subr.bf16.mxu0 0
        %2209 = vmatpush1.bf16.msra.mxu0 0
        %2210 = vmatprep.subr.bf16.mxu0 0
        %2211 = vmatpush1.bf16.msra.mxu0 0
        %2212 = vmatprep.subr.bf16.mxu0 0
        %2213 = vmatpush1.bf16.msra.mxu0 0
        %2214 = vmatprep.subr.bf16.mxu0 0
        %2215 = vmatpush1.bf16.msra.mxu0 0
        %2216 = vmatprep.subr.bf16.mxu0 0
        %2217 = vmatpush1.bf16.msra.mxu0 0
        %2218 = vmatprep.subr.bf16.mxu0 0
        %2219 = vmatpush1.bf16.msra.mxu0 0
        %2220 = vmatprep.subr.bf16.mxu0 0
        %2221 = vmatpush1.bf16.msra.mxu0 0
        %2222 = vmatprep.subr.bf16.mxu0 0
        %2223 = vmatpush1.bf16.msra.mxu0 0
        %2224 = vmatprep.subr.bf16.mxu0 0
        %2225 = vmatpush1.bf16.msra.mxu0 0
        %2226 = vmatprep.subr.bf16.mxu0 0
        %2227 = vmatpush1.bf16.msra.mxu0 0
        %2228 = vmatprep.subr.bf16.mxu0 0
        %2229 = vmatpush1.bf16.msra.mxu0 0
        %2230 = vmatprep.subr.bf16.mxu0 0
        %2231 = vmatpush1.bf16.msra.mxu0 0
        %2232 = vmatprep.subr.bf16.mxu0 0
        %2233 = vmatpush1.bf16.msra.mxu0 0
        %2234 = vmatprep.subr.bf16.mxu0 0
        %2235 = vmatpush1.bf16.msra.mxu0 0
        %2236 = vmatprep.mubr.bf16.mxu0 0
        %2237 = vmatmul.mubr.bf16.gmra.mrb[0].mxu0 %v1915
        %v2238 = vpop.f32.mrb[0].mxu0
        %v2239 = vadd.f32 %v1733, %v2238
        %v2240 = vpop.f32.mrb[0].mxu0
        %v2241 = vadd.f32 %v1737, %v2240
        %v2242 = vpop.f32.mrb[0].mxu0
        %v2243 = vpop.f32.mrb[0].mxu0
        %2244 = vdwg.mxu0
        %v2245 = vmax.f32 %v1952, 0.0
        %v2246 = vmax.f32 %v1954, 0.0
        %v2247 = vmax.f32 %v1993, 0.0
        %v2248 = vmax.f32 %v1995, 0.0
        %v2249 = vmax.f32 %v2034, 0.0
        %v2250 = vmax.f32 %v2036, 0.0
        %v2251 = vmax.f32 %v2075, 0.0
        %v2252 = vmax.f32 %v2077, 0.0
        %v2253 = vmax.f32 %v2116, 0.0
        %v2254 = vmax.f32 %v2118, 0.0
        %v2255 = vmax.f32 %v2157, 0.0
        %v2256 = vmax.f32 %v2159, 0.0
        %v2257 = vmax.f32 %v2198, 0.0
        %v2258 = vmax.f32 %v2200, 0.0
        %v2259 = vmax.f32 %v2239, 0.0
        %v2260 = vmax.f32 %v2241, 0.0
        %v2261 = vpack.c.bf16 %v2245, %v2245
        %v2262 = vpack.c.bf16 %v2246, %v2246
        %v2263 = vpack.c.bf16 %v2247, %v2247
        %v2264 = vpack.c.bf16 %v2248, %v2248
        %v2265 = vpack.c.bf16 %v2249, %v2249
        %v2266 = vpack.c.bf16 %v2250, %v2250
        %v2267 = vpack.c.bf16 %v2251, %v2251
        %v2268 = vpack.c.bf16 %v2252, %v2252
        %v2269 = vpack.c.bf16 %v2253, %v2253
        %v2270 = vpack.c.bf16 %v2254, %v2254
        %v2271 = vpack.c.bf16 %v2255, %v2255
        %v2272 = vpack.c.bf16 %v2256, %v2256
        %v2273 = vpack.c.bf16 %v2257, %v2257
        %v2274 = vpack.c.bf16 %v2258, %v2258
        %v2275 = vpack.c.bf16 %v2259, %v2259
        %v2276 = vpack.c.bf16 %v2260, %v2260
        %v2278 = vlaneseq
        %v2279 = vshrl.u32 %v2278, 7
        %v2280 = vsub.s32 0, %v2279
        %v2281 = vrot.slane %v1246, %v2280
        %v2539 = vunpack.c.l.b16 %v990
        %v2540 = vunpack.c.l.b16 %v991
        %v2541 = vunpack.c.l.b16 %v992
        %v2542 = vunpack.c.l.b16 %v993
        %v2543 = vunpack.c.l.b16 %v994
        %v2544 = vunpack.c.l.b16 %v995
        %v2545 = vunpack.c.l.b16 %v996
        %v2546 = vunpack.c.l.b16 %v997
        %v2547 = vunpack.c.l.b16 %v998
        %v2548 = vunpack.c.l.b16 %v999
        %v2549 = vunpack.c.l.b16 %v1000
        %v2550 = vunpack.c.l.b16 %v1001
        %v2551 = vunpack.c.l.b16 %v1002
        %v2552 = vunpack.c.l.b16 %v1003
        %v2553 = vunpack.c.l.b16 %v1004
        %v2554 = vunpack.c.l.b16 %v1005
        %v2555 = vunpack.c.l.b16 %v1006
        %v2556 = vunpack.c.l.b16 %v1007
        %v2557 = vunpack.c.l.b16 %v1008
        %v2558 = vunpack.c.l.b16 %v1009
        %v2559 = vunpack.c.l.b16 %v1010
        %v2560 = vunpack.c.l.b16 %v1011
        %v2561 = vunpack.c.l.b16 %v1012
        %v2562 = vunpack.c.l.b16 %v1013
        %v2563 = vunpack.c.l.b16 %v1014
        %v2564 = vunpack.c.l.b16 %v1015
        %v2565 = vunpack.c.l.b16 %v1016
        %v2566 = vunpack.c.l.b16 %v1017
        %v2567 = vunpack.c.l.b16 %v1018
        %v2568 = vunpack.c.l.b16 %v1019
        %v2569 = vunpack.c.l.b16 %v1020
        %v2570 = vunpack.c.l.b16 %v1021
        %v2571 = vunpack.c.l.b16 %v1022
        %v2572 = vunpack.c.l.b16 %v1023
        %v2573 = vunpack.c.l.b16 %v1024
        %v2574 = vunpack.c.l.b16 %v1025
        %v2575 = vunpack.c.l.b16 %v1026
        %v2576 = vunpack.c.l.b16 %v1027
        %v2577 = vunpack.c.l.b16 %v1028
        %v2578 = vunpack.c.l.b16 %v1029
        %v2579 = vunpack.c.l.b16 %v1030
        %v2580 = vunpack.c.l.b16 %v1031
        %v2581 = vunpack.c.l.b16 %v1032
        %v2582 = vunpack.c.l.b16 %v1033
        %v2583 = vunpack.c.l.b16 %v1034
        %v2584 = vunpack.c.l.b16 %v1035
        %v2585 = vunpack.c.l.b16 %v1036
        %v2586 = vunpack.c.l.b16 %v1037
        %v2587 = vunpack.c.l.b16 %v1038
        %v2588 = vunpack.c.l.b16 %v1039
        %v2589 = vunpack.c.l.b16 %v1040
        %v2590 = vunpack.c.l.b16 %v1041
        %v2591 = vunpack.c.l.b16 %v1042
        %v2592 = vunpack.c.l.b16 %v1043
        %v2593 = vunpack.c.l.b16 %v1044
        %v2594 = vunpack.c.l.b16 %v1045
        %v2595 = vunpack.c.l.b16 %v1046
        %v2596 = vunpack.c.l.b16 %v1047
        %v2597 = vunpack.c.l.b16 %v1048
        %v2598 = vunpack.c.l.b16 %v1049
        %v2599 = vunpack.c.l.b16 %v1050
        %v2600 = vunpack.c.l.b16 %v1051
        %v2601 = vunpack.c.l.b16 %v1052
        %v2602 = vunpack.c.l.b16 %v1053
        %v2603 = vunpack.c.l.b16 %v1054
        %v2604 = vunpack.c.l.b16 %v1055
        %v2605 = vunpack.c.l.b16 %v1056
        %v2606 = vunpack.c.l.b16 %v1057
        %v2607 = vunpack.c.l.b16 %v1058
        %v2608 = vunpack.c.l.b16 %v1059
        %v2609 = vunpack.c.l.b16 %v1060
        %v2610 = vunpack.c.l.b16 %v1061
        %v2611 = vunpack.c.l.b16 %v1062
        %v2612 = vunpack.c.l.b16 %v1063
        %v2613 = vunpack.c.l.b16 %v1064
        %v2614 = vunpack.c.l.b16 %v1065
        %v2615 = vunpack.c.l.b16 %v1066
        %v2616 = vunpack.c.l.b16 %v1067
        %v2617 = vunpack.c.l.b16 %v1068
        %v2618 = vunpack.c.l.b16 %v1069
        %v2619 = vunpack.c.l.b16 %v1070
        %v2620 = vunpack.c.l.b16 %v1071
        %v2621 = vunpack.c.l.b16 %v1072
        %v2622 = vunpack.c.l.b16 %v1073
        %v2623 = vunpack.c.l.b16 %v1074
        %v2624 = vunpack.c.l.b16 %v1075
        %v2625 = vunpack.c.l.b16 %v1076
        %v2626 = vunpack.c.l.b16 %v1077
        %v2627 = vunpack.c.l.b16 %v1078
        %v2628 = vunpack.c.l.b16 %v1079
        %v2629 = vunpack.c.l.b16 %v1080
        %v2630 = vunpack.c.l.b16 %v1081
        %v2631 = vunpack.c.l.b16 %v1082
        %v2632 = vunpack.c.l.b16 %v1083
        %v2633 = vunpack.c.l.b16 %v1084
        %v2634 = vunpack.c.l.b16 %v1085
        %v2635 = vunpack.c.l.b16 %v1086
        %v2636 = vunpack.c.l.b16 %v1087
        %v2637 = vunpack.c.l.b16 %v1088
        %v2638 = vunpack.c.l.b16 %v1089
        %v2639 = vunpack.c.l.b16 %v1090
        %v2640 = vunpack.c.l.b16 %v1091
        %v2641 = vunpack.c.l.b16 %v1092
        %v2642 = vunpack.c.l.b16 %v1093
        %v2643 = vunpack.c.l.b16 %v1094
        %v2644 = vunpack.c.l.b16 %v1095
        %v2645 = vunpack.c.l.b16 %v1096
        %v2646 = vunpack.c.l.b16 %v1097
        %v2647 = vunpack.c.l.b16 %v1098
        %v2648 = vunpack.c.l.b16 %v1099
        %v2649 = vunpack.c.l.b16 %v1100
        %v2650 = vunpack.c.l.b16 %v1101
        %v2651 = vunpack.c.l.b16 %v1102
        %v2652 = vunpack.c.l.b16 %v1103
        %v2653 = vunpack.c.l.b16 %v1104
        %v2654 = vunpack.c.l.b16 %v1105
        %v2655 = vunpack.c.l.b16 %v1106
        %v2656 = vunpack.c.l.b16 %v1107
        %v2657 = vunpack.c.l.b16 %v1108
        %v2658 = vunpack.c.l.b16 %v1109
        %v2659 = vunpack.c.l.b16 %v1110
        %v2660 = vunpack.c.l.b16 %v1111
        %v2661 = vunpack.c.l.b16 %v1112
        %v2662 = vunpack.c.l.b16 %v1113
        %v2663 = vunpack.c.l.b16 %v1114
        %v2664 = vunpack.c.l.b16 %v1115
        %v2665 = vunpack.c.l.b16 %v1116
        %v2666 = vunpack.c.l.b16 %v1117
        %v2667 = vunpack.c.l.b16 %v1118
        %v2668 = vunpack.c.l.b16 %v1119
        %v2669 = vunpack.c.l.b16 %v1120
        %v2670 = vunpack.c.l.b16 %v1121
        %v2671 = vunpack.c.l.b16 %v1122
        %v2672 = vunpack.c.l.b16 %v1123
        %v2673 = vunpack.c.l.b16 %v1124
        %v2674 = vunpack.c.l.b16 %v1125
        %v2675 = vunpack.c.l.b16 %v1126
        %v2676 = vunpack.c.l.b16 %v1127
        %v2677 = vunpack.c.l.b16 %v1128
        %v2678 = vunpack.c.l.b16 %v1129
        %v2679 = vunpack.c.l.b16 %v1130
        %v2680 = vunpack.c.l.b16 %v1131
        %v2681 = vunpack.c.l.b16 %v1132
        %v2682 = vunpack.c.l.b16 %v1133
        %v2683 = vunpack.c.l.b16 %v1134
        %v2684 = vunpack.c.l.b16 %v1135
        %v2685 = vunpack.c.l.b16 %v1136
        %v2686 = vunpack.c.l.b16 %v1137
        %v2687 = vunpack.c.l.b16 %v1138
        %v2688 = vunpack.c.l.b16 %v1139
        %v2689 = vunpack.c.l.b16 %v1140
        %v2690 = vunpack.c.l.b16 %v1141
        %v2691 = vunpack.c.l.b16 %v1142
        %v2692 = vunpack.c.l.b16 %v1143
        %v2693 = vunpack.c.l.b16 %v1144
        %v2694 = vunpack.c.l.b16 %v1145
        %v2695 = vunpack.c.l.b16 %v1146
        %v2696 = vunpack.c.l.b16 %v1147
        %v2697 = vunpack.c.l.b16 %v1148
        %v2698 = vunpack.c.l.b16 %v1149
        %v2699 = vunpack.c.l.b16 %v1150
        %v2700 = vunpack.c.l.b16 %v1151
        %v2701 = vunpack.c.l.b16 %v1152
        %v2702 = vunpack.c.l.b16 %v1153
        %v2703 = vunpack.c.l.b16 %v1154
        %v2704 = vunpack.c.l.b16 %v1155
        %v2705 = vunpack.c.l.b16 %v1156
        %v2706 = vunpack.c.l.b16 %v1157
        %v2707 = vunpack.c.l.b16 %v1158
        %v2708 = vunpack.c.l.b16 %v1159
        %v2709 = vunpack.c.l.b16 %v1160
        %v2710 = vunpack.c.l.b16 %v1161
        %v2711 = vunpack.c.l.b16 %v1162
        %v2712 = vunpack.c.l.b16 %v1163
        %v2713 = vunpack.c.l.b16 %v1164
        %v2714 = vunpack.c.l.b16 %v1165
        %v2715 = vunpack.c.l.b16 %v1166
        %v2716 = vunpack.c.l.b16 %v1167
        %v2717 = vunpack.c.l.b16 %v1168
        %v2718 = vunpack.c.l.b16 %v1169
        %v2719 = vunpack.c.l.b16 %v1170
        %v2720 = vunpack.c.l.b16 %v1171
        %v2721 = vunpack.c.l.b16 %v1172
        %v2722 = vunpack.c.l.b16 %v1173
        %v2723 = vunpack.c.l.b16 %v1174
        %v2724 = vunpack.c.l.b16 %v1175
        %v2725 = vunpack.c.l.b16 %v1176
        %v2726 = vunpack.c.l.b16 %v1177
        %v2727 = vunpack.c.l.b16 %v1178
        %v2728 = vunpack.c.l.b16 %v1179
        %v2729 = vunpack.c.l.b16 %v1180
        %v2730 = vunpack.c.l.b16 %v1181
        %v2731 = vunpack.c.l.b16 %v1182
        %v2732 = vunpack.c.l.b16 %v1183
        %v2733 = vunpack.c.l.b16 %v1184
        %v2734 = vunpack.c.l.b16 %v1185
        %v2735 = vunpack.c.l.b16 %v1186
        %v2736 = vunpack.c.l.b16 %v1187
        %v2737 = vunpack.c.l.b16 %v1188
        %v2738 = vunpack.c.l.b16 %v1189
        %v2739 = vunpack.c.l.b16 %v1190
        %v2740 = vunpack.c.l.b16 %v1191
        %v2741 = vunpack.c.l.b16 %v1192
        %v2742 = vunpack.c.l.b16 %v1193
        %v2743 = vunpack.c.l.b16 %v1194
        %v2744 = vunpack.c.l.b16 %v1195
        %v2745 = vunpack.c.l.b16 %v1196
        %v2746 = vunpack.c.l.b16 %v1197
        %v2747 = vunpack.c.l.b16 %v1198
        %v2748 = vunpack.c.l.b16 %v1199
        %v2749 = vunpack.c.l.b16 %v1200
        %v2750 = vunpack.c.l.b16 %v1201
        %v2751 = vunpack.c.l.b16 %v1202
        %v2752 = vunpack.c.l.b16 %v1203
        %v2753 = vunpack.c.l.b16 %v1204
        %v2754 = vunpack.c.l.b16 %v1205
        %v2755 = vunpack.c.l.b16 %v1206
        %v2756 = vunpack.c.l.b16 %v1207
        %v2757 = vunpack.c.l.b16 %v1208
        %v2758 = vunpack.c.l.b16 %v1209
        %v2759 = vunpack.c.l.b16 %v1210
        %v2760 = vunpack.c.l.b16 %v1211
        %v2761 = vunpack.c.l.b16 %v1212
        %v2762 = vunpack.c.l.b16 %v1213
        %v2763 = vunpack.c.l.b16 %v1214
        %v2764 = vunpack.c.l.b16 %v1215
        %v2765 = vunpack.c.l.b16 %v1216
        %v2766 = vunpack.c.l.b16 %v1217
        %v2767 = vunpack.c.l.b16 %v1218
        %v2768 = vunpack.c.l.b16 %v1219
        %v2769 = vunpack.c.l.b16 %v1220
        %v2770 = vunpack.c.l.b16 %v1221
        %v2771 = vunpack.c.l.b16 %v1222
        %v2772 = vunpack.c.l.b16 %v1223
        %v2773 = vunpack.c.l.b16 %v1224
        %v2774 = vunpack.c.l.b16 %v1225
        %v2775 = vunpack.c.l.b16 %v1226
        %v2776 = vunpack.c.l.b16 %v1227
        %v2777 = vunpack.c.l.b16 %v1228
        %v2778 = vunpack.c.l.b16 %v1229
        %v2779 = vunpack.c.l.b16 %v1230
        %v2780 = vunpack.c.l.b16 %v1231
        %v2781 = vunpack.c.l.b16 %v1232
        %v2782 = vunpack.c.l.b16 %v1233
        %v2783 = vunpack.c.l.b16 %v1234
        %v2784 = vunpack.c.l.b16 %v1235
        %v2785 = vunpack.c.l.b16 %v1236
        %v2786 = vunpack.c.l.b16 %v1237
        %v2787 = vunpack.c.l.b16 %v1238
        %v2788 = vunpack.c.l.b16 %v1239
        %v2789 = vunpack.c.l.b16 %v1240
        %v2790 = vunpack.c.l.b16 %v1241
        %v2791 = vunpack.c.l.b16 %v1242
        %v2792 = vunpack.c.l.b16 %v1243
        %v2793 = vunpack.c.l.b16 %v1244
        %v2794 = vunpack.c.l.b16 %v1245
        %v2795 = vpack.c.b16 %v2540, %v2539
        %v2796 = vpack.c.b16 %v2542, %v2541
        %v2797 = vpack.c.b16 %v2544, %v2543
        %v2798 = vpack.c.b16 %v2546, %v2545
        %v2799 = vpack.c.b16 %v2548, %v2547
        %v2800 = vpack.c.b16 %v2550, %v2549
        %v2801 = vpack.c.b16 %v2552, %v2551
        %v2802 = vpack.c.b16 %v2554, %v2553
        %v2803 = vpack.c.b16 %v2556, %v2555
        %v2804 = vpack.c.b16 %v2558, %v2557
        %v2805 = vpack.c.b16 %v2560, %v2559
        %v2806 = vpack.c.b16 %v2562, %v2561
        %v2807 = vpack.c.b16 %v2564, %v2563
        %v2808 = vpack.c.b16 %v2566, %v2565
        %v2809 = vpack.c.b16 %v2568, %v2567
        %v2810 = vpack.c.b16 %v2570, %v2569
        %v2811 = vpack.c.b16 %v2572, %v2571
        %v2812 = vpack.c.b16 %v2574, %v2573
        %v2813 = vpack.c.b16 %v2576, %v2575
        %v2814 = vpack.c.b16 %v2578, %v2577
        %v2815 = vpack.c.b16 %v2580, %v2579
        %v2816 = vpack.c.b16 %v2582, %v2581
        %v2817 = vpack.c.b16 %v2584, %v2583
        %v2818 = vpack.c.b16 %v2586, %v2585
        %v2819 = vpack.c.b16 %v2588, %v2587
        %v2820 = vpack.c.b16 %v2590, %v2589
        %v2821 = vpack.c.b16 %v2592, %v2591
        %v2822 = vpack.c.b16 %v2594, %v2593
        %v2823 = vpack.c.b16 %v2596, %v2595
        %v2824 = vpack.c.b16 %v2598, %v2597
        %v2825 = vpack.c.b16 %v2600, %v2599
        %v2826 = vpack.c.b16 %v2602, %v2601
        %v2827 = vpack.c.b16 %v2604, %v2603
        %v2828 = vpack.c.b16 %v2606, %v2605
        %v2829 = vpack.c.b16 %v2608, %v2607
        %v2830 = vpack.c.b16 %v2610, %v2609
        %v2831 = vpack.c.b16 %v2612, %v2611
        %v2832 = vpack.c.b16 %v2614, %v2613
        %v2833 = vpack.c.b16 %v2616, %v2615
        %v2834 = vpack.c.b16 %v2618, %v2617
        %v2835 = vpack.c.b16 %v2620, %v2619
        %v2836 = vpack.c.b16 %v2622, %v2621
        %v2837 = vpack.c.b16 %v2624, %v2623
        %v2838 = vpack.c.b16 %v2626, %v2625
        %v2839 = vpack.c.b16 %v2628, %v2627
        %v2840 = vpack.c.b16 %v2630, %v2629
        %v2841 = vpack.c.b16 %v2632, %v2631
        %v2842 = vpack.c.b16 %v2634, %v2633
        %v2843 = vpack.c.b16 %v2636, %v2635
        %v2844 = vpack.c.b16 %v2638, %v2637
        %v2845 = vpack.c.b16 %v2640, %v2639
        %v2846 = vpack.c.b16 %v2642, %v2641
        %v2847 = vpack.c.b16 %v2644, %v2643
        %v2848 = vpack.c.b16 %v2646, %v2645
        %v2849 = vpack.c.b16 %v2648, %v2647
        %v2850 = vpack.c.b16 %v2650, %v2649
        %v2851 = vpack.c.b16 %v2652, %v2651
        %v2852 = vpack.c.b16 %v2654, %v2653
        %v2853 = vpack.c.b16 %v2656, %v2655
        %v2854 = vpack.c.b16 %v2658, %v2657
        %v2855 = vpack.c.b16 %v2660, %v2659
        %v2856 = vpack.c.b16 %v2662, %v2661
        %v2857 = vpack.c.b16 %v2664, %v2663
        %v2858 = vpack.c.b16 %v2666, %v2665
        %v2859 = vpack.c.b16 %v2668, %v2667
        %v2860 = vpack.c.b16 %v2670, %v2669
        %v2861 = vpack.c.b16 %v2672, %v2671
        %v2862 = vpack.c.b16 %v2674, %v2673
        %v2863 = vpack.c.b16 %v2676, %v2675
        %v2864 = vpack.c.b16 %v2678, %v2677
        %v2865 = vpack.c.b16 %v2680, %v2679
        %v2866 = vpack.c.b16 %v2682, %v2681
        %v2867 = vpack.c.b16 %v2684, %v2683
        %v2868 = vpack.c.b16 %v2686, %v2685
        %v2869 = vpack.c.b16 %v2688, %v2687
        %v2870 = vpack.c.b16 %v2690, %v2689
        %v2871 = vpack.c.b16 %v2692, %v2691
        %v2872 = vpack.c.b16 %v2694, %v2693
        %v2873 = vpack.c.b16 %v2696, %v2695
        %v2874 = vpack.c.b16 %v2698, %v2697
        %v2875 = vpack.c.b16 %v2700, %v2699
        %v2876 = vpack.c.b16 %v2702, %v2701
        %v2877 = vpack.c.b16 %v2704, %v2703
        %v2878 = vpack.c.b16 %v2706, %v2705
        %v2879 = vpack.c.b16 %v2708, %v2707
        %v2880 = vpack.c.b16 %v2710, %v2709
        %v2881 = vpack.c.b16 %v2712, %v2711
        %v2882 = vpack.c.b16 %v2714, %v2713
        %v2883 = vpack.c.b16 %v2716, %v2715
        %v2884 = vpack.c.b16 %v2718, %v2717
        %v2885 = vpack.c.b16 %v2720, %v2719
        %v2886 = vpack.c.b16 %v2722, %v2721
        %v2887 = vpack.c.b16 %v2724, %v2723
        %v2888 = vpack.c.b16 %v2726, %v2725
        %v2889 = vpack.c.b16 %v2728, %v2727
        %v2890 = vpack.c.b16 %v2730, %v2729
        %v2891 = vpack.c.b16 %v2732, %v2731
        %v2892 = vpack.c.b16 %v2734, %v2733
        %v2893 = vpack.c.b16 %v2736, %v2735
        %v2894 = vpack.c.b16 %v2738, %v2737
        %v2895 = vpack.c.b16 %v2740, %v2739
        %v2896 = vpack.c.b16 %v2742, %v2741
        %v2897 = vpack.c.b16 %v2744, %v2743
        %v2898 = vpack.c.b16 %v2746, %v2745
        %v2899 = vpack.c.b16 %v2748, %v2747
        %v2900 = vpack.c.b16 %v2750, %v2749
        %v2901 = vpack.c.b16 %v2752, %v2751
        %v2902 = vpack.c.b16 %v2754, %v2753
        %v2903 = vpack.c.b16 %v2756, %v2755
        %v2904 = vpack.c.b16 %v2758, %v2757
        %v2905 = vpack.c.b16 %v2760, %v2759
        %v2906 = vpack.c.b16 %v2762, %v2761
        %v2907 = vpack.c.b16 %v2764, %v2763
        %v2908 = vpack.c.b16 %v2766, %v2765
        %v2909 = vpack.c.b16 %v2768, %v2767
        %v2910 = vpack.c.b16 %v2770, %v2769
        %v2911 = vpack.c.b16 %v2772, %v2771
        %v2912 = vpack.c.b16 %v2774, %v2773
        %v2913 = vpack.c.b16 %v2776, %v2775
        %v2914 = vpack.c.b16 %v2778, %v2777
        %v2915 = vpack.c.b16 %v2780, %v2779
        %v2916 = vpack.c.b16 %v2782, %v2781
        %v2917 = vpack.c.b16 %v2784, %v2783
        %v2918 = vpack.c.b16 %v2786, %v2785
        %v2919 = vpack.c.b16 %v2788, %v2787
        %v2920 = vpack.c.b16 %v2790, %v2789
        %v2921 = vpack.c.b16 %v2792, %v2791
        %v2922 = vpack.c.b16 %v2794, %v2793
        %3051 = vmatprep.subr.bf16.mxu0 0
        %3052 = vmatpush1.bf16.msra.mxu0 %v2795
        %3053 = vmatprep.subr.bf16.mxu0 0
        %3054 = vmatpush1.bf16.msra.mxu0 %v2796
        %3055 = vmatprep.subr.bf16.mxu0 0
        %3056 = vmatpush1.bf16.msra.mxu0 %v2797
        %3057 = vmatprep.subr.bf16.mxu0 0
        %3058 = vmatpush1.bf16.msra.mxu0 %v2798
        %3059 = vmatprep.subr.bf16.mxu0 0
        %3060 = vmatpush1.bf16.msra.mxu0 %v2799
        %3061 = vmatprep.subr.bf16.mxu0 0
        %3062 = vmatpush1.bf16.msra.mxu0 %v2800
        %3063 = vmatprep.subr.bf16.mxu0 0
        %3064 = vmatpush1.bf16.msra.mxu0 %v2801
        %3065 = vmatprep.subr.bf16.mxu0 0
        %3066 = vmatpush1.bf16.msra.mxu0 %v2802
        %3067 = vmatprep.subr.bf16.mxu0 0
        %3068 = vmatpush1.bf16.msra.mxu0 %v2803
        %3069 = vmatprep.subr.bf16.mxu0 0
        %3070 = vmatpush1.bf16.msra.mxu0 %v2804
        %3071 = vmatprep.subr.bf16.mxu0 0
        %3072 = vmatpush1.bf16.msra.mxu0 %v2805
        %3073 = vmatprep.subr.bf16.mxu0 0
        %3074 = vmatpush1.bf16.msra.mxu0 %v2806
        %3075 = vmatprep.subr.bf16.mxu0 0
        %3076 = vmatpush1.bf16.msra.mxu0 %v2807
        %3077 = vmatprep.subr.bf16.mxu0 0
        %3078 = vmatpush1.bf16.msra.mxu0 %v2808
        %3079 = vmatprep.subr.bf16.mxu0 0
        %3080 = vmatpush1.bf16.msra.mxu0 %v2809
        %3081 = vmatprep.subr.bf16.mxu0 0
        %3082 = vmatpush1.bf16.msra.mxu0 %v2810
        %3083 = vmatprep.mubr.bf16.mxu0 %v2262
        %3084 = vmatmul.mubr.bf16.gmra.mrb[0].mxu0 %v2261
        %v3085 = vpop.f32.mrb[0].mxu0
        %v3086 = vadd.f32 %v2281, %v3085
        %v3087 = vpop.f32.mrb[0].mxu0
        %v3088 = vpop.f32.mrb[0].mxu0
        %v3089 = vpop.f32.mrb[0].mxu0
        %3090 = vdwg.mxu0
        %3091 = vmatprep.subr.bf16.mxu0 0
        %3092 = vmatpush1.bf16.msra.mxu0 %v2811
        %3093 = vmatprep.subr.bf16.mxu0 0
        %3094 = vmatpush1.bf16.msra.mxu0 %v2812
        %3095 = vmatprep.subr.bf16.mxu0 0
        %3096 = vmatpush1.bf16.msra.mxu0 %v2813
        %3097 = vmatprep.subr.bf16.mxu0 0
        %3098 = vmatpush1.bf16.msra.mxu0 %v2814
        %3099 = vmatprep.subr.bf16.mxu0 0
        %3100 = vmatpush1.bf16.msra.mxu0 %v2815
        %3101 = vmatprep.subr.bf16.mxu0 0
        %3102 = vmatpush1.bf16.msra.mxu0 %v2816
        %3103 = vmatprep.subr.bf16.mxu0 0
        %3104 = vmatpush1.bf16.msra.mxu0 %v2817
        %3105 = vmatprep.subr.bf16.mxu0 0
        %3106 = vmatpush1.bf16.msra.mxu0 %v2818
        %3107 = vmatprep.subr.bf16.mxu0 0
        %3108 = vmatpush1.bf16.msra.mxu0 %v2819
        %3109 = vmatprep.subr.bf16.mxu0 0
        %3110 = vmatpush1.bf16.msra.mxu0 %v2820
        %3111 = vmatprep.subr.bf16.mxu0 0
        %3112 = vmatpush1.bf16.msra.mxu0 %v2821
        %3113 = vmatprep.subr.bf16.mxu0 0
        %3114 = vmatpush1.bf16.msra.mxu0 %v2822
        %3115 = vmatprep.subr.bf16.mxu0 0
        %3116 = vmatpush1.bf16.msra.mxu0 %v2823
        %3117 = vmatprep.subr.bf16.mxu0 0
        %3118 = vmatpush1.bf16.msra.mxu0 %v2824
        %3119 = vmatprep.subr.bf16.mxu0 0
        %3120 = vmatpush1.bf16.msra.mxu0 %v2825
        %3121 = vmatprep.subr.bf16.mxu0 0
        %3122 = vmatpush1.bf16.msra.mxu0 %v2826
        %3123 = vmatprep.mubr.bf16.mxu0 %v2264
        %3124 = vmatmul.mubr.bf16.gmra.mrb[0].mxu0 %v2263
        %v3125 = vpop.f32.mrb[0].mxu0
        %v3126 = vadd.f32 %v3086, %v3125
        %v3127 = vpop.f32.mrb[0].mxu0
        %v3128 = vpop.f32.mrb[0].mxu0
        %v3129 = vpop.f32.mrb[0].mxu0
        %3130 = vdwg.mxu0
        %3131 = vmatprep.subr.bf16.mxu0 0
        %3132 = vmatpush1.bf16.msra.mxu0 %v2827
        %3133 = vmatprep.subr.bf16.mxu0 0
        %3134 = vmatpush1.bf16.msra.mxu0 %v2828
        %3135 = vmatprep.subr.bf16.mxu0 0
        %3136 = vmatpush1.bf16.msra.mxu0 %v2829
        %3137 = vmatprep.subr.bf16.mxu0 0
        %3138 = vmatpush1.bf16.msra.mxu0 %v2830
        %3139 = vmatprep.subr.bf16.mxu0 0
        %3140 = vmatpush1.bf16.msra.mxu0 %v2831
        %3141 = vmatprep.subr.bf16.mxu0 0
        %3142 = vmatpush1.bf16.msra.mxu0 %v2832
        %3143 = vmatprep.subr.bf16.mxu0 0
        %3144 = vmatpush1.bf16.msra.mxu0 %v2833
        %3145 = vmatprep.subr.bf16.mxu0 0
        %3146 = vmatpush1.bf16.msra.mxu0 %v2834
        %3147 = vmatprep.subr.bf16.mxu0 0
        %3148 = vmatpush1.bf16.msra.mxu0 %v2835
        %3149 = vmatprep.subr.bf16.mxu0 0
        %3150 = vmatpush1.bf16.msra.mxu0 %v2836
        %3151 = vmatprep.subr.bf16.mxu0 0
        %3152 = vmatpush1.bf16.msra.mxu0 %v2837
        %3153 = vmatprep.subr.bf16.mxu0 0
        %3154 = vmatpush1.bf16.msra.mxu0 %v2838
        %3155 = vmatprep.subr.bf16.mxu0 0
        %3156 = vmatpush1.bf16.msra.mxu0 %v2839
        %3157 = vmatprep.subr.bf16.mxu0 0
        %3158 = vmatpush1.bf16.msra.mxu0 %v2840
        %3159 = vmatprep.subr.bf16.mxu0 0
        %3160 = vmatpush1.bf16.msra.mxu0 %v2841
        %3161 = vmatprep.subr.bf16.mxu0 0
        %3162 = vmatpush1.bf16.msra.mxu0 %v2842
        %3163 = vmatprep.mubr.bf16.mxu0 %v2266
        %3164 = vmatmul.mubr.bf16.gmra.mrb[0].mxu0 %v2265
        %v3165 = vpop.f32.mrb[0].mxu0
        %v3166 = vadd.f32 %v3126, %v3165
        %v3167 = vpop.f32.mrb[0].mxu0
        %v3168 = vpop.f32.mrb[0].mxu0
        %v3169 = vpop.f32.mrb[0].mxu0
        %3170 = vdwg.mxu0
        %3171 = vmatprep.subr.bf16.mxu0 0
        %3172 = vmatpush1.bf16.msra.mxu0 %v2843
        %3173 = vmatprep.subr.bf16.mxu0 0
        %3174 = vmatpush1.bf16.msra.mxu0 %v2844
        %3175 = vmatprep.subr.bf16.mxu0 0
        %3176 = vmatpush1.bf16.msra.mxu0 %v2845
        %3177 = vmatprep.subr.bf16.mxu0 0
        %3178 = vmatpush1.bf16.msra.mxu0 %v2846
        %3179 = vmatprep.subr.bf16.mxu0 0
        %3180 = vmatpush1.bf16.msra.mxu0 %v2847
        %3181 = vmatprep.subr.bf16.mxu0 0
        %3182 = vmatpush1.bf16.msra.mxu0 %v2848
        %3183 = vmatprep.subr.bf16.mxu0 0
        %3184 = vmatpush1.bf16.msra.mxu0 %v2849
        %3185 = vmatprep.subr.bf16.mxu0 0
        %3186 = vmatpush1.bf16.msra.mxu0 %v2850
        %3187 = vmatprep.subr.bf16.mxu0 0
        %3188 = vmatpush1.bf16.msra.mxu0 %v2851
        %3189 = vmatprep.subr.bf16.mxu0 0
        %3190 = vmatpush1.bf16.msra.mxu0 %v2852
        %3191 = vmatprep.subr.bf16.mxu0 0
        %3192 = vmatpush1.bf16.msra.mxu0 %v2853
        %3193 = vmatprep.subr.bf16.mxu0 0
        %3194 = vmatpush1.bf16.msra.mxu0 %v2854
        %3195 = vmatprep.subr.bf16.mxu0 0
        %3196 = vmatpush1.bf16.msra.mxu0 %v2855
        %3197 = vmatprep.subr.bf16.mxu0 0
        %3198 = vmatpush1.bf16.msra.mxu0 %v2856
        %3199 = vmatprep.subr.bf16.mxu0 0
        %3200 = vmatpush1.bf16.msra.mxu0 %v2857
        %3201 = vmatprep.subr.bf16.mxu0 0
        %3202 = vmatpush1.bf16.msra.mxu0 %v2858
        %3203 = vmatprep.mubr.bf16.mxu0 %v2268
        %3204 = vmatmul.mubr.bf16.gmra.mrb[0].mxu0 %v2267
        %v3205 = vpop.f32.mrb[0].mxu0
        %v3206 = vadd.f32 %v3166, %v3205
        %v3207 = vpop.f32.mrb[0].mxu0
        %v3208 = vpop.f32.mrb[0].mxu0
        %v3209 = vpop.f32.mrb[0].mxu0
        %3210 = vdwg.mxu0
        %3211 = vmatprep.subr.bf16.mxu0 0
        %3212 = vmatpush1.bf16.msra.mxu0 %v2859
        %3213 = vmatprep.subr.bf16.mxu0 0
        %3214 = vmatpush1.bf16.msra.mxu0 %v2860
        %3215 = vmatprep.subr.bf16.mxu0 0
        %3216 = vmatpush1.bf16.msra.mxu0 %v2861
        %3217 = vmatprep.subr.bf16.mxu0 0
        %3218 = vmatpush1.bf16.msra.mxu0 %v2862
        %3219 = vmatprep.subr.bf16.mxu0 0
        %3220 = vmatpush1.bf16.msra.mxu0 %v2863
        %3221 = vmatprep.subr.bf16.mxu0 0
        %3222 = vmatpush1.bf16.msra.mxu0 %v2864
        %3223 = vmatprep.subr.bf16.mxu0 0
        %3224 = vmatpush1.bf16.msra.mxu0 %v2865
        %3225 = vmatprep.subr.bf16.mxu0 0
        %3226 = vmatpush1.bf16.msra.mxu0 %v2866
        %3227 = vmatprep.subr.bf16.mxu0 0
        %3228 = vmatpush1.bf16.msra.mxu0 %v2867
        %3229 = vmatprep.subr.bf16.mxu0 0
        %3230 = vmatpush1.bf16.msra.mxu0 %v2868
        %3231 = vmatprep.subr.bf16.mxu0 0
        %3232 = vmatpush1.bf16.msra.mxu0 %v2869
        %3233 = vmatprep.subr.bf16.mxu0 0
        %3234 = vmatpush1.bf16.msra.mxu0 %v2870
        %3235 = vmatprep.subr.bf16.mxu0 0
        %3236 = vmatpush1.bf16.msra.mxu0 %v2871
        %3237 = vmatprep.subr.bf16.mxu0 0
        %3238 = vmatpush1.bf16.msra.mxu0 %v2872
        %3239 = vmatprep.subr.bf16.mxu0 0
        %3240 = vmatpush1.bf16.msra.mxu0 %v2873
        %3241 = vmatprep.subr.bf16.mxu0 0
        %3242 = vmatpush1.bf16.msra.mxu0 %v2874
        %3243 = vmatprep.mubr.bf16.mxu0 %v2270
        %3244 = vmatmul.mubr.bf16.gmra.mrb[0].mxu0 %v2269
        %v3245 = vpop.f32.mrb[0].mxu0
        %v3246 = vadd.f32 %v3206, %v3245
        %v3247 = vpop.f32.mrb[0].mxu0
        %v3248 = vpop.f32.mrb[0].mxu0
        %v3249 = vpop.f32.mrb[0].mxu0
        %3250 = vdwg.mxu0
        %3251 = vmatprep.subr.bf16.mxu0 0
        %3252 = vmatpush1.bf16.msra.mxu0 %v2875
        %3253 = vmatprep.subr.bf16.mxu0 0
        %3254 = vmatpush1.bf16.msra.mxu0 %v2876
        %3255 = vmatprep.subr.bf16.mxu0 0
        %3256 = vmatpush1.bf16.msra.mxu0 %v2877
        %3257 = vmatprep.subr.bf16.mxu0 0
        %3258 = vmatpush1.bf16.msra.mxu0 %v2878
        %3259 = vmatprep.subr.bf16.mxu0 0
        %3260 = vmatpush1.bf16.msra.mxu0 %v2879
        %3261 = vmatprep.subr.bf16.mxu0 0
        %3262 = vmatpush1.bf16.msra.mxu0 %v2880
        %3263 = vmatprep.subr.bf16.mxu0 0
        %3264 = vmatpush1.bf16.msra.mxu0 %v2881
        %3265 = vmatprep.subr.bf16.mxu0 0
        %3266 = vmatpush1.bf16.msra.mxu0 %v2882
        %3267 = vmatprep.subr.bf16.mxu0 0
        %3268 = vmatpush1.bf16.msra.mxu0 %v2883
        %3269 = vmatprep.subr.bf16.mxu0 0
        %3270 = vmatpush1.bf16.msra.mxu0 %v2884
        %3271 = vmatprep.subr.bf16.mxu0 0
        %3272 = vmatpush1.bf16.msra.mxu0 %v2885
        %3273 = vmatprep.subr.bf16.mxu0 0
        %3274 = vmatpush1.bf16.msra.mxu0 %v2886
        %3275 = vmatprep.subr.bf16.mxu0 0
        %3276 = vmatpush1.bf16.msra.mxu0 %v2887
        %3277 = vmatprep.subr.bf16.mxu0 0
        %3278 = vmatpush1.bf16.msra.mxu0 %v2888
        %3279 = vmatprep.subr.bf16.mxu0 0
        %3280 = vmatpush1.bf16.msra.mxu0 %v2889
        %3281 = vmatprep.subr.bf16.mxu0 0
        %3282 = vmatpush1.bf16.msra.mxu0 %v2890
        %3283 = vmatprep.mubr.bf16.mxu0 %v2272
        %3284 = vmatmul.mubr.bf16.gmra.mrb[0].mxu0 %v2271
        %v3285 = vpop.f32.mrb[0].mxu0
        %v3286 = vadd.f32 %v3246, %v3285
        %v3287 = vpop.f32.mrb[0].mxu0
        %v3288 = vpop.f32.mrb[0].mxu0
        %v3289 = vpop.f32.mrb[0].mxu0
        %3290 = vdwg.mxu0
        %3291 = vmatprep.subr.bf16.mxu0 0
        %3292 = vmatpush1.bf16.msra.mxu0 %v2891
        %3293 = vmatprep.subr.bf16.mxu0 0
        %3294 = vmatpush1.bf16.msra.mxu0 %v2892
        %3295 = vmatprep.subr.bf16.mxu0 0
        %3296 = vmatpush1.bf16.msra.mxu0 %v2893
        %3297 = vmatprep.subr.bf16.mxu0 0
        %3298 = vmatpush1.bf16.msra.mxu0 %v2894
        %3299 = vmatprep.subr.bf16.mxu0 0
        %3300 = vmatpush1.bf16.msra.mxu0 %v2895
        %3301 = vmatprep.subr.bf16.mxu0 0
        %3302 = vmatpush1.bf16.msra.mxu0 %v2896
        %3303 = vmatprep.subr.bf16.mxu0 0
        %3304 = vmatpush1.bf16.msra.mxu0 %v2897
        %3305 = vmatprep.subr.bf16.mxu0 0
        %3306 = vmatpush1.bf16.msra.mxu0 %v2898
        %3307 = vmatprep.subr.bf16.mxu0 0
        %3308 = vmatpush1.bf16.msra.mxu0 %v2899
        %3309 = vmatprep.subr.bf16.mxu0 0
        %3310 = vmatpush1.bf16.msra.mxu0 %v2900
        %3311 = vmatprep.subr.bf16.mxu0 0
        %3312 = vmatpush1.bf16.msra.mxu0 %v2901
        %3313 = vmatprep.subr.bf16.mxu0 0
        %3314 = vmatpush1.bf16.msra.mxu0 %v2902
        %3315 = vmatprep.subr.bf16.mxu0 0
        %3316 = vmatpush1.bf16.msra.mxu0 %v2903
        %3317 = vmatprep.subr.bf16.mxu0 0
        %3318 = vmatpush1.bf16.msra.mxu0 %v2904
        %3319 = vmatprep.subr.bf16.mxu0 0
        %3320 = vmatpush1.bf16.msra.mxu0 %v2905
        %3321 = vmatprep.subr.bf16.mxu0 0
        %3322 = vmatpush1.bf16.msra.mxu0 %v2906
        %3323 = vmatprep.mubr.bf16.mxu0 %v2274
        %3324 = vmatmul.mubr.bf16.gmra.mrb[0].mxu0 %v2273
        %v3325 = vpop.f32.mrb[0].mxu0
        %v3326 = vadd.f32 %v3286, %v3325
        %v3327 = vpop.f32.mrb[0].mxu0
        %v3328 = vpop.f32.mrb[0].mxu0
        %v3329 = vpop.f32.mrb[0].mxu0
        %3330 = vdwg.mxu0
        %3331 = vmatprep.subr.bf16.mxu0 0
        %3332 = vmatpush1.bf16.msra.mxu0 %v2907
        %3333 = vmatprep.subr.bf16.mxu0 0
        %3334 = vmatpush1.bf16.msra.mxu0 %v2908
        %3335 = vmatprep.subr.bf16.mxu0 0
        %3336 = vmatpush1.bf16.msra.mxu0 %v2909
        %3337 = vmatprep.subr.bf16.mxu0 0
        %3338 = vmatpush1.bf16.msra.mxu0 %v2910
        %3339 = vmatprep.subr.bf16.mxu0 0
        %3340 = vmatpush1.bf16.msra.mxu0 %v2911
        %3341 = vmatprep.subr.bf16.mxu0 0
        %3342 = vmatpush1.bf16.msra.mxu0 %v2912
        %3343 = vmatprep.subr.bf16.mxu0 0
        %3344 = vmatpush1.bf16.msra.mxu0 %v2913
        %3345 = vmatprep.subr.bf16.mxu0 0
        %3346 = vmatpush1.bf16.msra.mxu0 %v2914
        %3347 = vmatprep.subr.bf16.mxu0 0
        %3348 = vmatpush1.bf16.msra.mxu0 %v2915
        %3349 = vmatprep.subr.bf16.mxu0 0
        %3350 = vmatpush1.bf16.msra.mxu0 %v2916
        %3351 = vmatprep.subr.bf16.mxu0 0
        %3352 = vmatpush1.bf16.msra.mxu0 %v2917
        %3353 = vmatprep.subr.bf16.mxu0 0
        %3354 = vmatpush1.bf16.msra.mxu0 %v2918
        %3355 = vmatprep.subr.bf16.mxu0 0
        %3356 = vmatpush1.bf16.msra.mxu0 %v2919
        %3357 = vmatprep.subr.bf16.mxu0 0
        %3358 = vmatpush1.bf16.msra.mxu0 %v2920
        %3359 = vmatprep.subr.bf16.mxu0 0
        %3360 = vmatpush1.bf16.msra.mxu0 %v2921
        %3361 = vmatprep.subr.bf16.mxu0 0
        %3362 = vmatpush1.bf16.msra.mxu0 %v2922
        %3363 = vmatprep.mubr.bf16.mxu0 %v2276
        %3364 = vmatmul.mubr.bf16.gmra.mrb[0].mxu0 %v2275
        %v3365 = vpop.f32.mrb[0].mxu0
        %v3366 = vadd.f32 %v3326, %v3365
        %v3367 = vpop.f32.mrb[0].mxu0
        %v3368 = vpop.f32.mrb[0].mxu0
        %v3369 = vpop.f32.mrb[0].mxu0
        %3370 = vdwg.mxu0
        %v3371 = vadd.f32 %v3366, %v1670
        %v3372 = vsel %vm1270, %v3371, 0.0
        %3373 = vadd.xlane.f32.xlu0 %v3372
        %v3374 = vpop.xlane.xlu0 %3373
        %v3375 = vmul.f32 %v3374, %v1646
        %v3376 = vsub.f32 %v3371, %v3375
        %v3377 = vmul.f32 %v3376, %v3376
        %v3378 = vsel %vm1270, %v3377, 0.0
        %3379 = vadd.xlane.f32.xlu0 %v3378
        %v3380 = vpop.xlane.xlu0 %3379
        %v3381 = vmul.f32 %v3380, %v1646
        %v3382 = vadd.f32 %v3381, 1e-05
        %v3383 = vrsqrt.pop %v3382
        %v3384 = vmul.f32 %v3376, %v3383
        %v3386 = vlaneseq
        %v3387 = vshrl.u32 %v3386, 7
        %v3388 = vsub.s32 0, %v3387
        %v3389 = vrot.slane %v1247, %v3388
        %v3391 = vmul.f32 %v3384, %v3389
        %v3393 = vlaneseq
        %v3394 = vshrl.u32 %v3393, 7
        %v3395 = vsub.s32 0, %v3394
        %v3396 = vrot.slane %v1248, %v3395
        %v3398 = vadd.f32 %v3391, %v3396
        %3399 = vst.msk [vmem:[#allocation2] sm:$0xff] %vm1270, %v3398
        %s3400 = scalar_lea.vmem [#allocation3], 8
        %v3401 = vld [vmem:[%s3400] sm:$0xff]
        %v3402 = vld [vmem:[#allocation4] sm:$0xff]
        %v3403 = vld [vmem:[#allocation4 + $0x8] sm:$0xff]
        %v3404 = vld [vmem:[#allocation5] sm:$0xff]
        %v3405 = vld [vmem:[#allocation5 + $0x8] sm:$0xff]
        %v3406 = vmul.f32 %v3401, %v3402
        %v3407 = vmul.f32 %v3401, %v3403
        %v3408 = vpack.c.bf16 %v3406, %v3406
        %v3409 = vpack.c.bf16 %v3407, %v3407
        %v3412 = vunpack.c.l.b16 %v3408
        %v3413 = vunpack.c.l.b16 %v3409
        %v3414 = vpack.c.b16 %v3413, %v3412
        %v3416 = vsel %vm1270, %v3414, 0
        %3418 = vmatprep.subr.bf16.mxu0 0
        %3419 = vmatpush1.bf16.msra.mxu0 %v1461
        %3420 = vmatprep.subr.bf16.mxu0 0
        %3421 = vmatpush1.bf16.msra.mxu0 %v1462
        %3422 = vmatprep.subr.bf16.mxu0 0
        %3423 = vmatpush1.bf16.msra.mxu0 0
        %3424 = vmatprep.subr.bf16.mxu0 0
        %3425 = vmatpush1.bf16.msra.mxu0 0
        %3426 = vmatprep.subr.bf16.mxu0 0
        %3427 = vmatpush1.bf16.msra.mxu0 0
        %3428 = vmatprep.subr.bf16.mxu0 0
        %3429 = vmatpush1.bf16.msra.mxu0 0
        %3430 = vmatprep.subr.bf16.mxu0 0
        %3431 = vmatpush1.bf16.msra.mxu0 0
        %3432 = vmatprep.subr.bf16.mxu0 0
        %3433 = vmatpush1.bf16.msra.mxu0 0
        %3434 = vmatprep.subr.bf16.mxu0 0
        %3435 = vmatpush1.bf16.msra.mxu0 0
        %3436 = vmatprep.subr.bf16.mxu0 0
        %3437 = vmatpush1.bf16.msra.mxu0 0
        %3438 = vmatprep.subr.bf16.mxu0 0
        %3439 = vmatpush1.bf16.msra.mxu0 0
        %3440 = vmatprep.subr.bf16.mxu0 0
        %3441 = vmatpush1.bf16.msra.mxu0 0
        %3442 = vmatprep.subr.bf16.mxu0 0
        %3443 = vmatpush1.bf16.msra.mxu0 0
        %3444 = vmatprep.subr.bf16.mxu0 0
        %3445 = vmatpush1.bf16.msra.mxu0 0
        %3446 = vmatprep.subr.bf16.mxu0 0
        %3447 = vmatpush1.bf16.msra.mxu0 0
        %3448 = vmatprep.subr.bf16.mxu0 0
        %3449 = vmatpush1.bf16.msra.mxu0 0
        %3450 = vmatprep.mubr.bf16.mxu0 0
        %3451 = vmatmul.mubr.bf16.gmra.mrb[0].mxu0 %v3416
        %v3452 = vpop.f32.mrb[0].mxu0
        %v3453 = vadd.f32 0.0, %v3452
        %v3454 = vpop.f32.mrb[0].mxu0
        %v3455 = vpop.f32.mrb[0].mxu0
        %v3456 = vadd.f32 0.0, %v3455
        %v3457 = vpop.f32.mrb[0].mxu0
        %3458 = vdwg.mxu0
        %v3459 = vsel %vm1509, %v3453, -inf
        %v3460 = vsel %vm1509, %v3456, -inf
        %v3461 = vmax.f32 %v3459, %v3460
        %v3462 = vsub.f32 %v3453, %v3461
        %v3463 = vsub.f32 %v3456, %v3461
        %v3464 = vmul.f32 %v3462, 1.442695
        %v3465 = vpow.pop %v3464
        %v3466 = vmul.f32 %v3463, 1.442695
        %v3467 = vpow.pop %v3466
        %v3468 = vsel %vm1509, %v3465, 0.0
        %v3469 = vsel %vm1509, %v3467, 0.0
        %v3470 = vadd.f32 %v3468, %v3469
        %v3471 = vrcp.pop %v3470
        %v3472 = vmul.f32 %v3465, %v3471
        %v3473 = vmul.f32 %v3467, %v3471
        %v3474 = vpack.c.bf16 %v3473, %v3472
        %v3476 = vsel %vm1509, %v3474, 0
        %3478 = vmatprep.subr.bf16.mxu0 0
        %3479 = vmatpush1.bf16.msra.mxu0 %v1531
        %3480 = vmatprep.subr.bf16.mxu0 0
        %3481 = vmatpush1.bf16.msra.mxu0 0
        %3482 = vmatprep.subr.bf16.mxu0 0
        %3483 = vmatpush1.bf16.msra.mxu0 0
        %3484 = vmatprep.subr.bf16.mxu0 0
        %3485 = vmatpush1.bf16.msra.mxu0 0
        %3486 = vmatprep.subr.bf16.mxu0 0
        %3487 = vmatpush1.bf16.msra.mxu0 0
        %3488 = vmatprep.subr.bf16.mxu0 0
        %3489 = vmatpush1.bf16.msra.mxu0 0
        %3490 = vmatprep.subr.bf16.mxu0 0
        %3491 = vmatpush1.bf16.msra.mxu0 0
        %3492 = vmatprep.subr.bf16.mxu0 0
        %3493 = vmatpush1.bf16.msra.mxu0 0
        %3494 = vmatprep.subr.bf16.mxu0 0
        %3495 = vmatpush1.bf16.msra.mxu0 0
        %3496 = vmatprep.subr.bf16.mxu0 0
        %3497 = vmatpush1.bf16.msra.mxu0 0
        %3498 = vmatprep.subr.bf16.mxu0 0
        %3499 = vmatpush1.bf16.msra.mxu0 0
        %3500 = vmatprep.subr.bf16.mxu0 0
        %3501 = vmatpush1.bf16.msra.mxu0 0
        %3502 = vmatprep.subr.bf16.mxu0 0
        %3503 = vmatpush1.bf16.msra.mxu0 0
        %3504 = vmatprep.subr.bf16.mxu0 0
        %3505 = vmatpush1.bf16.msra.mxu0 0
        %3506 = vmatprep.subr.bf16.mxu0 0
        %3507 = vmatpush1.bf16.msra.mxu0 0
        %3508 = vmatprep.subr.bf16.mxu0 0
        %3509 = vmatpush1.bf16.msra.mxu0 0
        %3510 = vmatprep.mubr.bf16.mxu0 0
        %3511 = vmatmul.mubr.bf16.gmra.mrb[0].mxu0 %v3476
        %v3512 = vpop.f32.mrb[0].mxu0
        %v3513 = vadd.f32 0.0, %v3512
        %v3514 = vpop.f32.mrb[0].mxu0
        %v3515 = vpop.f32.mrb[0].mxu0
        %v3516 = vadd.f32 0.0, %v3515
        %v3517 = vpop.f32.mrb[0].mxu0
        %3518 = vdwg.mxu0
        %v3519 = vmul.f32 %v3513, %v3404
        %v3520 = vmul.f32 %v3516, %v3405
        %v3521 = vsel %vm1270, %v3519, 0.0
        %v3522 = vsel %vm1270, %v3520, 0.0
        %v3523 = vadd.f32 %v3521, %v3522
        %v3524 = vpack.c.bf16 %v3523, %v3523
        %v3526 = vsel %vm1270, %v3524, 0
        %3528 = vmatprep.subr.bf16.mxu0 0
        %3529 = vmatpush1.bf16.msra.mxu0 %v1594
        %3530 = vmatprep.subr.bf16.mxu0 0
        %3531 = vmatpush1.bf16.msra.mxu0 %v1595
        %3532 = vmatprep.subr.bf16.mxu0 0
        %3533 = vmatpush1.bf16.msra.mxu0 0
        %3534 = vmatprep.subr.bf16.mxu0 0
        %3535 = vmatpush1.bf16.msra.mxu0 0
        %3536 = vmatprep.subr.bf16.mxu0 0
        %3537 = vmatpush1.bf16.msra.mxu0 0
        %3538 = vmatprep.subr.bf16.mxu0 0
        %3539 = vmatpush1.bf16.msra.mxu0 0
        %3540 = vmatprep.subr.bf16.mxu0 0
        %3541 = vmatpush1.bf16.msra.mxu0 0
        %3542 = vmatprep.subr.bf16.mxu0 0
        %3543 = vmatpush1.bf16.msra.mxu0 0
        %3544 = vmatprep.subr.bf16.mxu0 0
        %3545 = vmatpush1.bf16.msra.mxu0 0
        %3546 = vmatprep.subr.bf16.mxu0 0
        %3547 = vmatpush1.bf16.msra.mxu0 0
        %3548 = vmatprep.subr.bf16.mxu0 0
        %3549 = vmatpush1.bf16.msra.mxu0 0
        %3550 = vmatprep.subr.bf16.mxu0 0
        %3551 = vmatpush1.bf16.msra.mxu0 0
        %3552 = vmatprep.subr.bf16.mxu0 0
        %3553 = vmatpush1.bf16.msra.mxu0 0
        %3554 = vmatprep.subr.bf16.mxu0 0
        %3555 = vmatpush1.bf16.msra.mxu0 0
        %3556 = vmatprep.subr.bf16.mxu0 0
        %3557 = vmatpush1.bf16.msra.mxu0 0
        %3558 = vmatprep.subr.bf16.mxu0 0
        %3559 = vmatpush1.bf16.msra.mxu0 0
        %3560 = vmatprep.mubr.bf16.mxu0 0
        %3561 = vmatmul.mubr.bf16.gmra.mrb[0].mxu0 %v3526
        %v3562 = vpop.f32.mrb[0].mxu0
        %v3563 = vadd.f32 %v1584, %v3562
        %v3564 = vpop.f32.mrb[0].mxu0
        %v3565 = vpop.f32.mrb[0].mxu0
        %v3566 = vpop.f32.mrb[0].mxu0
        %3567 = vdwg.mxu0
        %s3568 = scalar_lea.vmem [#allocation2], 8
        %v3569 = vld [vmem:[%s3568] sm:$0xff]
        %v3570 = vadd.f32 %v3563, %v3569
        %v3571 = vsel %vm1270, %v3570, 0.0
        %3572 = vadd.xlane.f32.xlu0 %v3571
        %v3573 = vpop.xlane.xlu0 %3572
        %v3574 = vmul.f32 %v3573, %v1646
        %v3575 = vsub.f32 %v3570, %v3574
        %v3576 = vmul.f32 %v3575, %v3575
        %v3577 = vsel %vm1270, %v3576, 0.0
        %3578 = vadd.xlane.f32.xlu0 %v3577
        %v3579 = vpop.xlane.xlu0 %3578
        %v3580 = vmul.f32 %v3579, %v1646
        %v3581 = vadd.f32 %v3580, 1e-05
        %v3582 = vrsqrt.pop %v3581
        %v3583 = vmul.f32 %v3575, %v3582
        %v3584 = vmul.f32 %v3583, %v1661
        %v3585 = vadd.f32 %v3584, %v1668
        %v3586 = vpack.c.bf16 %v3585, %v3585
        %v3588 = vsel %vm1270, %v3586, 0
        %3590 = vmatprep.subr.bf16.mxu0 %v1851
        %3591 = vmatpush1.bf16.msra.mxu0 %v1850
        %3592 = vmatprep.subr.bf16.mxu0 %v1867
        %3593 = vmatpush1.bf16.msra.mxu0 %v1866
        %3594 = vmatprep.subr.bf16.mxu0 0
        %3595 = vmatpush1.bf16.msra.mxu0 0
        %3596 = vmatprep.subr.bf16.mxu0 0
        %3597 = vmatpush1.bf16.msra.mxu0 0
        %3598 = vmatprep.subr.bf16.mxu0 0
        %3599 = vmatpush1.bf16.msra.mxu0 0
        %3600 = vmatprep.subr.bf16.mxu0 0
        %3601 = vmatpush1.bf16.msra.mxu0 0
        %3602 = vmatprep.subr.bf16.mxu0 0
        %3603 = vmatpush1.bf16.msra.mxu0 0
        %3604 = vmatprep.subr.bf16.mxu0 0
        %3605 = vmatpush1.bf16.msra.mxu0 0
        %3606 = vmatprep.subr.bf16.mxu0 0
        %3607 = vmatpush1.bf16.msra.mxu0 0
        %3608 = vmatprep.subr.bf16.mxu0 0
        %3609 = vmatpush1.bf16.msra.mxu0 0
        %3610 = vmatprep.subr.bf16.mxu0 0
        %3611 = vmatpush1.bf16.msra.mxu0 0
        %3612 = vmatprep.subr.bf16.mxu0 0
        %3613 = vmatpush1.bf16.msra.mxu0 0
        %3614 = vmatprep.subr.bf16.mxu0 0
        %3615 = vmatpush1.bf16.msra.mxu0 0
        %3616 = vmatprep.subr.bf16.mxu0 0
        %3617 = vmatpush1.bf16.msra.mxu0 0
        %3618 = vmatprep.subr.bf16.mxu0 0
        %3619 = vmatpush1.bf16.msra.mxu0 0
        %3620 = vmatprep.subr.bf16.mxu0 0
        %3621 = vmatpush1.bf16.msra.mxu0 0
        %3622 = vmatprep.mubr.bf16.mxu0 0
        %3623 = vmatmul.mubr.bf16.gmra.mrb[0].mxu0 %v3588
        %v3624 = vpop.f32.mrb[0].mxu0
        %v3625 = vadd.f32 %v1677, %v3624
        %v3626 = vpop.f32.mrb[0].mxu0
        %v3627 = vadd.f32 %v1681, %v3626
        %v3628 = vpop.f32.mrb[0].mxu0
        %v3629 = vpop.f32.mrb[0].mxu0
        %3630 = vdwg.mxu0
        %3631 = vmatprep.subr.bf16.mxu0 %v1853
        %3632 = vmatpush1.bf16.msra.mxu0 %v1852
        %3633 = vmatprep.subr.bf16.mxu0 %v1869
        %3634 = vmatpush1.bf16.msra.mxu0 %v1868
        %3635 = vmatprep.subr.bf16.mxu0 0
        %3636 = vmatpush1.bf16.msra.mxu0 0
        %3637 = vmatprep.subr.bf16.mxu0 0
        %3638 = vmatpush1.bf16.msra.mxu0 0
        %3639 = vmatprep.subr.bf16.mxu0 0
        %3640 = vmatpush1.bf16.msra.mxu0 0
        %3641 = vmatprep.subr.bf16.mxu0 0
        %3642 = vmatpush1.bf16.msra.mxu0 0
        %3643 = vmatprep.subr.bf16.mxu0 0
        %3644 = vmatpush1.bf16.msra.mxu0 0
        %3645 = vmatprep.subr.bf16.mxu0 0
        %3646 = vmatpush1.bf16.msra.mxu0 0
        %3647 = vmatprep.subr.bf16.mxu0 0
        %3648 = vmatpush1.bf16.msra.mxu0 0
        %3649 = vmatprep.subr.bf16.mxu0 0
        %3650 = vmatpush1.bf16.msra.mxu0 0
        %3651 = vmatprep.subr.bf16.mxu0 0
        %3652 = vmatpush1.bf16.msra.mxu0 0
        %3653 = vmatprep.subr.bf16.mxu0 0
        %3654 = vmatpush1.bf16.msra.mxu0 0
        %3655 = vmatprep.subr.bf16.mxu0 0
        %3656 = vmatpush1.bf16.msra.mxu0 0
        %3657 = vmatprep.subr.bf16.mxu0 0
        %3658 = vmatpush1.bf16.msra.mxu0 0
        %3659 = vmatprep.subr.bf16.mxu0 0
        %3660 = vmatpush1.bf16.msra.mxu0 0
        %3661 = vmatprep.subr.bf16.mxu0 0
        %3662 = vmatpush1.bf16.msra.mxu0 0
        %3663 = vmatprep.mubr.bf16.mxu0 0
        %3664 = vmatmul.mubr.bf16.gmra.mrb[0].mxu0 %v3588
        %v3665 = vpop.f32.mrb[0].mxu0
        %v3666 = vadd.f32 %v1685, %v3665
        %v3667 = vpop.f32.mrb[0].mxu0
        %v3668 = vadd.f32 %v1689, %v3667
        %v3669 = vpop.f32.mrb[0].mxu0
        %v3670 = vpop.f32.mrb[0].mxu0
        %3671 = vdwg.mxu0
        %3672 = vmatprep.subr.bf16.mxu0 %v1855
        %3673 = vmatpush1.bf16.msra.mxu0 %v1854
        %3674 = vmatprep.subr.bf16.mxu0 %v1871
        %3675 = vmatpush1.bf16.msra.mxu0 %v1870
        %3676 = vmatprep.subr.bf16.mxu0 0
        %3677 = vmatpush1.bf16.msra.mxu0 0
        %3678 = vmatprep.subr.bf16.mxu0 0
        %3679 = vmatpush1.bf16.msra.mxu0 0
        %3680 = vmatprep.subr.bf16.mxu0 0
        %3681 = vmatpush1.bf16.msra.mxu0 0
        %3682 = vmatprep.subr.bf16.mxu0 0
        %3683 = vmatpush1.bf16.msra.mxu0 0
        %3684 = vmatprep.subr.bf16.mxu0 0
        %3685 = vmatpush1.bf16.msra.mxu0 0
        %3686 = vmatprep.subr.bf16.mxu0 0
        %3687 = vmatpush1.bf16.msra.mxu0 0
        %3688 = vmatprep.subr.bf16.mxu0 0
        %3689 = vmatpush1.bf16.msra.mxu0 0
        %3690 = vmatprep.subr.bf16.mxu0 0
        %3691 = vmatpush1.bf16.msra.mxu0 0
        %3692 = vmatprep.subr.bf16.mxu0 0
        %3693 = vmatpush1.bf16.msra.mxu0 0
        %3694 = vmatprep.subr.bf16.mxu0 0
        %3695 = vmatpush1.bf16.msra.mxu0 0
        %3696 = vmatprep.subr.bf16.mxu0 0
        %3697 = vmatpush1.bf16.msra.mxu0 0
        %3698 = vmatprep.subr.bf16.mxu0 0
        %3699 = vmatpush1.bf16.msra.mxu0 0
        %3700 = vmatprep.subr.bf16.mxu0 0
        %3701 = vmatpush1.bf16.msra.mxu0 0
        %3702 = vmatprep.subr.bf16.mxu0 0
        %3703 = vmatpush1.bf16.msra.mxu0 0
        %3704 = vmatprep.mubr.bf16.mxu0 0
        %3705 = vmatmul.mubr.bf16.gmra.mrb[0].mxu0 %v3588
        %v3706 = vpop.f32.mrb[0].mxu0
        %v3707 = vadd.f32 %v1693, %v3706
        %v3708 = vpop.f32.mrb[0].mxu0
        %v3709 = vadd.f32 %v1697, %v3708
        %v3710 = vpop.f32.mrb[0].mxu0
        %v3711 = vpop.f32.mrb[0].mxu0
        %3712 = vdwg.mxu0
        %3713 = vmatprep.subr.bf16.mxu0 %v1857
        %3714 = vmatpush1.bf16.msra.mxu0 %v1856
        %3715 = vmatprep.subr.bf16.mxu0 %v1873
        %3716 = vmatpush1.bf16.msra.mxu0 %v1872
        %3717 = vmatprep.subr.bf16.mxu0 0
        %3718 = vmatpush1.bf16.msra.mxu0 0
        %3719 = vmatprep.subr.bf16.mxu0 0
        %3720 = vmatpush1.bf16.msra.mxu0 0
        %3721 = vmatprep.subr.bf16.mxu0 0
        %3722 = vmatpush1.bf16.msra.mxu0 0
        %3723 = vmatprep.subr.bf16.mxu0 0
        %3724 = vmatpush1.bf16.msra.mxu0 0
        %3725 = vmatprep.subr.bf16.mxu0 0
        %3726 = vmatpush1.bf16.msra.mxu0 0
        %3727 = vmatprep.subr.bf16.mxu0 0
        %3728 = vmatpush1.bf16.msra.mxu0 0
        %3729 = vmatprep.subr.bf16.mxu0 0
        %3730 = vmatpush1.bf16.msra.mxu0 0
        %3731 = vmatprep.subr.bf16.mxu0 0
        %3732 = vmatpush1.bf16.msra.mxu0 0
        %3733 = vmatprep.subr.bf16.mxu0 0
        %3734 = vmatpush1.bf16.msra.mxu0 0
        %3735 = vmatprep.subr.bf16.mxu0 0
        %3736 = vmatpush1.bf16.msra.mxu0 0
        %3737 = vmatprep.subr.bf16.mxu0 0
        %3738 = vmatpush1.bf16.msra.mxu0 0
        %3739 = vmatprep.subr.bf16.mxu0 0
        %3740 = vmatpush1.bf16.msra.mxu0 0
        %3741 = vmatprep.subr.bf16.mxu0 0
        %3742 = vmatpush1.bf16.msra.mxu0 0
        %3743 = vmatprep.subr.bf16.mxu0 0
        %3744 = vmatpush1.bf16.msra.mxu0 0
        %3745 = vmatprep.mubr.bf16.mxu0 0
        %3746 = vmatmul.mubr.bf16.gmra.mrb[0].mxu0 %v3588
        %v3747 = vpop.f32.mrb[0].mxu0
        %v3748 = vadd.f32 %v1701, %v3747
        %v3749 = vpop.f32.mrb[0].mxu0
        %v3750 = vadd.f32 %v1705, %v3749
        %v3751 = vpop.f32.mrb[0].mxu0
        %v3752 = vpop.f32.mrb[0].mxu0
        %3753 = vdwg.mxu0
        %3754 = vmatprep.subr.bf16.mxu0 %v1859
        %3755 = vmatpush1.bf16.msra.mxu0 %v1858
        %3756 = vmatprep.subr.bf16.mxu0 %v1875
        %3757 = vmatpush1.bf16.msra.mxu0 %v1874
        %3758 = vmatprep.subr.bf16.mxu0 0
        %3759 = vmatpush1.bf16.msra.mxu0 0
        %3760 = vmatprep.subr.bf16.mxu0 0
        %3761 = vmatpush1.bf16.msra.mxu0 0
        %3762 = vmatprep.subr.bf16.mxu0 0
        %3763 = vmatpush1.bf16.msra.mxu0 0
        %3764 = vmatprep.subr.bf16.mxu0 0
        %3765 = vmatpush1.bf16.msra.mxu0 0
        %3766 = vmatprep.subr.bf16.mxu0 0
        %3767 = vmatpush1.bf16.msra.mxu0 0
        %3768 = vmatprep.subr.bf16.mxu0 0
        %3769 = vmatpush1.bf16.msra.mxu0 0
        %3770 = vmatprep.subr.bf16.mxu0 0
        %3771 = vmatpush1.bf16.msra.mxu0 0
        %3772 = vmatprep.subr.bf16.mxu0 0
        %3773 = vmatpush1.bf16.msra.mxu0 0
        %3774 = vmatprep.subr.bf16.mxu0 0
        %3775 = vmatpush1.bf16.msra.mxu0 0
        %3776 = vmatprep.subr.bf16.mxu0 0
        %3777 = vmatpush1.bf16.msra.mxu0 0
        %3778 = vmatprep.subr.bf16.mxu0 0
        %3779 = vmatpush1.bf16.msra.mxu0 0
        %3780 = vmatprep.subr.bf16.mxu0 0
        %3781 = vmatpush1.bf16.msra.mxu0 0
        %3782 = vmatprep.subr.bf16.mxu0 0
        %3783 = vmatpush1.bf16.msra.mxu0 0
        %3784 = vmatprep.subr.bf16.mxu0 0
        %3785 = vmatpush1.bf16.msra.mxu0 0
        %3786 = vmatprep.mubr.bf16.mxu0 0
        %3787 = vmatmul.mubr.bf16.gmra.mrb[0].mxu0 %v3588
        %v3788 = vpop.f32.mrb[0].mxu0
        %v3789 = vadd.f32 %v1709, %v3788
        %v3790 = vpop.f32.mrb[0].mxu0
        %v3791 = vadd.f32 %v1713, %v3790
        %v3792 = vpop.f32.mrb[0].mxu0
        %v3793 = vpop.f32.mrb[0].mxu0
        %3794 = vdwg.mxu0
        %3795 = vmatprep.subr.bf16.mxu0 %v1861
        %3796 = vmatpush1.bf16.msra.mxu0 %v1860
        %3797 = vmatprep.subr.bf16.mxu0 %v1877
        %3798 = vmatpush1.bf16.msra.mxu0 %v1876
        %3799 = vmatprep.subr.bf16.mxu0 0
        %3800 = vmatpush1.bf16.msra.mxu0 0
        %3801 = vmatprep.subr.bf16.mxu0 0
        %3802 = vmatpush1.bf16.msra.mxu0 0
        %3803 = vmatprep.subr.bf16.mxu0 0
        %3804 = vmatpush1.bf16.msra.mxu0 0
        %3805 = vmatprep.subr.bf16.mxu0 0
        %3806 = vmatpush1.bf16.msra.mxu0 0
        %3807 = vmatprep.subr.bf16.mxu0 0
        %3808 = vmatpush1.bf16.msra.mxu0 0
        %3809 = vmatprep.subr.bf16.mxu0 0
        %3810 = vmatpush1.bf16.msra.mxu0 0
        %3811 = vmatprep.subr.bf16.mxu0 0
        %3812 = vmatpush1.bf16.msra.mxu0 0
        %3813 = vmatprep.subr.bf16.mxu0 0
        %3814 = vmatpush1.bf16.msra.mxu0 0
        %3815 = vmatprep.subr.bf16.mxu0 0
        %3816 = vmatpush1.bf16.msra.mxu0 0
        %3817 = vmatprep.subr.bf16.mxu0 0
        %3818 = vmatpush1.bf16.msra.mxu0 0
        %3819 = vmatprep.subr.bf16.mxu0 0
        %3820 = vmatpush1.bf16.msra.mxu0 0
        %3821 = vmatprep.subr.bf16.mxu0 0
        %3822 = vmatpush1.bf16.msra.mxu0 0
        %3823 = vmatprep.subr.bf16.mxu0 0
        %3824 = vmatpush1.bf16.msra.mxu0 0
        %3825 = vmatprep.subr.bf16.mxu0 0
        %3826 = vmatpush1.bf16.msra.mxu0 0
        %3827 = vmatprep.mubr.bf16.mxu0 0
        %3828 = vmatmul.mubr.bf16.gmra.mrb[0].mxu0 %v3588
        %v3829 = vpop.f32.mrb[0].mxu0
        %v3830 = vadd.f32 %v1717, %v3829
        %v3831 = vpop.f32.mrb[0].mxu0
        %v3832 = vadd.f32 %v1721, %v3831
        %v3833 = vpop.f32.mrb[0].mxu0
        %v3834 = vpop.f32.mrb[0].mxu0
        %3835 = vdwg.mxu0
        %3836 = vmatprep.subr.bf16.mxu0 %v1863
        %3837 = vmatpush1.bf16.msra.mxu0 %v1862
        %3838 = vmatprep.subr.bf16.mxu0 %v1879
        %3839 = vmatpush1.bf16.msra.mxu0 %v1878
        %3840 = vmatprep.subr.bf16.mxu0 0
        %3841 = vmatpush1.bf16.msra.mxu0 0
        %3842 = vmatprep.subr.bf16.mxu0 0
        %3843 = vmatpush1.bf16.msra.mxu0 0
        %3844 = vmatprep.subr.bf16.mxu0 0
        %3845 = vmatpush1.bf16.msra.mxu0 0
        %3846 = vmatprep.subr.bf16.mxu0 0
        %3847 = vmatpush1.bf16.msra.mxu0 0
        %3848 = vmatprep.subr.bf16.mxu0 0
        %3849 = vmatpush1.bf16.msra.mxu0 0
        %3850 = vmatprep.subr.bf16.mxu0 0
        %3851 = vmatpush1.bf16.msra.mxu0 0
        %3852 = vmatprep.subr.bf16.mxu0 0
        %3853 = vmatpush1.bf16.msra.mxu0 0
        %3854 = vmatprep.subr.bf16.mxu0 0
        %3855 = vmatpush1.bf16.msra.mxu0 0
        %3856 = vmatprep.subr.bf16.mxu0 0
        %3857 = vmatpush1.bf16.msra.mxu0 0
        %3858 = vmatprep.subr.bf16.mxu0 0
        %3859 = vmatpush1.bf16.msra.mxu0 0
        %3860 = vmatprep.subr.bf16.mxu0 0
        %3861 = vmatpush1.bf16.msra.mxu0 0
        %3862 = vmatprep.subr.bf16.mxu0 0
        %3863 = vmatpush1.bf16.msra.mxu0 0
        %3864 = vmatprep.subr.bf16.mxu0 0
        %3865 = vmatpush1.bf16.msra.mxu0 0
        %3866 = vmatprep.subr.bf16.mxu0 0
        %3867 = vmatpush1.bf16.msra.mxu0 0
        %3868 = vmatprep.mubr.bf16.mxu0 0
        %3869 = vmatmul.mubr.bf16.gmra.mrb[0].mxu0 %v3588
        %v3870 = vpop.f32.mrb[0].mxu0
        %v3871 = vadd.f32 %v1725, %v3870
        %v3872 = vpop.f32.mrb[0].mxu0
        %v3873 = vadd.f32 %v1729, %v3872
        %v3874 = vpop.f32.mrb[0].mxu0
        %v3875 = vpop.f32.mrb[0].mxu0
        %3876 = vdwg.mxu0
        %3877 = vmatprep.subr.bf16.mxu0 %v1865
        %3878 = vmatpush1.bf16.msra.mxu0 %v1864
        %3879 = vmatprep.subr.bf16.mxu0 %v1881
        %3880 = vmatpush1.bf16.msra.mxu0 %v1880
        %3881 = vmatprep.subr.bf16.mxu0 0
        %3882 = vmatpush1.bf16.msra.mxu0 0
        %3883 = vmatprep.subr.bf16.mxu0 0
        %3884 = vmatpush1.bf16.msra.mxu0 0
        %3885 = vmatprep.subr.bf16.mxu0 0
        %3886 = vmatpush1.bf16.msra.mxu0 0
        %3887 = vmatprep.subr.bf16.mxu0 0
        %3888 = vmatpush1.bf16.msra.mxu0 0
        %3889 = vmatprep.subr.bf16.mxu0 0
        %3890 = vmatpush1.bf16.msra.mxu0 0
        %3891 = vmatprep.subr.bf16.mxu0 0
        %3892 = vmatpush1.bf16.msra.mxu0 0
        %3893 = vmatprep.subr.bf16.mxu0 0
        %3894 = vmatpush1.bf16.msra.mxu0 0
        %3895 = vmatprep.subr.bf16.mxu0 0
        %3896 = vmatpush1.bf16.msra.mxu0 0
        %3897 = vmatprep.subr.bf16.mxu0 0
        %3898 = vmatpush1.bf16.msra.mxu0 0
        %3899 = vmatprep.subr.bf16.mxu0 0
        %3900 = vmatpush1.bf16.msra.mxu0 0
        %3901 = vmatprep.subr.bf16.mxu0 0
        %3902 = vmatpush1.bf16.msra.mxu0 0
        %3903 = vmatprep.subr.bf16.mxu0 0
        %3904 = vmatpush1.bf16.msra.mxu0 0
        %3905 = vmatprep.subr.bf16.mxu0 0
        %3906 = vmatpush1.bf16.msra.mxu0 0
        %3907 = vmatprep.subr.bf16.mxu0 0
        %3908 = vmatpush1.bf16.msra.mxu0 0
        %3909 = vmatprep.mubr.bf16.mxu0 0
        %3910 = vmatmul.mubr.bf16.gmra.mrb[0].mxu0 %v3588
        %v3911 = vpop.f32.mrb[0].mxu0
        %v3912 = vadd.f32 %v1733, %v3911
        %v3913 = vpop.f32.mrb[0].mxu0
        %v3914 = vadd.f32 %v1737, %v3913
        %v3915 = vpop.f32.mrb[0].mxu0
        %v3916 = vpop.f32.mrb[0].mxu0
        %3917 = vdwg.mxu0
        %v3918 = vmax.f32 %v3625, 0.0
        %v3919 = vmax.f32 %v3627, 0.0
        %v3920 = vmax.f32 %v3666, 0.0
        %v3921 = vmax.f32 %v3668, 0.0
        %v3922 = vmax.f32 %v3707, 0.0
        %v3923 = vmax.f32 %v3709, 0.0
        %v3924 = vmax.f32 %v3748, 0.0
        %v3925 = vmax.f32 %v3750, 0.0
        %v3926 = vmax.f32 %v3789, 0.0
        %v3927 = vmax.f32 %v3791, 0.0
        %v3928 = vmax.f32 %v3830, 0.0
        %v3929 = vmax.f32 %v3832, 0.0
        %v3930 = vmax.f32 %v3871, 0.0
        %v3931 = vmax.f32 %v3873, 0.0
        %v3932 = vmax.f32 %v3912, 0.0
        %v3933 = vmax.f32 %v3914, 0.0
        %v3934 = vpack.c.bf16 %v3918, %v3918
        %v3935 = vpack.c.bf16 %v3919, %v3919
        %v3936 = vpack.c.bf16 %v3920, %v3920
        %v3937 = vpack.c.bf16 %v3921, %v3921
        %v3938 = vpack.c.bf16 %v3922, %v3922
        %v3939 = vpack.c.bf16 %v3923, %v3923
        %v3940 = vpack.c.bf16 %v3924, %v3924
        %v3941 = vpack.c.bf16 %v3925, %v3925
        %v3942 = vpack.c.bf16 %v3926, %v3926
        %v3943 = vpack.c.bf16 %v3927, %v3927
        %v3944 = vpack.c.bf16 %v3928, %v3928
        %v3945 = vpack.c.bf16 %v3929, %v3929
        %v3946 = vpack.c.bf16 %v3930, %v3930
        %v3947 = vpack.c.bf16 %v3931, %v3931
        %v3948 = vpack.c.bf16 %v3932, %v3932
        %v3949 = vpack.c.bf16 %v3933, %v3933
        %3950 = vmatprep.subr.bf16.mxu0 0
        %3951 = vmatpush1.bf16.msra.mxu0 %v2795
        %3952 = vmatprep.subr.bf16.mxu0 0
        %3953 = vmatpush1.bf16.msra.mxu0 %v2796
        %3954 = vmatprep.subr.bf16.mxu0 0
        %3955 = vmatpush1.bf16.msra.mxu0 %v2797
        %3956 = vmatprep.subr.bf16.mxu0 0
        %3957 = vmatpush1.bf16.msra.mxu0 %v2798
        %3958 = vmatprep.subr.bf16.mxu0 0
        %3959 = vmatpush1.bf16.msra.mxu0 %v2799
        %3960 = vmatprep.subr.bf16.mxu0 0
        %3961 = vmatpush1.bf16.msra.mxu0 %v2800
        %3962 = vmatprep.subr.bf16.mxu0 0
        %3963 = vmatpush1.bf16.msra.mxu0 %v2801
        %3964 = vmatprep.subr.bf16.mxu0 0
        %3965 = vmatpush1.bf16.msra.mxu0 %v2802
        %3966 = vmatprep.subr.bf16.mxu0 0
        %3967 = vmatpush1.bf16.msra.mxu0 %v2803
        %3968 = vmatprep.subr.bf16.mxu0 0
        %3969 = vmatpush1.bf16.msra.mxu0 %v2804
        %3970 = vmatprep.subr.bf16.mxu0 0
        %3971 = vmatpush1.bf16.msra.mxu0 %v2805
        %3972 = vmatprep.subr.bf16.mxu0 0
        %3973 = vmatpush1.bf16.msra.mxu0 %v2806
        %3974 = vmatprep.subr.bf16.mxu0 0
        %3975 = vmatpush1.bf16.msra.mxu0 %v2807
        %3976 = vmatprep.subr.bf16.mxu0 0
        %3977 = vmatpush1.bf16.msra.mxu0 %v2808
        %3978 = vmatprep.subr.bf16.mxu0 0
        %3979 = vmatpush1.bf16.msra.mxu0 %v2809
        %3980 = vmatprep.subr.bf16.mxu0 0
        %3981 = vmatpush1.bf16.msra.mxu0 %v2810
        %3982 = vmatprep.mubr.bf16.mxu0 %v3935
        %3983 = vmatmul.mubr.bf16.gmra.mrb[0].mxu0 %v3934
        %v3984 = vpop.f32.mrb[0].mxu0
        %v3985 = vadd.f32 %v2281, %v3984
        %v3986 = vpop.f32.mrb[0].mxu0
        %v3987 = vpop.f32.mrb[0].mxu0
        %v3988 = vpop.f32.mrb[0].mxu0
        %3989 = vdwg.mxu0
        %3990 = vmatprep.subr.bf16.mxu0 0
        %3991 = vmatpush1.bf16.msra.mxu0 %v2811
        %3992 = vmatprep.subr.bf16.mxu0 0
        %3993 = vmatpush1.bf16.msra.mxu0 %v2812
        %3994 = vmatprep.subr.bf16.mxu0 0
        %3995 = vmatpush1.bf16.msra.mxu0 %v2813
        %3996 = vmatprep.subr.bf16.mxu0 0
        %3997 = vmatpush1.bf16.msra.mxu0 %v2814
        %3998 = vmatprep.subr.bf16.mxu0 0
        %3999 = vmatpush1.bf16.msra.mxu0 %v2815
        %4000 = vmatprep.subr.bf16.mxu0 0
        %4001 = vmatpush1.bf16.msra.mxu0 %v2816
        %4002 = vmatprep.subr.bf16.mxu0 0
        %4003 = vmatpush1.bf16.msra.mxu0 %v2817
        %4004 = vmatprep.subr.bf16.mxu0 0
        %4005 = vmatpush1.bf16.msra.mxu0 %v2818
        %4006 = vmatprep.subr.bf16.mxu0 0
        %4007 = vmatpush1.bf16.msra.mxu0 %v2819
        %4008 = vmatprep.subr.bf16.mxu0 0
        %4009 = vmatpush1.bf16.msra.mxu0 %v2820
        %4010 = vmatprep.subr.bf16.mxu0 0
        %4011 = vmatpush1.bf16.msra.mxu0 %v2821
        %4012 = vmatprep.subr.bf16.mxu0 0
        %4013 = vmatpush1.bf16.msra.mxu0 %v2822
        %4014 = vmatprep.subr.bf16.mxu0 0
        %4015 = vmatpush1.bf16.msra.mxu0 %v2823
        %4016 = vmatprep.subr.bf16.mxu0 0
        %4017 = vmatpush1.bf16.msra.mxu0 %v2824
        %4018 = vmatprep.subr.bf16.mxu0 0
        %4019 = vmatpush1.bf16.msra.mxu0 %v2825
        %4020 = vmatprep.subr.bf16.mxu0 0
        %4021 = vmatpush1.bf16.msra.mxu0 %v2826
        %4022 = vmatprep.mubr.bf16.mxu0 %v3937
        %4023 = vmatmul.mubr.bf16.gmra.mrb[0].mxu0 %v3936
        %v4024 = vpop.f32.mrb[0].mxu0
        %v4025 = vadd.f32 %v3985, %v4024
        %v4026 = vpop.f32.mrb[0].mxu0
        %v4027 = vpop.f32.mrb[0].mxu0
        %v4028 = vpop.f32.mrb[0].mxu0
        %4029 = vdwg.mxu0
        %4030 = vmatprep.subr.bf16.mxu0 0
        %4031 = vmatpush1.bf16.msra.mxu0 %v2827
        %4032 = vmatprep.subr.bf16.mxu0 0
        %4033 = vmatpush1.bf16.msra.mxu0 %v2828
        %4034 = vmatprep.subr.bf16.mxu0 0
        %4035 = vmatpush1.bf16.msra.mxu0 %v2829
        %4036 = vmatprep.subr.bf16.mxu0 0
        %4037 = vmatpush1.bf16.msra.mxu0 %v2830
        %4038 = vmatprep.subr.bf16.mxu0 0
        %4039 = vmatpush1.bf16.msra.mxu0 %v2831
        %4040 = vmatprep.subr.bf16.mxu0 0
        %4041 = vmatpush1.bf16.msra.mxu0 %v2832
        %4042 = vmatprep.subr.bf16.mxu0 0
        %4043 = vmatpush1.bf16.msra.mxu0 %v2833
        %4044 = vmatprep.subr.bf16.mxu0 0
        %4045 = vmatpush1.bf16.msra.mxu0 %v2834
        %4046 = vmatprep.subr.bf16.mxu0 0
        %4047 = vmatpush1.bf16.msra.mxu0 %v2835
        %4048 = vmatprep.subr.bf16.mxu0 0
        %4049 = vmatpush1.bf16.msra.mxu0 %v2836
        %4050 = vmatprep.subr.bf16.mxu0 0
        %4051 = vmatpush1.bf16.msra.mxu0 %v2837
        %4052 = vmatprep.subr.bf16.mxu0 0
        %4053 = vmatpush1.bf16.msra.mxu0 %v2838
        %4054 = vmatprep.subr.bf16.mxu0 0
        %4055 = vmatpush1.bf16.msra.mxu0 %v2839
        %4056 = vmatprep.subr.bf16.mxu0 0
        %4057 = vmatpush1.bf16.msra.mxu0 %v2840
        %4058 = vmatprep.subr.bf16.mxu0 0
        %4059 = vmatpush1.bf16.msra.mxu0 %v2841
        %4060 = vmatprep.subr.bf16.mxu0 0
        %4061 = vmatpush1.bf16.msra.mxu0 %v2842
        %4062 = vmatprep.mubr.bf16.mxu0 %v3939
        %4063 = vmatmul.mubr.bf16.gmra.mrb[0].mxu0 %v3938
        %v4064 = vpop.f32.mrb[0].mxu0
        %v4065 = vadd.f32 %v4025, %v4064
        %v4066 = vpop.f32.mrb[0].mxu0
        %v4067 = vpop.f32.mrb[0].mxu0
        %v4068 = vpop.f32.mrb[0].mxu0
        %4069 = vdwg.mxu0
        %4070 = vmatprep.subr.bf16.mxu0 0
        %4071 = vmatpush1.bf16.msra.mxu0 %v2843
        %4072 = vmatprep.subr.bf16.mxu0 0
        %4073 = vmatpush1.bf16.msra.mxu0 %v2844
        %4074 = vmatprep.subr.bf16.mxu0 0
        %4075 = vmatpush1.bf16.msra.mxu0 %v2845
        %4076 = vmatprep.subr.bf16.mxu0 0
        %4077 = vmatpush1.bf16.msra.mxu0 %v2846
        %4078 = vmatprep.subr.bf16.mxu0 0
        %4079 = vmatpush1.bf16.msra.mxu0 %v2847
        %4080 = vmatprep.subr.bf16.mxu0 0
        %4081 = vmatpush1.bf16.msra.mxu0 %v2848
        %4082 = vmatprep.subr.bf16.mxu0 0
        %4083 = vmatpush1.bf16.msra.mxu0 %v2849
        %4084 = vmatprep.subr.bf16.mxu0 0
        %4085 = vmatpush1.bf16.msra.mxu0 %v2850
        %4086 = vmatprep.subr.bf16.mxu0 0
        %4087 = vmatpush1.bf16.msra.mxu0 %v2851
        %4088 = vmatprep.subr.bf16.mxu0 0
        %4089 = vmatpush1.bf16.msra.mxu0 %v2852
        %4090 = vmatprep.subr.bf16.mxu0 0
        %4091 = vmatpush1.bf16.msra.mxu0 %v2853
        %4092 = vmatprep.subr.bf16.mxu0 0
        %4093 = vmatpush1.bf16.msra.mxu0 %v2854
        %4094 = vmatprep.subr.bf16.mxu0 0
        %4095 = vmatpush1.bf16.msra.mxu0 %v2855
        %4096 = vmatprep.subr.bf16.mxu0 0
        %4097 = vmatpush1.bf16.msra.mxu0 %v2856
        %4098 = vmatprep.subr.bf16.mxu0 0
        %4099 = vmatpush1.bf16.msra.mxu0 %v2857
        %4100 = vmatprep.subr.bf16.mxu0 0
        %4101 = vmatpush1.bf16.msra.mxu0 %v2858
        %4102 = vmatprep.mubr.bf16.mxu0 %v3941
        %4103 = vmatmul.mubr.bf16.gmra.mrb[0].mxu0 %v3940
        %v4104 = vpop.f32.mrb[0].mxu0
        %v4105 = vadd.f32 %v4065, %v4104
        %v4106 = vpop.f32.mrb[0].mxu0
        %v4107 = vpop.f32.mrb[0].mxu0
        %v4108 = vpop.f32.mrb[0].mxu0
        %4109 = vdwg.mxu0
        %4110 = vmatprep.subr.bf16.mxu0 0
        %4111 = vmatpush1.bf16.msra.mxu0 %v2859
        %4112 = vmatprep.subr.bf16.mxu0 0
        %4113 = vmatpush1.bf16.msra.mxu0 %v2860
        %4114 = vmatprep.subr.bf16.mxu0 0
        %4115 = vmatpush1.bf16.msra.mxu0 %v2861
        %4116 = vmatprep.subr.bf16.mxu0 0
        %4117 = vmatpush1.bf16.msra.mxu0 %v2862
        %4118 = vmatprep.subr.bf16.mxu0 0
        %4119 = vmatpush1.bf16.msra.mxu0 %v2863
        %4120 = vmatprep.subr.bf16.mxu0 0
        %4121 = vmatpush1.bf16.msra.mxu0 %v2864
        %4122 = vmatprep.subr.bf16.mxu0 0
        %4123 = vmatpush1.bf16.msra.mxu0 %v2865
        %4124 = vmatprep.subr.bf16.mxu0 0
        %4125 = vmatpush1.bf16.msra.mxu0 %v2866
        %4126 = vmatprep.subr.bf16.mxu0 0
        %4127 = vmatpush1.bf16.msra.mxu0 %v2867
        %4128 = vmatprep.subr.bf16.mxu0 0
        %4129 = vmatpush1.bf16.msra.mxu0 %v2868
        %4130 = vmatprep.subr.bf16.mxu0 0
        %4131 = vmatpush1.bf16.msra.mxu0 %v2869
        %4132 = vmatprep.subr.bf16.mxu0 0
        %4133 = vmatpush1.bf16.msra.mxu0 %v2870
        %4134 = vmatprep.subr.bf16.mxu0 0
        %4135 = vmatpush1.bf16.msra.mxu0 %v2871
        %4136 = vmatprep.subr.bf16.mxu0 0
        %4137 = vmatpush1.bf16.msra.mxu0 %v2872
        %4138 = vmatprep.subr.bf16.mxu0 0
        %4139 = vmatpush1.bf16.msra.mxu0 %v2873
        %4140 = vmatprep.subr.bf16.mxu0 0
        %4141 = vmatpush1.bf16.msra.mxu0 %v2874
        %4142 = vmatprep.mubr.bf16.mxu0 %v3943
        %4143 = vmatmul.mubr.bf16.gmra.mrb[0].mxu0 %v3942
        %v4144 = vpop.f32.mrb[0].mxu0
        %v4145 = vadd.f32 %v4105, %v4144
        %v4146 = vpop.f32.mrb[0].mxu0
        %v4147 = vpop.f32.mrb[0].mxu0
        %v4148 = vpop.f32.mrb[0].mxu0
        %4149 = vdwg.mxu0
        %4150 = vmatprep.subr.bf16.mxu0 0
        %4151 = vmatpush1.bf16.msra.mxu0 %v2875
        %4152 = vmatprep.subr.bf16.mxu0 0
        %4153 = vmatpush1.bf16.msra.mxu0 %v2876
        %4154 = vmatprep.subr.bf16.mxu0 0
        %4155 = vmatpush1.bf16.msra.mxu0 %v2877
        %4156 = vmatprep.subr.bf16.mxu0 0
        %4157 = vmatpush1.bf16.msra.mxu0 %v2878
        %4158 = vmatprep.subr.bf16.mxu0 0
        %4159 = vmatpush1.bf16.msra.mxu0 %v2879
        %4160 = vmatprep.subr.bf16.mxu0 0
        %4161 = vmatpush1.bf16.msra.mxu0 %v2880
        %4162 = vmatprep.subr.bf16.mxu0 0
        %4163 = vmatpush1.bf16.msra.mxu0 %v2881
        %4164 = vmatprep.subr.bf16.mxu0 0
        %4165 = vmatpush1.bf16.msra.mxu0 %v2882
        %4166 = vmatprep.subr.bf16.mxu0 0
        %4167 = vmatpush1.bf16.msra.mxu0 %v2883
        %4168 = vmatprep.subr.bf16.mxu0 0
        %4169 = vmatpush1.bf16.msra.mxu0 %v2884
        %4170 = vmatprep.subr.bf16.mxu0 0
        %4171 = vmatpush1.bf16.msra.mxu0 %v2885
        %4172 = vmatprep.subr.bf16.mxu0 0
        %4173 = vmatpush1.bf16.msra.mxu0 %v2886
        %4174 = vmatprep.subr.bf16.mxu0 0
        %4175 = vmatpush1.bf16.msra.mxu0 %v2887
        %4176 = vmatprep.subr.bf16.mxu0 0
        %4177 = vmatpush1.bf16.msra.mxu0 %v2888
        %4178 = vmatprep.subr.bf16.mxu0 0
        %4179 = vmatpush1.bf16.msra.mxu0 %v2889
        %4180 = vmatprep.subr.bf16.mxu0 0
        %4181 = vmatpush1.bf16.msra.mxu0 %v2890
        %4182 = vmatprep.mubr.bf16.mxu0 %v3945
        %4183 = vmatmul.mubr.bf16.gmra.mrb[0].mxu0 %v3944
        %v4184 = vpop.f32.mrb[0].mxu0
        %v4185 = vadd.f32 %v4145, %v4184
        %v4186 = vpop.f32.mrb[0].mxu0
        %v4187 = vpop.f32.mrb[0].mxu0
        %v4188 = vpop.f32.mrb[0].mxu0
        %4189 = vdwg.mxu0
        %4190 = vmatprep.subr.bf16.mxu0 0
        %4191 = vmatpush1.bf16.msra.mxu0 %v2891
        %4192 = vmatprep.subr.bf16.mxu0 0
        %4193 = vmatpush1.bf16.msra.mxu0 %v2892
        %4194 = vmatprep.subr.bf16.mxu0 0
        %4195 = vmatpush1.bf16.msra.mxu0 %v2893
        %4196 = vmatprep.subr.bf16.mxu0 0
        %4197 = vmatpush1.bf16.msra.mxu0 %v2894
        %4198 = vmatprep.subr.bf16.mxu0 0
        %4199 = vmatpush1.bf16.msra.mxu0 %v2895
        %4200 = vmatprep.subr.bf16.mxu0 0
        %4201 = vmatpush1.bf16.msra.mxu0 %v2896
        %4202 = vmatprep.subr.bf16.mxu0 0
        %4203 = vmatpush1.bf16.msra.mxu0 %v2897
        %4204 = vmatprep.subr.bf16.mxu0 0
        %4205 = vmatpush1.bf16.msra.mxu0 %v2898
        %4206 = vmatprep.subr.bf16.mxu0 0
        %4207 = vmatpush1.bf16.msra.mxu0 %v2899
        %4208 = vmatprep.subr.bf16.mxu0 0
        %4209 = vmatpush1.bf16.msra.mxu0 %v2900
        %4210 = vmatprep.subr.bf16.mxu0 0
        %4211 = vmatpush1.bf16.msra.mxu0 %v2901
        %4212 = vmatprep.subr.bf16.mxu0 0
        %4213 = vmatpush1.bf16.msra.mxu0 %v2902
        %4214 = vmatprep.subr.bf16.mxu0 0
        %4215 = vmatpush1.bf16.msra.mxu0 %v2903
        %4216 = vmatprep.subr.bf16.mxu0 0
        %4217 = vmatpush1.bf16.msra.mxu0 %v2904
        %4218 = vmatprep.subr.bf16.mxu0 0
        %4219 = vmatpush1.bf16.msra.mxu0 %v2905
        %4220 = vmatprep.subr.bf16.mxu0 0
        %4221 = vmatpush1.bf16.msra.mxu0 %v2906
        %4222 = vmatprep.mubr.bf16.mxu0 %v3947
        %4223 = vmatmul.mubr.bf16.gmra.mrb[0].mxu0 %v3946
        %v4224 = vpop.f32.mrb[0].mxu0
        %v4225 = vadd.f32 %v4185, %v4224
        %v4226 = vpop.f32.mrb[0].mxu0
        %v4227 = vpop.f32.mrb[0].mxu0
        %v4228 = vpop.f32.mrb[0].mxu0
        %4229 = vdwg.mxu0
        %4230 = vmatprep.subr.bf16.mxu0 0
        %4231 = vmatpush1.bf16.msra.mxu0 %v2907
        %4232 = vmatprep.subr.bf16.mxu0 0
        %4233 = vmatpush1.bf16.msra.mxu0 %v2908
        %4234 = vmatprep.subr.bf16.mxu0 0
        %4235 = vmatpush1.bf16.msra.mxu0 %v2909
        %4236 = vmatprep.subr.bf16.mxu0 0
        %4237 = vmatpush1.bf16.msra.mxu0 %v2910
        %4238 = vmatprep.subr.bf16.mxu0 0
        %4239 = vmatpush1.bf16.msra.mxu0 %v2911
        %4240 = vmatprep.subr.bf16.mxu0 0
        %4241 = vmatpush1.bf16.msra.mxu0 %v2912
        %4242 = vmatprep.subr.bf16.mxu0 0
        %4243 = vmatpush1.bf16.msra.mxu0 %v2913
        %4244 = vmatprep.subr.bf16.mxu0 0
        %4245 = vmatpush1.bf16.msra.mxu0 %v2914
        %4246 = vmatprep.subr.bf16.mxu0 0
        %4247 = vmatpush1.bf16.msra.mxu0 %v2915
        %4248 = vmatprep.subr.bf16.mxu0 0
        %4249 = vmatpush1.bf16.msra.mxu0 %v2916
        %4250 = vmatprep.subr.bf16.mxu0 0
        %4251 = vmatpush1.bf16.msra.mxu0 %v2917
        %4252 = vmatprep.subr.bf16.mxu0 0
        %4253 = vmatpush1.bf16.msra.mxu0 %v2918
        %4254 = vmatprep.subr.bf16.mxu0 0
        %4255 = vmatpush1.bf16.msra.mxu0 %v2919
        %4256 = vmatprep.subr.bf16.mxu0 0
        %4257 = vmatpush1.bf16.msra.mxu0 %v2920
        %4258 = vmatprep.subr.bf16.mxu0 0
        %4259 = vmatpush1.bf16.msra.mxu0 %v2921
        %4260 = vmatprep.subr.bf16.mxu0 0
        %4261 = vmatpush1.bf16.msra.mxu0 %v2922
        %4262 = vmatprep.mubr.bf16.mxu0 %v3949
        %4263 = vmatmul.mubr.bf16.gmra.mrb[0].mxu0 %v3948
        %v4264 = vpop.f32.mrb[0].mxu0
        %v4265 = vadd.f32 %v4225, %v4264
        %v4266 = vpop.f32.mrb[0].mxu0
        %v4267 = vpop.f32.mrb[0].mxu0
        %v4268 = vpop.f32.mrb[0].mxu0
        %4269 = vdwg.mxu0
        %v4270 = vadd.f32 %v4265, %v3585
        %v4271 = vsel %vm1270, %v4270, 0.0
        %4272 = vadd.xlane.f32.xlu0 %v4271
        %v4273 = vpop.xlane.xlu0 %4272
        %v4274 = vmul.f32 %v4273, %v1646
        %v4275 = vsub.f32 %v4270, %v4274
        %v4276 = vmul.f32 %v4275, %v4275
        %v4277 = vsel %vm1270, %v4276, 0.0
        %4278 = vadd.xlane.f32.xlu0 %v4277
        %v4279 = vpop.xlane.xlu0 %4278
        %v4280 = vmul.f32 %v4279, %v1646
        %v4281 = vadd.f32 %v4280, 1e-05
        %v4282 = vrsqrt.pop %v4281
        %v4283 = vmul.f32 %v4275, %v4282
        %v4284 = vmul.f32 %v4283, %v3389
        %v4285 = vadd.f32 %v4284, %v3396
        %4286 = vst.msk [vmem:[%s3568] sm:$0xff] %vm1270, %v4285
        %p4287 = scmp.eq.s32.totalorder %s35, 1
        // Predicated region
        $region142: #{vision_transformer_forward.3} parent=132 // pred_check
          %p4288 = pneg %p4287
        $region143: #{vision_transformer_forward.3} parent=132 // pred_check_branch
          %4290 = sbr.rel (%p4288) target = $region145
        $region144: #{vision_transformer_forward.3} parent=132 // pred_region
          %v4291 = vld [vmem:[#allocation2] sm:$0xff]
          %v4292 = vld [vmem:[#allocation2 + $0x8] sm:$0xff]
          %4293 = vst.msk [vmem:[%s855] sm:$0xff] %vm1270, %v4291
          %4294 = vst.msk [vmem:[%s855 + $0x8] sm:$0xff] %vm1270, %v4292
        $region145: #{vision_transformer_forward.3} parent=132 // pred_fallthru
          _
        %s4295 = sand.u32 %s534, 1
        %s4296 = sand.u32 %s534, 1
        %s4297 = smul.addr %s4296, 16
        %s4298 = scalar_lea.vmem [#allocation7], %s4297
        // Predicated region
        $region146: #{vision_transformer_forward.3} parent=132 // pred_check
          %p4299 = pneg %p544
        $region147: #{vision_transformer_forward.3} parent=132 // pred_check_branch
          %4301 = sbr.rel (%p4299) target = $region149
        $region148: #{vision_transformer_forward.3} parent=132 // pred_region
          %s4302 = smul.addr %s34, 8
          %s4303 = scalar_lea.vmem %s19, %s4302
          // Predicated region
          $region150: #{vision_transformer_forward.3} parent=148 // pred_check
            _
          $region151: #{vision_transformer_forward.3} parent=148 // pred_check_branch
            %4305 = sbr.rel (0) target = $region153
          $region152: #{vision_transformer_forward.3} parent=148 // pred_region
            // Predicated region
            $region154: #{vision_transformer_forward.3} parent=152 // pred_check
              _
            $region155: #{vision_transformer_forward.3} parent=152 // pred_check_branch
              %4307 = sbr.rel (0) target = $region157
            $region156: #{vision_transformer_forward.3} parent=152 // pred_region
              // Predicated region
              $region169: #{vision_transformer_forward.3} parent=156 // pred_check
                _
              $region170: #{vision_transformer_forward.3} parent=156 // pred_check_branch
                %4324 = sbr.rel (0) target = $region172
              $region171: #{vision_transformer_forward.3} parent=156 // pred_region
                loop: start=0, step=1, limit=1
                $region173: #{vision_transformer_forward.3} parent=171 // loop_pre_header
                  _
                $region174: #{vision_transformer_forward.3} parent=171 // loop_header
                  %s4326 = sphi 0, %s4330
                  %p4327 = scmp.ge.s32.totalorder %s4326, 1
                  %s4331 = sphi %s4298, %s4298
                  %s4332 = sphi %s4303, %s4303
                $region175: #{vision_transformer_forward.3} parent=171 // loop_header_branch
                  %4329 = sbr.rel (%p4327) target = $region179
                $region176: #{vision_transformer_forward.3} parent=171 // loop_body
                  %v4333 = vld [vmem:[%s4331] sm:$0xff]
                  %4334 = vst [vmem:[%s4332] sm:$0xff] %v4333
                  %v4335 = vld [vmem:[%s4331 + $0x8] sm:$0xff]
                  %4336 = vst [vmem:[%s4332 + $0x18] sm:$0xff] %v4335
                $region177: #{vision_transformer_forward.3} parent=171 // loop_footer
                  %s4330 = sadd.s32 1, %s4326
                $region178: #{vision_transformer_forward.3} parent=171 // loop_footer_branch
                  %4325 = sbr.rel target = $region174
                $region179: #{vision_transformer_forward.3} parent=171 // loop_exit
                  _
              $region172: #{vision_transformer_forward.3} parent=156 // pred_fallthru
                _
              // Predicated region
              $region180: #{vision_transformer_forward.3} parent=156 // pred_check
                _
              $region181: #{vision_transformer_forward.3} parent=156 // pred_check_branch
                %4338 = sbr.rel target = $region183
              $region182: #{vision_transformer_forward.3} parent=156 // pred_region
                _
              $region183: #{vision_transformer_forward.3} parent=156 // pred_fallthru
                _
            $region157: #{vision_transformer_forward.3} parent=152 // pred_fallthru
              _
            // Predicated region
            $region158: #{vision_transformer_forward.3} parent=152 // pred_check
              _
            $region159: #{vision_transformer_forward.3} parent=152 // pred_check_branch
              %4309 = sbr.rel target = $region161
            $region160: #{vision_transformer_forward.3} parent=152 // pred_region
              loop: start=0, step=1, limit=1
              $region162: #{vision_transformer_forward.3} parent=160 // loop_pre_header
                _
              $region163: #{vision_transformer_forward.3} parent=160 // loop_header
                %s4312 = sphi 0, %s4316
                %p4313 = scmp.ge.s32.totalorder %s4312, 1
                %s4317 = sphi %s4298, %s4298
                %s4318 = sphi %s4303, %s4303
              $region164: #{vision_transformer_forward.3} parent=160 // loop_header_branch
                %4315 = sbr.rel (%p4313) target = $region168
              $region165: #{vision_transformer_forward.3} parent=160 // loop_body
                %v4319 = vld [vmem:[%s4317] sm:$0xff]
                %4320 = vst [vmem:[%s4318] sm:$0xff] %v4319
                %v4321 = vld [vmem:[%s4317 + $0x8] sm:$0xff]
                %4322 = vst [vmem:[%s4318 + $0x18] sm:$0xff] %v4321
              $region166: #{vision_transformer_forward.3} parent=160 // loop_footer
                %s4316 = sadd.s32 1, %s4312
              $region167: #{vision_transformer_forward.3} parent=160 // loop_footer_branch
                %4311 = sbr.rel target = $region163
              $region168: #{vision_transformer_forward.3} parent=160 // loop_exit
                _
            $region161: #{vision_transformer_forward.3} parent=152 // pred_fallthru
              _
          $region153: #{vision_transformer_forward.3} parent=148 // pred_fallthru
            _
          %4339 = vnop
        $region149: #{vision_transformer_forward.3} parent=132 // pred_fallthru
          _
      $region133: #{vision_transformer_forward.3} parent=5 // pred_fallthru
        _
      %p4340 = scmp.le.s32.totalorder 2, %s25
      // Predicated region
      $region184: #{vision_transformer_forward.3} parent=5 // pred_check
        %p4341 = pneg %p4340
      $region185: #{vision_transformer_forward.3} parent=5 // pred_check_branch
        %4343 = sbr.rel (%p4341) target = $region187
      $region186: #{vision_transformer_forward.3} parent=5 // pred_region
        %s4344 = ssub.s32 %s25, 2
        // Predicated region
        $region188: #{vision_transformer_forward.3} parent=186 // pred_check
          %p4345 = pneg %p550
        $region189: #{vision_transformer_forward.3} parent=186 // pred_check_branch
          %4347 = sbr.rel (%p4345) target = $region191
        $region190: #{vision_transformer_forward.3} parent=186 // pred_region
          %s4348 = sand.u32 %s535, 1
          %s4349 = sand.u32 %s535, 1
          %s4350 = smul.addr %s4349, 16
          %s4351 = scalar_lea.vmem [#allocation7], %s4350
        $region191: #{vision_transformer_forward.3} parent=186 // pred_fallthru
          _
      $region187: #{vision_transformer_forward.3} parent=5 // pred_fallthru
        _
    $region6: #{vision_transformer_forward.3} parent=1 // loop_footer
      %s29 = sadd.s32 1, %s25
    $region7: #{vision_transformer_forward.3} parent=1 // loop_footer_branch
      %24 = sbr.rel target = $region3
    $region8: #{vision_transformer_forward.3} parent=1 // loop_exit
      _

</llo_original>
